<compile_context>
chip_gen: v5e
topology: v5e:2x2
jax: 0.10.0
libtpu: 0.0.40
codegen_flags: <defaults>
</compile_context>

<pallas_src>
import functools

import jax
import jax.numpy as jnp
from jax.experimental import pallas as pl
from jax.experimental.pallas import tpu as pltpu


def _spatial_attention_kernel(x_ref, w_ref, o_ref, pad_ref, att_ref,
                              *, B, C, H, W, K, P, CH):
    """One grid step: B images, lane-dense (B, C, H*W) layout.

    x_ref  : VMEM (B, C, H*W)        input block (any float dtype)
    w_ref  : SMEM (2*K*K,)           flattened conv weight (O=1, I=2, K, K), f32
    o_ref  : VMEM (B, C, H*W)        output block (same dtype as x)
    pad_ref: VMEM (2*B, H+2P, W+2P)  f32 scratch: zero-padded [avg; max] maps
    att_ref: VMEM (B, 1, H*W)        f32 scratch: flattened attention map
    """
    HW = H * W

    # ---- 1) Fused single-pass channel mean + max (streamed over C). ----
    # No full-block f32 copy: each CH-channel chunk is loaded, cast, reduced
    # over its sublanes and folded into the (B, HW) f32 accumulators.
    sum_acc = jnp.zeros((B, HW), jnp.float32)
    max_acc = jnp.full((B, HW), -jnp.inf, jnp.float32)
    c0 = 0
    while c0 < C:
        cs = min(CH, C - c0)
        chunk = x_ref[:, c0:c0 + cs, :].astype(jnp.float32)   # (B, cs, HW)
        sum_acc = sum_acc + jnp.sum(chunk, axis=1)
        max_acc = jnp.maximum(max_acc, jnp.max(chunk, axis=1))
        c0 += cs
    avg = sum_acc * (1.0 / C)                                  # (B, HW)
    mx = max_acc                                               # (B, HW)

    # ---- 2) Bridge lane-dense rows into the zero-padded 2-D map. ----
    # Full-buffer memset (cheap, megacore-safe); see module comment for why
    # this beats border-only zeroing / program_id==0 gating here.
    pad_ref[...] = jnp.zeros_like(pad_ref)
    for r in range(H):
        row = slice(r * W, (r + 1) * W)
        pad_ref[0:B, P + r, P:P + W] = avg[:, row]             # channel 0 = mean
        pad_ref[B:2 * B, P + r, P:P + W] = mx[:, row]          # channel 1 = max

    # ---- 3) Direct KxK conv (cross-correlation, no bias). ----
    # One slab loaded from VMEM per (channel, kw), sliced in-register over kh:
    # at most one slab live at a time -> no vreg spills.
    n_acc = 4
    accs = [jnp.zeros((B, H, W), jnp.float32) for _ in range(n_acc)]
    t = 0
    for c in range(2):
        for kw in range(K):
            slab = pad_ref[c * B:(c + 1) * B, :, kw:kw + W]    # (B, H+2P, W) f32
            for kh in range(K):
                widx = c * K * K + kh * K + kw
                accs[t % n_acc] = accs[t % n_acc] + w_ref[widx] * slab[:, kh:kh + H, :]
                t += 1
    acc = (accs[0] + accs[1]) + (accs[2] + accs[3])            # (B, H, W)

    att2d = jax.nn.sigmoid(acc)                                # (B, H, W) f32

    # ---- 4) Flatten the tiny attention map back to lane-dense via VMEM. ----
    for r in range(H):
        att_ref[0:B, 0, r * W:(r + 1) * W] = att2d[:, r, :]
    att = att_ref[...]                                         # (B, 1, HW) f32

    # ---- 5) Scale: re-read x and multiply in the INPUT dtype. ----
    o_ref[...] = x_ref[...] * att.astype(o_ref.dtype)


def _tpu_vmem_capacity_bytes():
    """Physical VMEM per core; conservative (v7x-like) fallback on failure."""
    try:
        info = pltpu.get_tpu_info()
        cap = getattr(info, "vmem_capacity_bytes", None)
        if cap:
            return int(cap)
    except Exception:
        pass
    return 64 << 20


def _pick_batch_tile(N, bytes_per_image, big_vmem):
    """Largest divisor of N under a generation-aware per-block budget.

    v5e/v6e (128 MiB VMEM, 1 TC): ~12 MiB blocks, no step-count floor.
    v7x (64 MiB VMEM, 2 TCs): ~7 MiB blocks, >=2 grid steps so both cores get
    work, and an even step count preferred (no tail imbalance)."""
    budget = (12 << 20) if big_vmem else (7 << 20)
    max_bt = max(1, budget // max(int(bytes_per_image), 1))
    if not big_vmem and N >= 2:
        max_bt = min(max_bt, max(1, N // 2))
    max_bt = max(1, min(max_bt, N))
    divisors = [d for d in range(1, max_bt + 1) if N % d == 0]
    bt = divisors[-1]
    if not big_vmem:
        even_steps = [d for d in divisors if (N // d) % 2 == 0]
        if even_steps and 2 * even_steps[-1] >= bt:
            bt = even_steps[-1]
    # TODO(synk): allow non-divisor tiles (masked tail block) so a prime N with
    # tiny images does not degenerate to N single-image grid steps.
    return bt


def _reduce_chunk_size(B, C, HW):
    """Channels per streaming-reduce chunk: one sublane tile (8) when it fits,
    shrunk so the per-chunk f32 cast temporary stays <= ~256 KiB."""
    ch = min(C, 8)
    while ch > 1 and B * ch * HW * 4 > (256 << 10):
        ch //= 2
    return max(1, ch)


def spatial_attention(x, conv_weight):
    """x: (N, C, H, W) float; conv_weight: (1, 2, K, K) float (bias-free conv)."""
    N, C, H, W = x.shape
    K = conv_weight.shape[-1]
    P = K // 2
    HW = H * W

    # Lane-dense view (row-major, so this reshape is free outside the kernel).
    # NOTE: HW (e.g. 3136 / 784 / 196) is generally NOT a multiple of 128 --
    # only the trailing lane tile of each row is masked (~2% of lanes), which
    # is cheaper than re-padding the tensor.
    x_flat = x.reshape(N, C, HW)
    w_flat = conv_weight.reshape(-1).astype(jnp.float32)

    itemsize = jnp.dtype(x.dtype).itemsize
    vmem_cap = _tpu_vmem_capacity_bytes()
    big_vmem = vmem_cap >= (96 << 20)        # v5e / v6e: 128 MiB VMEM, single TC
    B = _pick_batch_tile(N, C * HW * itemsize, big_vmem)
    grid = (N // B,)
    CH = _reduce_chunk_size(B, C, HW)

    kernel = functools.partial(_spatial_attention_kernel,
                               B=B, C=C, H=H, W=W, K=K, P=P, CH=CH)

    # VMEM budget: double-buffered in/out blocks + declared scratch + an
    # allowance for compiler-materialized temporaries, capped safely below each
    # generation's physical VMEM.
    block_bytes = B * C * HW * itemsize
    pad_bytes = 2 * B * (H + 2 * P) * (W + 2 * P) * 4
    att_bytes = B * HW * 4
    temp_allow = (B * CH * HW * 4                       # chunk f32 cast
                  + 4 * B * H * W * 4                   # conv accumulators
                  + B * (H + 2 * P) * W * 4             # live conv slab
                  + 2 * B * HW * 4                      # sum/max accumulators
                  + (2 << 20))                          # headroom
    cap = (96 << 20) if big_vmem else (48 << 20)
    vmem_limit = int(min(max(4 * block_bytes + pad_bytes + att_bytes + temp_allow,
                             16 << 20), cap))

    out_flat = pl.pallas_call(
        kernel,
        out_shape=jax.ShapeDtypeStruct((N, C, HW), x.dtype),
        grid=grid,
        in_specs=[
            pl.BlockSpec((B, C, HW), lambda i: (i, 0, 0)),
            pl.BlockSpec(memory_space=pltpu.MemorySpace.SMEM),
        ],
        out_specs=pl.BlockSpec((B, C, HW), lambda i: (i, 0, 0)),
        scratch_shapes=[
            pltpu.VMEM((2 * B, H + 2 * P, W + 2 * P), jnp.float32),
            pltpu.VMEM((B, 1, HW), jnp.float32),
        ],
        compiler_params=pltpu.CompilerParams(
            dimension_semantics=("parallel",),
            vmem_limit_bytes=vmem_limit,
        ),
    )(x_flat, w_flat)

    return out_flat.reshape(N, C, H, W)


def _reference(x, conv_weight):
    """Pure-JAX reference mirroring the PyTorch forward."""
    avg = jnp.mean(x, axis=1, keepdims=True)
    mx = jnp.max(x, axis=1, keepdims=True)
    feat = jnp.concatenate([avg, mx], axis=1)           # (N, 2, H, W)
    K = conv_weight.shape[-1]
    P = K // 2
    out = jax.lax.conv_general_dilated(
        feat, conv_weight,
        window_strides=(1, 1),
        padding=[(P, P), (P, P)],
        dimension_numbers=("NCHW", "OIHW", "NCHW"),
    )
    return x * jax.nn.sigmoid(out)


if __name__ == "__main__":
    key = jax.random.PRNGKey(0)
    kx, kw = jax.random.split(key)

    N, C, H, W = 2, 4, 16, 16
    KSIZE = 7

    x = jax.random.normal(kx, (N, C, H, W), dtype=jnp.float32)
    # Deterministic synthetic conv weight, shape matches nn.Conv2d(2, 1, 7, bias=False).
    conv_weight = 0.1 * jax.random.normal(kw, (1, 2, KSIZE, KSIZE), dtype=jnp.float32)

    out = spatial_attention(x, conv_weight)
    out = jax.block_until_ready(out)

    ref = jax.block_until_ready(_reference(x, conv_weight))
    assert out.shape == (N, C, H, W)
    assert jnp.allclose(out, ref, rtol=1e-5, atol=1e-5), "mismatch vs reference"

    print("KERNEL_OK")
</pallas_src>

<mosaic_0001>
module attributes {stable_mosaic.version = 11 : i64} {
  func.func @_spatial_attention_kernel(%arg0: i32, %arg1: memref<1x4x256xf32, #tpu.memory_space<vmem>>, %arg2: memref<98xf32, #tpu.memory_space<smem>>, %arg3: memref<1x4x256xf32, #tpu.memory_space<vmem>>, %arg4: memref<2x22x22xf32, #tpu.memory_space<vmem>>, %arg5: memref<1x1x256xf32, #tpu.memory_space<vmem>>) attributes {dimension_semantics = [#tpu.dimension_semantics<parallel>], iteration_bounds = array<i64: 2>, scalar_prefetch = 0 : i64, scratch_operands = 2 : i64, tpu.core_type = #tpu.core_type<tc>, window_params = [{transform_indices = @transform_0, window_bounds = array<i64: 1, 4, 256>}, {transform_indices = @transform_1, window_bounds = array<i64: 98>}, {transform_indices = @transform_2, window_bounds = array<i64: 1, 4, 256>}]} {
    %cst = arith.constant 0.000000e+00 : f32
    %0 = vector.broadcast %cst : f32 to vector<1x256xf32>
    %cst_0 = arith.constant 0xFF800000 : f32
    %1 = vector.broadcast %cst_0 : f32 to vector<1x256xf32>
    %c0 = arith.constant 0 : index
    %c0_1 = arith.constant 0 : index
    %c0_2 = arith.constant 0 : index
    %2 = vector.load %arg1[%c0, %c0_1, %c0_2] : memref<1x4x256xf32, #tpu.memory_space<vmem>>, vector<1x4x256xf32>
    %cst_3 = arith.constant dense<0.000000e+00> : vector<1x256xf32>
    %3 = vector.multi_reduction <add>, %2, %cst_3 [1] : vector<1x4x256xf32> to vector<1x256xf32>
    %4 = arith.addf %0, %3 : vector<1x256xf32>
    %cst_4 = arith.constant dense<0xFF800000> : vector<1x256xf32>
    %5 = vector.multi_reduction <maximumf>, %2, %cst_4 [1] : vector<1x4x256xf32> to vector<1x256xf32>
    %6 = arith.maximumf %1, %5 : vector<1x256xf32>
    %cst_5 = arith.constant 2.500000e-01 : f32
    %7 = vector.broadcast %cst_5 : f32 to vector<1x256xf32>
    %8 = arith.mulf %4, %7 : vector<1x256xf32>
    %cst_6 = arith.constant 0.000000e+00 : f32
    %9 = vector.broadcast %cst_6 : f32 to vector<2x22x22xf32>
    %c0_7 = arith.constant 0 : index
    %c0_8 = arith.constant 0 : index
    %c0_9 = arith.constant 0 : index
    %10 = vector.load %arg4[%c0_7, %c0_8, %c0_9] : memref<2x22x22xf32, #tpu.memory_space<vmem>>, vector<2x22x22xf32>
    tpu.vector_store %arg4[%c0_7, %c0_8, %c0_9], %9 {strides = array<i32>} : memref<2x22x22xf32, #tpu.memory_space<vmem>>, vector<2x22x22xf32>,
    %11 = vector.extract_strided_slice %8 {offsets = [0, 0], sizes = [1, 16], strides = [1, 1]} : vector<1x256xf32> to vector<1x16xf32>
    %c0_10 = arith.constant 0 : index
    %c3 = arith.constant 3 : index
    %c3_11 = arith.constant 3 : index
    %12 = vector.load %arg4[%c0_10, %c3, %c3_11] : memref<2x22x22xf32, #tpu.memory_space<vmem>>, vector<1x1x16xf32>
    %13 = vector.shape_cast %12 : vector<1x1x16xf32> to vector<1x16xf32>
    %14 = vector.shape_cast %11 : vector<1x16xf32> to vector<1x1x16xf32>
    tpu.vector_store %arg4[%c0_10, %c3, %c3_11], %14 {strides = array<i32>} : memref<2x22x22xf32, #tpu.memory_space<vmem>>, vector<1x1x16xf32>,
    %15 = vector.extract_strided_slice %6 {offsets = [0, 0], sizes = [1, 16], strides = [1, 1]} : vector<1x256xf32> to vector<1x16xf32>
    %c1 = arith.constant 1 : index
    %c3_12 = arith.constant 3 : index
    %c3_13 = arith.constant 3 : index
    %16 = vector.load %arg4[%c1, %c3_12, %c3_13] : memref<2x22x22xf32, #tpu.memory_space<vmem>>, vector<1x1x16xf32>
    %17 = vector.shape_cast %16 : vector<1x1x16xf32> to vector<1x16xf32>
    %18 = vector.shape_cast %15 : vector<1x16xf32> to vector<1x1x16xf32>
    tpu.vector_store %arg4[%c1, %c3_12, %c3_13], %18 {strides = array<i32>} : memref<2x22x22xf32, #tpu.memory_space<vmem>>, vector<1x1x16xf32>,
    %19 = vector.extract_strided_slice %8 {offsets = [0, 16], sizes = [1, 16], strides = [1, 1]} : vector<1x256xf32> to vector<1x16xf32>
    %c0_14 = arith.constant 0 : index
    %c4 = arith.constant 4 : index
    %c3_15 = arith.constant 3 : index
    %20 = vector.load %arg4[%c0_14, %c4, %c3_15] : memref<2x22x22xf32, #tpu.memory_space<vmem>>, vector<1x1x16xf32>
    %21 = vector.shape_cast %20 : vector<1x1x16xf32> to vector<1x16xf32>
    %22 = vector.shape_cast %19 : vector<1x16xf32> to vector<1x1x16xf32>
    tpu.vector_store %arg4[%c0_14, %c4, %c3_15], %22 {strides = array<i32>} : memref<2x22x22xf32, #tpu.memory_space<vmem>>, vector<1x1x16xf32>,
    %23 = vector.extract_strided_slice %6 {offsets = [0, 16], sizes = [1, 16], strides = [1, 1]} : vector<1x256xf32> to vector<1x16xf32>
    %c1_16 = arith.constant 1 : index
    %c4_17 = arith.constant 4 : index
    %c3_18 = arith.constant 3 : index
    %24 = vector.load %arg4[%c1_16, %c4_17, %c3_18] : memref<2x22x22xf32, #tpu.memory_space<vmem>>, vector<1x1x16xf32>
    %25 = vector.shape_cast %24 : vector<1x1x16xf32> to vector<1x16xf32>
    %26 = vector.shape_cast %23 : vector<1x16xf32> to vector<1x1x16xf32>
    tpu.vector_store %arg4[%c1_16, %c4_17, %c3_18], %26 {strides = array<i32>} : memref<2x22x22xf32, #tpu.memory_space<vmem>>, vector<1x1x16xf32>,
    %27 = vector.extract_strided_slice %8 {offsets = [0, 32], sizes = [1, 16], strides = [1, 1]} : vector<1x256xf32> to vector<1x16xf32>
    %c0_19 = arith.constant 0 : index
    %c5 = arith.constant 5 : index
    %c3_20 = arith.constant 3 : index
    %28 = vector.load %arg4[%c0_19, %c5, %c3_20] : memref<2x22x22xf32, #tpu.memory_space<vmem>>, vector<1x1x16xf32>
    %29 = vector.shape_cast %28 : vector<1x1x16xf32> to vector<1x16xf32>
    %30 = vector.shape_cast %27 : vector<1x16xf32> to vector<1x1x16xf32>
    tpu.vector_store %arg4[%c0_19, %c5, %c3_20], %30 {strides = array<i32>} : memref<2x22x22xf32, #tpu.memory_space<vmem>>, vector<1x1x16xf32>,
    %31 = vector.extract_strided_slice %6 {offsets = [0, 32], sizes = [1, 16], strides = [1, 1]} : vector<1x256xf32> to vector<1x16xf32>
    %c1_21 = arith.constant 1 : index
    %c5_22 = arith.constant 5 : index
    %c3_23 = arith.constant 3 : index
    %32 = vector.load %arg4[%c1_21, %c5_22, %c3_23] : memref<2x22x22xf32, #tpu.memory_space<vmem>>, vector<1x1x16xf32>
    %33 = vector.shape_cast %32 : vector<1x1x16xf32> to vector<1x16xf32>
    %34 = vector.shape_cast %31 : vector<1x16xf32> to vector<1x1x16xf32>
    tpu.vector_store %arg4[%c1_21, %c5_22, %c3_23], %34 {strides = array<i32>} : memref<2x22x22xf32, #tpu.memory_space<vmem>>, vector<1x1x16xf32>,
    %35 = vector.extract_strided_slice %8 {offsets = [0, 48], sizes = [1, 16], strides = [1, 1]} : vector<1x256xf32> to vector<1x16xf32>
    %c0_24 = arith.constant 0 : index
    %c6 = arith.constant 6 : index
    %c3_25 = arith.constant 3 : index
    %36 = vector.load %arg4[%c0_24, %c6, %c3_25] : memref<2x22x22xf32, #tpu.memory_space<vmem>>, vector<1x1x16xf32>
    %37 = vector.shape_cast %36 : vector<1x1x16xf32> to vector<1x16xf32>
    %38 = vector.shape_cast %35 : vector<1x16xf32> to vector<1x1x16xf32>
    tpu.vector_store %arg4[%c0_24, %c6, %c3_25], %38 {strides = array<i32>} : memref<2x22x22xf32, #tpu.memory_space<vmem>>, vector<1x1x16xf32>,
    %39 = vector.extract_strided_slice %6 {offsets = [0, 48], sizes = [1, 16], strides = [1, 1]} : vector<1x256xf32> to vector<1x16xf32>
    %c1_26 = arith.constant 1 : index
    %c6_27 = arith.constant 6 : index
    %c3_28 = arith.constant 3 : index
    %40 = vector.load %arg4[%c1_26, %c6_27, %c3_28] : memref<2x22x22xf32, #tpu.memory_space<vmem>>, vector<1x1x16xf32>
    %41 = vector.shape_cast %40 : vector<1x1x16xf32> to vector<1x16xf32>
    %42 = vector.shape_cast %39 : vector<1x16xf32> to vector<1x1x16xf32>
    tpu.vector_store %arg4[%c1_26, %c6_27, %c3_28], %42 {strides = array<i32>} : memref<2x22x22xf32, #tpu.memory_space<vmem>>, vector<1x1x16xf32>,
    %43 = vector.extract_strided_slice %8 {offsets = [0, 64], sizes = [1, 16], strides = [1, 1]} : vector<1x256xf32> to vector<1x16xf32>
    %c0_29 = arith.constant 0 : index
    %c7 = arith.constant 7 : index
    %c3_30 = arith.constant 3 : index
    %44 = vector.load %arg4[%c0_29, %c7, %c3_30] : memref<2x22x22xf32, #tpu.memory_space<vmem>>, vector<1x1x16xf32>
    %45 = vector.shape_cast %44 : vector<1x1x16xf32> to vector<1x16xf32>
    %46 = vector.shape_cast %43 : vector<1x16xf32> to vector<1x1x16xf32>
    tpu.vector_store %arg4[%c0_29, %c7, %c3_30], %46 {strides = array<i32>} : memref<2x22x22xf32, #tpu.memory_space<vmem>>, vector<1x1x16xf32>,
    %47 = vector.extract_strided_slice %6 {offsets = [0, 64], sizes = [1, 16], strides = [1, 1]} : vector<1x256xf32> to vector<1x16xf32>
    %c1_31 = arith.constant 1 : index
    %c7_32 = arith.constant 7 : index
    %c3_33 = arith.constant 3 : index
    %48 = vector.load %arg4[%c1_31, %c7_32, %c3_33] : memref<2x22x22xf32, #tpu.memory_space<vmem>>, vector<1x1x16xf32>
    %49 = vector.shape_cast %48 : vector<1x1x16xf32> to vector<1x16xf32>
    %50 = vector.shape_cast %47 : vector<1x16xf32> to vector<1x1x16xf32>
    tpu.vector_store %arg4[%c1_31, %c7_32, %c3_33], %50 {strides = array<i32>} : memref<2x22x22xf32, #tpu.memory_space<vmem>>, vector<1x1x16xf32>,
    %51 = vector.extract_strided_slice %8 {offsets = [0, 80], sizes = [1, 16], strides = [1, 1]} : vector<1x256xf32> to vector<1x16xf32>
    %c0_34 = arith.constant 0 : index
    %c8 = arith.constant 8 : index
    %c3_35 = arith.constant 3 : index
    %52 = vector.load %arg4[%c0_34, %c8, %c3_35] : memref<2x22x22xf32, #tpu.memory_space<vmem>>, vector<1x1x16xf32>
    %53 = vector.shape_cast %52 : vector<1x1x16xf32> to vector<1x16xf32>
    %54 = vector.shape_cast %51 : vector<1x16xf32> to vector<1x1x16xf32>
    tpu.vector_store %arg4[%c0_34, %c8, %c3_35], %54 {strides = array<i32>} : memref<2x22x22xf32, #tpu.memory_space<vmem>>, vector<1x1x16xf32>,
    %55 = vector.extract_strided_slice %6 {offsets = [0, 80], sizes = [1, 16], strides = [1, 1]} : vector<1x256xf32> to vector<1x16xf32>
    %c1_36 = arith.constant 1 : index
    %c8_37 = arith.constant 8 : index
    %c3_38 = arith.constant 3 : index
    %56 = vector.load %arg4[%c1_36, %c8_37, %c3_38] : memref<2x22x22xf32, #tpu.memory_space<vmem>>, vector<1x1x16xf32>
    %57 = vector.shape_cast %56 : vector<1x1x16xf32> to vector<1x16xf32>
    %58 = vector.shape_cast %55 : vector<1x16xf32> to vector<1x1x16xf32>
    tpu.vector_store %arg4[%c1_36, %c8_37, %c3_38], %58 {strides = array<i32>} : memref<2x22x22xf32, #tpu.memory_space<vmem>>, vector<1x1x16xf32>,
    %59 = vector.extract_strided_slice %8 {offsets = [0, 96], sizes = [1, 16], strides = [1, 1]} : vector<1x256xf32> to vector<1x16xf32>
    %c0_39 = arith.constant 0 : index
    %c9 = arith.constant 9 : index
    %c3_40 = arith.constant 3 : index
    %60 = vector.load %arg4[%c0_39, %c9, %c3_40] : memref<2x22x22xf32, #tpu.memory_space<vmem>>, vector<1x1x16xf32>
    %61 = vector.shape_cast %60 : vector<1x1x16xf32> to vector<1x16xf32>
    %62 = vector.shape_cast %59 : vector<1x16xf32> to vector<1x1x16xf32>
    tpu.vector_store %arg4[%c0_39, %c9, %c3_40], %62 {strides = array<i32>} : memref<2x22x22xf32, #tpu.memory_space<vmem>>, vector<1x1x16xf32>,
    %63 = vector.extract_strided_slice %6 {offsets = [0, 96], sizes = [1, 16], strides = [1, 1]} : vector<1x256xf32> to vector<1x16xf32>
    %c1_41 = arith.constant 1 : index
    %c9_42 = arith.constant 9 : index
    %c3_43 = arith.constant 3 : index
    %64 = vector.load %arg4[%c1_41, %c9_42, %c3_43] : memref<2x22x22xf32, #tpu.memory_space<vmem>>, vector<1x1x16xf32>
    %65 = vector.shape_cast %64 : vector<1x1x16xf32> to vector<1x16xf32>
    %66 = vector.shape_cast %63 : vector<1x16xf32> to vector<1x1x16xf32>
    tpu.vector_store %arg4[%c1_41, %c9_42, %c3_43], %66 {strides = array<i32>} : memref<2x22x22xf32, #tpu.memory_space<vmem>>, vector<1x1x16xf32>,
    %67 = vector.extract_strided_slice %8 {offsets = [0, 112], sizes = [1, 16], strides = [1, 1]} : vector<1x256xf32> to vector<1x16xf32>
    %c0_44 = arith.constant 0 : index
    %c10 = arith.constant 10 : index
    %c3_45 = arith.constant 3 : index
    %68 = vector.load %arg4[%c0_44, %c10, %c3_45] : memref<2x22x22xf32, #tpu.memory_space<vmem>>, vector<1x1x16xf32>
    %69 = vector.shape_cast %68 : vector<1x1x16xf32> to vector<1x16xf32>
    %70 = vector.shape_cast %67 : vector<1x16xf32> to vector<1x1x16xf32>
    tpu.vector_store %arg4[%c0_44, %c10, %c3_45], %70 {strides = array<i32>} : memref<2x22x22xf32, #tpu.memory_space<vmem>>, vector<1x1x16xf32>,
    %71 = vector.extract_strided_slice %6 {offsets = [0, 112], sizes = [1, 16], strides = [1, 1]} : vector<1x256xf32> to vector<1x16xf32>
    %c1_46 = arith.constant 1 : index
    %c10_47 = arith.constant 10 : index
    %c3_48 = arith.constant 3 : index
    %72 = vector.load %arg4[%c1_46, %c10_47, %c3_48] : memref<2x22x22xf32, #tpu.memory_space<vmem>>, vector<1x1x16xf32>
    %73 = vector.shape_cast %72 : vector<1x1x16xf32> to vector<1x16xf32>
    %74 = vector.shape_cast %71 : vector<1x16xf32> to vector<1x1x16xf32>
    tpu.vector_store %arg4[%c1_46, %c10_47, %c3_48], %74 {strides = array<i32>} : memref<2x22x22xf32, #tpu.memory_space<vmem>>, vector<1x1x16xf32>,
    %75 = vector.extract_strided_slice %8 {offsets = [0, 128], sizes = [1, 16], strides = [1, 1]} : vector<1x256xf32> to vector<1x16xf32>
    %c0_49 = arith.constant 0 : index
    %c11 = arith.constant 11 : index
    %c3_50 = arith.constant 3 : index
    %76 = vector.load %arg4[%c0_49, %c11, %c3_50] : memref<2x22x22xf32, #tpu.memory_space<vmem>>, vector<1x1x16xf32>
    %77 = vector.shape_cast %76 : vector<1x1x16xf32> to vector<1x16xf32>
    %78 = vector.shape_cast %75 : vector<1x16xf32> to vector<1x1x16xf32>
    tpu.vector_store %arg4[%c0_49, %c11, %c3_50], %78 {strides = array<i32>} : memref<2x22x22xf32, #tpu.memory_space<vmem>>, vector<1x1x16xf32>,
    %79 = vector.extract_strided_slice %6 {offsets = [0, 128], sizes = [1, 16], strides = [1, 1]} : vector<1x256xf32> to vector<1x16xf32>
    %c1_51 = arith.constant 1 : index
    %c11_52 = arith.constant 11 : index
    %c3_53 = arith.constant 3 : index
    %80 = vector.load %arg4[%c1_51, %c11_52, %c3_53] : memref<2x22x22xf32, #tpu.memory_space<vmem>>, vector<1x1x16xf32>
    %81 = vector.shape_cast %80 : vector<1x1x16xf32> to vector<1x16xf32>
    %82 = vector.shape_cast %79 : vector<1x16xf32> to vector<1x1x16xf32>
    tpu.vector_store %arg4[%c1_51, %c11_52, %c3_53], %82 {strides = array<i32>} : memref<2x22x22xf32, #tpu.memory_space<vmem>>, vector<1x1x16xf32>,
    %83 = vector.extract_strided_slice %8 {offsets = [0, 144], sizes = [1, 16], strides = [1, 1]} : vector<1x256xf32> to vector<1x16xf32>
    %c0_54 = arith.constant 0 : index
    %c12 = arith.constant 12 : index
    %c3_55 = arith.constant 3 : index
    %84 = vector.load %arg4[%c0_54, %c12, %c3_55] : memref<2x22x22xf32, #tpu.memory_space<vmem>>, vector<1x1x16xf32>
    %85 = vector.shape_cast %84 : vector<1x1x16xf32> to vector<1x16xf32>
    %86 = vector.shape_cast %83 : vector<1x16xf32> to vector<1x1x16xf32>
    tpu.vector_store %arg4[%c0_54, %c12, %c3_55], %86 {strides = array<i32>} : memref<2x22x22xf32, #tpu.memory_space<vmem>>, vector<1x1x16xf32>,
    %87 = vector.extract_strided_slice %6 {offsets = [0, 144], sizes = [1, 16], strides = [1, 1]} : vector<1x256xf32> to vector<1x16xf32>
    %c1_56 = arith.constant 1 : index
    %c12_57 = arith.constant 12 : index
    %c3_58 = arith.constant 3 : index
    %88 = vector.load %arg4[%c1_56, %c12_57, %c3_58] : memref<2x22x22xf32, #tpu.memory_space<vmem>>, vector<1x1x16xf32>
    %89 = vector.shape_cast %88 : vector<1x1x16xf32> to vector<1x16xf32>
    %90 = vector.shape_cast %87 : vector<1x16xf32> to vector<1x1x16xf32>
    tpu.vector_store %arg4[%c1_56, %c12_57, %c3_58], %90 {strides = array<i32>} : memref<2x22x22xf32, #tpu.memory_space<vmem>>, vector<1x1x16xf32>,
    %91 = vector.extract_strided_slice %8 {offsets = [0, 160], sizes = [1, 16], strides = [1, 1]} : vector<1x256xf32> to vector<1x16xf32>
    %c0_59 = arith.constant 0 : index
    %c13 = arith.constant 13 : index
    %c3_60 = arith.constant 3 : index
    %92 = vector.load %arg4[%c0_59, %c13, %c3_60] : memref<2x22x22xf32, #tpu.memory_space<vmem>>, vector<1x1x16xf32>
    %93 = vector.shape_cast %92 : vector<1x1x16xf32> to vector<1x16xf32>
    %94 = vector.shape_cast %91 : vector<1x16xf32> to vector<1x1x16xf32>
    tpu.vector_store %arg4[%c0_59, %c13, %c3_60], %94 {strides = array<i32>} : memref<2x22x22xf32, #tpu.memory_space<vmem>>, vector<1x1x16xf32>,
    %95 = vector.extract_strided_slice %6 {offsets = [0, 160], sizes = [1, 16], strides = [1, 1]} : vector<1x256xf32> to vector<1x16xf32>
    %c1_61 = arith.constant 1 : index
    %c13_62 = arith.constant 13 : index
    %c3_63 = arith.constant 3 : index
    %96 = vector.load %arg4[%c1_61, %c13_62, %c3_63] : memref<2x22x22xf32, #tpu.memory_space<vmem>>, vector<1x1x16xf32>
    %97 = vector.shape_cast %96 : vector<1x1x16xf32> to vector<1x16xf32>
    %98 = vector.shape_cast %95 : vector<1x16xf32> to vector<1x1x16xf32>
    tpu.vector_store %arg4[%c1_61, %c13_62, %c3_63], %98 {strides = array<i32>} : memref<2x22x22xf32, #tpu.memory_space<vmem>>, vector<1x1x16xf32>,
    %99 = vector.extract_strided_slice %8 {offsets = [0, 176], sizes = [1, 16], strides = [1, 1]} : vector<1x256xf32> to vector<1x16xf32>
    %c0_64 = arith.constant 0 : index
    %c14 = arith.constant 14 : index
    %c3_65 = arith.constant 3 : index
    %100 = vector.load %arg4[%c0_64, %c14, %c3_65] : memref<2x22x22xf32, #tpu.memory_space<vmem>>, vector<1x1x16xf32>
    %101 = vector.shape_cast %100 : vector<1x1x16xf32> to vector<1x16xf32>
    %102 = vector.shape_cast %99 : vector<1x16xf32> to vector<1x1x16xf32>
    tpu.vector_store %arg4[%c0_64, %c14, %c3_65], %102 {strides = array<i32>} : memref<2x22x22xf32, #tpu.memory_space<vmem>>, vector<1x1x16xf32>,
    %103 = vector.extract_strided_slice %6 {offsets = [0, 176], sizes = [1, 16], strides = [1, 1]} : vector<1x256xf32> to vector<1x16xf32>
    %c1_66 = arith.constant 1 : index
    %c14_67 = arith.constant 14 : index
    %c3_68 = arith.constant 3 : index
    %104 = vector.load %arg4[%c1_66, %c14_67, %c3_68] : memref<2x22x22xf32, #tpu.memory_space<vmem>>, vector<1x1x16xf32>
    %105 = vector.shape_cast %104 : vector<1x1x16xf32> to vector<1x16xf32>
    %106 = vector.shape_cast %103 : vector<1x16xf32> to vector<1x1x16xf32>
    tpu.vector_store %arg4[%c1_66, %c14_67, %c3_68], %106 {strides = array<i32>} : memref<2x22x22xf32, #tpu.memory_space<vmem>>, vector<1x1x16xf32>,
    %107 = vector.extract_strided_slice %8 {offsets = [0, 192], sizes = [1, 16], strides = [1, 1]} : vector<1x256xf32> to vector<1x16xf32>
    %c0_69 = arith.constant 0 : index
    %c15 = arith.constant 15 : index
    %c3_70 = arith.constant 3 : index
    %108 = vector.load %arg4[%c0_69, %c15, %c3_70] : memref<2x22x22xf32, #tpu.memory_space<vmem>>, vector<1x1x16xf32>
    %109 = vector.shape_cast %108 : vector<1x1x16xf32> to vector<1x16xf32>
    %110 = vector.shape_cast %107 : vector<1x16xf32> to vector<1x1x16xf32>
    tpu.vector_store %arg4[%c0_69, %c15, %c3_70], %110 {strides = array<i32>} : memref<2x22x22xf32, #tpu.memory_space<vmem>>, vector<1x1x16xf32>,
    %111 = vector.extract_strided_slice %6 {offsets = [0, 192], sizes = [1, 16], strides = [1, 1]} : vector<1x256xf32> to vector<1x16xf32>
    %c1_71 = arith.constant 1 : index
    %c15_72 = arith.constant 15 : index
    %c3_73 = arith.constant 3 : index
    %112 = vector.load %arg4[%c1_71, %c15_72, %c3_73] : memref<2x22x22xf32, #tpu.memory_space<vmem>>, vector<1x1x16xf32>
    %113 = vector.shape_cast %112 : vector<1x1x16xf32> to vector<1x16xf32>
    %114 = vector.shape_cast %111 : vector<1x16xf32> to vector<1x1x16xf32>
    tpu.vector_store %arg4[%c1_71, %c15_72, %c3_73], %114 {strides = array<i32>} : memref<2x22x22xf32, #tpu.memory_space<vmem>>, vector<1x1x16xf32>,
    %115 = vector.extract_strided_slice %8 {offsets = [0, 208], sizes = [1, 16], strides = [1, 1]} : vector<1x256xf32> to vector<1x16xf32>
    %c0_74 = arith.constant 0 : index
    %c16 = arith.constant 16 : index
    %c3_75 = arith.constant 3 : index
    %116 = vector.load %arg4[%c0_74, %c16, %c3_75] : memref<2x22x22xf32, #tpu.memory_space<vmem>>, vector<1x1x16xf32>
    %117 = vector.shape_cast %116 : vector<1x1x16xf32> to vector<1x16xf32>
    %118 = vector.shape_cast %115 : vector<1x16xf32> to vector<1x1x16xf32>
    tpu.vector_store %arg4[%c0_74, %c16, %c3_75], %118 {strides = array<i32>} : memref<2x22x22xf32, #tpu.memory_space<vmem>>, vector<1x1x16xf32>,
    %119 = vector.extract_strided_slice %6 {offsets = [0, 208], sizes = [1, 16], strides = [1, 1]} : vector<1x256xf32> to vector<1x16xf32>
    %c1_76 = arith.constant 1 : index
    %c16_77 = arith.constant 16 : index
    %c3_78 = arith.constant 3 : index
    %120 = vector.load %arg4[%c1_76, %c16_77, %c3_78] : memref<2x22x22xf32, #tpu.memory_space<vmem>>, vector<1x1x16xf32>
    %121 = vector.shape_cast %120 : vector<1x1x16xf32> to vector<1x16xf32>
    %122 = vector.shape_cast %119 : vector<1x16xf32> to vector<1x1x16xf32>
    tpu.vector_store %arg4[%c1_76, %c16_77, %c3_78], %122 {strides = array<i32>} : memref<2x22x22xf32, #tpu.memory_space<vmem>>, vector<1x1x16xf32>,
    %123 = vector.extract_strided_slice %8 {offsets = [0, 224], sizes = [1, 16], strides = [1, 1]} : vector<1x256xf32> to vector<1x16xf32>
    %c0_79 = arith.constant 0 : index
    %c17 = arith.constant 17 : index
    %c3_80 = arith.constant 3 : index
    %124 = vector.load %arg4[%c0_79, %c17, %c3_80] : memref<2x22x22xf32, #tpu.memory_space<vmem>>, vector<1x1x16xf32>
    %125 = vector.shape_cast %124 : vector<1x1x16xf32> to vector<1x16xf32>
    %126 = vector.shape_cast %123 : vector<1x16xf32> to vector<1x1x16xf32>
    tpu.vector_store %arg4[%c0_79, %c17, %c3_80], %126 {strides = array<i32>} : memref<2x22x22xf32, #tpu.memory_space<vmem>>, vector<1x1x16xf32>,
    %127 = vector.extract_strided_slice %6 {offsets = [0, 224], sizes = [1, 16], strides = [1, 1]} : vector<1x256xf32> to vector<1x16xf32>
    %c1_81 = arith.constant 1 : index
    %c17_82 = arith.constant 17 : index
    %c3_83 = arith.constant 3 : index
    %128 = vector.load %arg4[%c1_81, %c17_82, %c3_83] : memref<2x22x22xf32, #tpu.memory_space<vmem>>, vector<1x1x16xf32>
    %129 = vector.shape_cast %128 : vector<1x1x16xf32> to vector<1x16xf32>
    %130 = vector.shape_cast %127 : vector<1x16xf32> to vector<1x1x16xf32>
    tpu.vector_store %arg4[%c1_81, %c17_82, %c3_83], %130 {strides = array<i32>} : memref<2x22x22xf32, #tpu.memory_space<vmem>>, vector<1x1x16xf32>,
    %131 = vector.extract_strided_slice %8 {offsets = [0, 240], sizes = [1, 16], strides = [1, 1]} : vector<1x256xf32> to vector<1x16xf32>
    %c0_84 = arith.constant 0 : index
    %c18 = arith.constant 18 : index
    %c3_85 = arith.constant 3 : index
    %132 = vector.load %arg4[%c0_84, %c18, %c3_85] : memref<2x22x22xf32, #tpu.memory_space<vmem>>, vector<1x1x16xf32>
    %133 = vector.shape_cast %132 : vector<1x1x16xf32> to vector<1x16xf32>
    %134 = vector.shape_cast %131 : vector<1x16xf32> to vector<1x1x16xf32>
    tpu.vector_store %arg4[%c0_84, %c18, %c3_85], %134 {strides = array<i32>} : memref<2x22x22xf32, #tpu.memory_space<vmem>>, vector<1x1x16xf32>,
    %135 = vector.extract_strided_slice %6 {offsets = [0, 240], sizes = [1, 16], strides = [1, 1]} : vector<1x256xf32> to vector<1x16xf32>
    %c1_86 = arith.constant 1 : index
    %c18_87 = arith.constant 18 : index
    %c3_88 = arith.constant 3 : index
    %136 = vector.load %arg4[%c1_86, %c18_87, %c3_88] : memref<2x22x22xf32, #tpu.memory_space<vmem>>, vector<1x1x16xf32>
    %137 = vector.shape_cast %136 : vector<1x1x16xf32> to vector<1x16xf32>
    %138 = vector.shape_cast %135 : vector<1x16xf32> to vector<1x1x16xf32>
    tpu.vector_store %arg4[%c1_86, %c18_87, %c3_88], %138 {strides = array<i32>} : memref<2x22x22xf32, #tpu.memory_space<vmem>>, vector<1x1x16xf32>,
    %cst_89 = arith.constant 0.000000e+00 : f32
    %139 = vector.broadcast %cst_89 : f32 to vector<1x16x16xf32>
    %cst_90 = arith.constant 0.000000e+00 : f32
    %140 = vector.broadcast %cst_90 : f32 to vector<1x16x16xf32>
    %cst_91 = arith.constant 0.000000e+00 : f32
    %141 = vector.broadcast %cst_91 : f32 to vector<1x16x16xf32>
    %cst_92 = arith.constant 0.000000e+00 : f32
    %142 = vector.broadcast %cst_92 : f32 to vector<1x16x16xf32>
    %c0_93 = arith.constant 0 : index
    %c0_94 = arith.constant 0 : index
    %c0_95 = arith.constant 0 : index
    %143 = vector.load %arg4[%c0_93, %c0_94, %c0_95] : memref<2x22x22xf32, #tpu.memory_space<vmem>>, vector<1x22x16xf32>
    %c0_96 = arith.constant 0 : index
    %144 = memref.load %arg2[%c0_96] : memref<98xf32, #tpu.memory_space<smem>>
    %145 = vector.extract_strided_slice %143 {offsets = [0, 0, 0], sizes = [1, 16, 16], strides = [1, 1, 1]} : vector<1x22x16xf32> to vector<1x16x16xf32>
    %146 = vector.broadcast %144 : f32 to vector<1x16x16xf32>
    %147 = arith.mulf %146, %145 : vector<1x16x16xf32>
    %148 = arith.addf %139, %147 : vector<1x16x16xf32>
    %c7_97 = arith.constant 7 : index
    %149 = memref.load %arg2[%c7_97] : memref<98xf32, #tpu.memory_space<smem>>
    %150 = vector.extract_strided_slice %143 {offsets = [0, 1, 0], sizes = [1, 16, 16], strides = [1, 1, 1]} : vector<1x22x16xf32> to vector<1x16x16xf32>
    %151 = vector.broadcast %149 : f32 to vector<1x16x16xf32>
    %152 = arith.mulf %151, %150 : vector<1x16x16xf32>
    %153 = arith.addf %140, %152 : vector<1x16x16xf32>
    %c14_98 = arith.constant 14 : index
    %154 = memref.load %arg2[%c14_98] : memref<98xf32, #tpu.memory_space<smem>>
    %155 = vector.extract_strided_slice %143 {offsets = [0, 2, 0], sizes = [1, 16, 16], strides = [1, 1, 1]} : vector<1x22x16xf32> to vector<1x16x16xf32>
    %156 = vector.broadcast %154 : f32 to vector<1x16x16xf32>
    %157 = arith.mulf %156, %155 : vector<1x16x16xf32>
    %158 = arith.addf %141, %157 : vector<1x16x16xf32>
    %c21 = arith.constant 21 : index
    %159 = memref.load %arg2[%c21] : memref<98xf32, #tpu.memory_space<smem>>
    %160 = vector.extract_strided_slice %143 {offsets = [0, 3, 0], sizes = [1, 16, 16], strides = [1, 1, 1]} : vector<1x22x16xf32> to vector<1x16x16xf32>
    %161 = vector.broadcast %159 : f32 to vector<1x16x16xf32>
    %162 = arith.mulf %161, %160 : vector<1x16x16xf32>
    %163 = arith.addf %142, %162 : vector<1x16x16xf32>
    %c28 = arith.constant 28 : index
    %164 = memref.load %arg2[%c28] : memref<98xf32, #tpu.memory_space<smem>>
    %165 = vector.extract_strided_slice %143 {offsets = [0, 4, 0], sizes = [1, 16, 16], strides = [1, 1, 1]} : vector<1x22x16xf32> to vector<1x16x16xf32>
    %166 = vector.broadcast %164 : f32 to vector<1x16x16xf32>
    %167 = arith.mulf %166, %165 : vector<1x16x16xf32>
    %168 = arith.addf %148, %167 : vector<1x16x16xf32>
    %c35 = arith.constant 35 : index
    %169 = memref.load %arg2[%c35] : memref<98xf32, #tpu.memory_space<smem>>
    %170 = vector.extract_strided_slice %143 {offsets = [0, 5, 0], sizes = [1, 16, 16], strides = [1, 1, 1]} : vector<1x22x16xf32> to vector<1x16x16xf32>
    %171 = vector.broadcast %169 : f32 to vector<1x16x16xf32>
    %172 = arith.mulf %171, %170 : vector<1x16x16xf32>
    %173 = arith.addf %153, %172 : vector<1x16x16xf32>
    %c42 = arith.constant 42 : index
    %174 = memref.load %arg2[%c42] : memref<98xf32, #tpu.memory_space<smem>>
    %175 = vector.extract_strided_slice %143 {offsets = [0, 6, 0], sizes = [1, 16, 16], strides = [1, 1, 1]} : vector<1x22x16xf32> to vector<1x16x16xf32>
    %176 = vector.broadcast %174 : f32 to vector<1x16x16xf32>
    %177 = arith.mulf %176, %175 : vector<1x16x16xf32>
    %178 = arith.addf %158, %177 : vector<1x16x16xf32>
    %c0_99 = arith.constant 0 : index
    %c0_100 = arith.constant 0 : index
    %c1_101 = arith.constant 1 : index
    %179 = vector.load %arg4[%c0_99, %c0_100, %c1_101] : memref<2x22x22xf32, #tpu.memory_space<vmem>>, vector<1x22x16xf32>
    %c1_102 = arith.constant 1 : index
    %180 = memref.load %arg2[%c1_102] : memref<98xf32, #tpu.memory_space<smem>>
    %181 = vector.extract_strided_slice %179 {offsets = [0, 0, 0], sizes = [1, 16, 16], strides = [1, 1, 1]} : vector<1x22x16xf32> to vector<1x16x16xf32>
    %182 = vector.broadcast %180 : f32 to vector<1x16x16xf32>
    %183 = arith.mulf %182, %181 : vector<1x16x16xf32>
    %184 = arith.addf %163, %183 : vector<1x16x16xf32>
    %c8_103 = arith.constant 8 : index
    %185 = memref.load %arg2[%c8_103] : memref<98xf32, #tpu.memory_space<smem>>
    %186 = vector.extract_strided_slice %179 {offsets = [0, 1, 0], sizes = [1, 16, 16], strides = [1, 1, 1]} : vector<1x22x16xf32> to vector<1x16x16xf32>
    %187 = vector.broadcast %185 : f32 to vector<1x16x16xf32>
    %188 = arith.mulf %187, %186 : vector<1x16x16xf32>
    %189 = arith.addf %168, %188 : vector<1x16x16xf32>
    %c15_104 = arith.constant 15 : index
    %190 = memref.load %arg2[%c15_104] : memref<98xf32, #tpu.memory_space<smem>>
    %191 = vector.extract_strided_slice %179 {offsets = [0, 2, 0], sizes = [1, 16, 16], strides = [1, 1, 1]} : vector<1x22x16xf32> to vector<1x16x16xf32>
    %192 = vector.broadcast %190 : f32 to vector<1x16x16xf32>
    %193 = arith.mulf %192, %191 : vector<1x16x16xf32>
    %194 = arith.addf %173, %193 : vector<1x16x16xf32>
    %c22 = arith.constant 22 : index
    %195 = memref.load %arg2[%c22] : memref<98xf32, #tpu.memory_space<smem>>
    %196 = vector.extract_strided_slice %179 {offsets = [0, 3, 0], sizes = [1, 16, 16], strides = [1, 1, 1]} : vector<1x22x16xf32> to vector<1x16x16xf32>
    %197 = vector.broadcast %195 : f32 to vector<1x16x16xf32>
    %198 = arith.mulf %197, %196 : vector<1x16x16xf32>
    %199 = arith.addf %178, %198 : vector<1x16x16xf32>
    %c29 = arith.constant 29 : index
    %200 = memref.load %arg2[%c29] : memref<98xf32, #tpu.memory_space<smem>>
    %201 = vector.extract_strided_slice %179 {offsets = [0, 4, 0], sizes = [1, 16, 16], strides = [1, 1, 1]} : vector<1x22x16xf32> to vector<1x16x16xf32>
    %202 = vector.broadcast %200 : f32 to vector<1x16x16xf32>
    %203 = arith.mulf %202, %201 : vector<1x16x16xf32>
    %204 = arith.addf %184, %203 : vector<1x16x16xf32>
    %c36 = arith.constant 36 : index
    %205 = memref.load %arg2[%c36] : memref<98xf32, #tpu.memory_space<smem>>
    %206 = vector.extract_strided_slice %179 {offsets = [0, 5, 0], sizes = [1, 16, 16], strides = [1, 1, 1]} : vector<1x22x16xf32> to vector<1x16x16xf32>
    %207 = vector.broadcast %205 : f32 to vector<1x16x16xf32>
    %208 = arith.mulf %207, %206 : vector<1x16x16xf32>
    %209 = arith.addf %189, %208 : vector<1x16x16xf32>
    %c43 = arith.constant 43 : index
    %210 = memref.load %arg2[%c43] : memref<98xf32, #tpu.memory_space<smem>>
    %211 = vector.extract_strided_slice %179 {offsets = [0, 6, 0], sizes = [1, 16, 16], strides = [1, 1, 1]} : vector<1x22x16xf32> to vector<1x16x16xf32>
    %212 = vector.broadcast %210 : f32 to vector<1x16x16xf32>
    %213 = arith.mulf %212, %211 : vector<1x16x16xf32>
    %214 = arith.addf %194, %213 : vector<1x16x16xf32>
    %c0_105 = arith.constant 0 : index
    %c0_106 = arith.constant 0 : index
    %c2 = arith.constant 2 : index
    %215 = vector.load %arg4[%c0_105, %c0_106, %c2] : memref<2x22x22xf32, #tpu.memory_space<vmem>>, vector<1x22x16xf32>
    %c2_107 = arith.constant 2 : index
    %216 = memref.load %arg2[%c2_107] : memref<98xf32, #tpu.memory_space<smem>>
    %217 = vector.extract_strided_slice %215 {offsets = [0, 0, 0], sizes = [1, 16, 16], strides = [1, 1, 1]} : vector<1x22x16xf32> to vector<1x16x16xf32>
    %218 = vector.broadcast %216 : f32 to vector<1x16x16xf32>
    %219 = arith.mulf %218, %217 : vector<1x16x16xf32>
    %220 = arith.addf %199, %219 : vector<1x16x16xf32>
    %c9_108 = arith.constant 9 : index
    %221 = memref.load %arg2[%c9_108] : memref<98xf32, #tpu.memory_space<smem>>
    %222 = vector.extract_strided_slice %215 {offsets = [0, 1, 0], sizes = [1, 16, 16], strides = [1, 1, 1]} : vector<1x22x16xf32> to vector<1x16x16xf32>
    %223 = vector.broadcast %221 : f32 to vector<1x16x16xf32>
    %224 = arith.mulf %223, %222 : vector<1x16x16xf32>
    %225 = arith.addf %204, %224 : vector<1x16x16xf32>
    %c16_109 = arith.constant 16 : index
    %226 = memref.load %arg2[%c16_109] : memref<98xf32, #tpu.memory_space<smem>>
    %227 = vector.extract_strided_slice %215 {offsets = [0, 2, 0], sizes = [1, 16, 16], strides = [1, 1, 1]} : vector<1x22x16xf32> to vector<1x16x16xf32>
    %228 = vector.broadcast %226 : f32 to vector<1x16x16xf32>
    %229 = arith.mulf %228, %227 : vector<1x16x16xf32>
    %230 = arith.addf %209, %229 : vector<1x16x16xf32>
    %c23 = arith.constant 23 : index
    %231 = memref.load %arg2[%c23] : memref<98xf32, #tpu.memory_space<smem>>
    %232 = vector.extract_strided_slice %215 {offsets = [0, 3, 0], sizes = [1, 16, 16], strides = [1, 1, 1]} : vector<1x22x16xf32> to vector<1x16x16xf32>
    %233 = vector.broadcast %231 : f32 to vector<1x16x16xf32>
    %234 = arith.mulf %233, %232 : vector<1x16x16xf32>
    %235 = arith.addf %214, %234 : vector<1x16x16xf32>
    %c30 = arith.constant 30 : index
    %236 = memref.load %arg2[%c30] : memref<98xf32, #tpu.memory_space<smem>>
    %237 = vector.extract_strided_slice %215 {offsets = [0, 4, 0], sizes = [1, 16, 16], strides = [1, 1, 1]} : vector<1x22x16xf32> to vector<1x16x16xf32>
    %238 = vector.broadcast %236 : f32 to vector<1x16x16xf32>
    %239 = arith.mulf %238, %237 : vector<1x16x16xf32>
    %240 = arith.addf %220, %239 : vector<1x16x16xf32>
    %c37 = arith.constant 37 : index
    %241 = memref.load %arg2[%c37] : memref<98xf32, #tpu.memory_space<smem>>
    %242 = vector.extract_strided_slice %215 {offsets = [0, 5, 0], sizes = [1, 16, 16], strides = [1, 1, 1]} : vector<1x22x16xf32> to vector<1x16x16xf32>
    %243 = vector.broadcast %241 : f32 to vector<1x16x16xf32>
    %244 = arith.mulf %243, %242 : vector<1x16x16xf32>
    %245 = arith.addf %225, %244 : vector<1x16x16xf32>
    %c44 = arith.constant 44 : index
    %246 = memref.load %arg2[%c44] : memref<98xf32, #tpu.memory_space<smem>>
    %247 = vector.extract_strided_slice %215 {offsets = [0, 6, 0], sizes = [1, 16, 16], strides = [1, 1, 1]} : vector<1x22x16xf32> to vector<1x16x16xf32>
    %248 = vector.broadcast %246 : f32 to vector<1x16x16xf32>
    %249 = arith.mulf %248, %247 : vector<1x16x16xf32>
    %250 = arith.addf %230, %249 : vector<1x16x16xf32>
    %c0_110 = arith.constant 0 : index
    %c0_111 = arith.constant 0 : index
    %c3_112 = arith.constant 3 : index
    %251 = vector.load %arg4[%c0_110, %c0_111, %c3_112] : memref<2x22x22xf32, #tpu.memory_space<vmem>>, vector<1x22x16xf32>
    %c3_113 = arith.constant 3 : index
    %252 = memref.load %arg2[%c3_113] : memref<98xf32, #tpu.memory_space<smem>>
    %253 = vector.extract_strided_slice %251 {offsets = [0, 0, 0], sizes = [1, 16, 16], strides = [1, 1, 1]} : vector<1x22x16xf32> to vector<1x16x16xf32>
    %254 = vector.broadcast %252 : f32 to vector<1x16x16xf32>
    %255 = arith.mulf %254, %253 : vector<1x16x16xf32>
    %256 = arith.addf %235, %255 : vector<1x16x16xf32>
    %c10_114 = arith.constant 10 : index
    %257 = memref.load %arg2[%c10_114] : memref<98xf32, #tpu.memory_space<smem>>
    %258 = vector.extract_strided_slice %251 {offsets = [0, 1, 0], sizes = [1, 16, 16], strides = [1, 1, 1]} : vector<1x22x16xf32> to vector<1x16x16xf32>
    %259 = vector.broadcast %257 : f32 to vector<1x16x16xf32>
    %260 = arith.mulf %259, %258 : vector<1x16x16xf32>
    %261 = arith.addf %240, %260 : vector<1x16x16xf32>
    %c17_115 = arith.constant 17 : index
    %262 = memref.load %arg2[%c17_115] : memref<98xf32, #tpu.memory_space<smem>>
    %263 = vector.extract_strided_slice %251 {offsets = [0, 2, 0], sizes = [1, 16, 16], strides = [1, 1, 1]} : vector<1x22x16xf32> to vector<1x16x16xf32>
    %264 = vector.broadcast %262 : f32 to vector<1x16x16xf32>
    %265 = arith.mulf %264, %263 : vector<1x16x16xf32>
    %266 = arith.addf %245, %265 : vector<1x16x16xf32>
    %c24 = arith.constant 24 : index
    %267 = memref.load %arg2[%c24] : memref<98xf32, #tpu.memory_space<smem>>
    %268 = vector.extract_strided_slice %251 {offsets = [0, 3, 0], sizes = [1, 16, 16], strides = [1, 1, 1]} : vector<1x22x16xf32> to vector<1x16x16xf32>
    %269 = vector.broadcast %267 : f32 to vector<1x16x16xf32>
    %270 = arith.mulf %269, %268 : vector<1x16x16xf32>
    %271 = arith.addf %250, %270 : vector<1x16x16xf32>
    %c31 = arith.constant 31 : index
    %272 = memref.load %arg2[%c31] : memref<98xf32, #tpu.memory_space<smem>>
    %273 = vector.extract_strided_slice %251 {offsets = [0, 4, 0], sizes = [1, 16, 16], strides = [1, 1, 1]} : vector<1x22x16xf32> to vector<1x16x16xf32>
    %274 = vector.broadcast %272 : f32 to vector<1x16x16xf32>
    %275 = arith.mulf %274, %273 : vector<1x16x16xf32>
    %276 = arith.addf %256, %275 : vector<1x16x16xf32>
    %c38 = arith.constant 38 : index
    %277 = memref.load %arg2[%c38] : memref<98xf32, #tpu.memory_space<smem>>
    %278 = vector.extract_strided_slice %251 {offsets = [0, 5, 0], sizes = [1, 16, 16], strides = [1, 1, 1]} : vector<1x22x16xf32> to vector<1x16x16xf32>
    %279 = vector.broadcast %277 : f32 to vector<1x16x16xf32>
    %280 = arith.mulf %279, %278 : vector<1x16x16xf32>
    %281 = arith.addf %261, %280 : vector<1x16x16xf32>
    %c45 = arith.constant 45 : index
    %282 = memref.load %arg2[%c45] : memref<98xf32, #tpu.memory_space<smem>>
    %283 = vector.extract_strided_slice %251 {offsets = [0, 6, 0], sizes = [1, 16, 16], strides = [1, 1, 1]} : vector<1x22x16xf32> to vector<1x16x16xf32>
    %284 = vector.broadcast %282 : f32 to vector<1x16x16xf32>
    %285 = arith.mulf %284, %283 : vector<1x16x16xf32>
    %286 = arith.addf %266, %285 : vector<1x16x16xf32>
    %c0_116 = arith.constant 0 : index
    %c0_117 = arith.constant 0 : index
    %c4_118 = arith.constant 4 : index
    %287 = vector.load %arg4[%c0_116, %c0_117, %c4_118] : memref<2x22x22xf32, #tpu.memory_space<vmem>>, vector<1x22x16xf32>
    %c4_119 = arith.constant 4 : index
    %288 = memref.load %arg2[%c4_119] : memref<98xf32, #tpu.memory_space<smem>>
    %289 = vector.extract_strided_slice %287 {offsets = [0, 0, 0], sizes = [1, 16, 16], strides = [1, 1, 1]} : vector<1x22x16xf32> to vector<1x16x16xf32>
    %290 = vector.broadcast %288 : f32 to vector<1x16x16xf32>
    %291 = arith.mulf %290, %289 : vector<1x16x16xf32>
    %292 = arith.addf %271, %291 : vector<1x16x16xf32>
    %c11_120 = arith.constant 11 : index
    %293 = memref.load %arg2[%c11_120] : memref<98xf32, #tpu.memory_space<smem>>
    %294 = vector.extract_strided_slice %287 {offsets = [0, 1, 0], sizes = [1, 16, 16], strides = [1, 1, 1]} : vector<1x22x16xf32> to vector<1x16x16xf32>
    %295 = vector.broadcast %293 : f32 to vector<1x16x16xf32>
    %296 = arith.mulf %295, %294 : vector<1x16x16xf32>
    %297 = arith.addf %276, %296 : vector<1x16x16xf32>
    %c18_121 = arith.constant 18 : index
    %298 = memref.load %arg2[%c18_121] : memref<98xf32, #tpu.memory_space<smem>>
    %299 = vector.extract_strided_slice %287 {offsets = [0, 2, 0], sizes = [1, 16, 16], strides = [1, 1, 1]} : vector<1x22x16xf32> to vector<1x16x16xf32>
    %300 = vector.broadcast %298 : f32 to vector<1x16x16xf32>
    %301 = arith.mulf %300, %299 : vector<1x16x16xf32>
    %302 = arith.addf %281, %301 : vector<1x16x16xf32>
    %c25 = arith.constant 25 : index
    %303 = memref.load %arg2[%c25] : memref<98xf32, #tpu.memory_space<smem>>
    %304 = vector.extract_strided_slice %287 {offsets = [0, 3, 0], sizes = [1, 16, 16], strides = [1, 1, 1]} : vector<1x22x16xf32> to vector<1x16x16xf32>
    %305 = vector.broadcast %303 : f32 to vector<1x16x16xf32>
    %306 = arith.mulf %305, %304 : vector<1x16x16xf32>
    %307 = arith.addf %286, %306 : vector<1x16x16xf32>
    %c32 = arith.constant 32 : index
    %308 = memref.load %arg2[%c32] : memref<98xf32, #tpu.memory_space<smem>>
    %309 = vector.extract_strided_slice %287 {offsets = [0, 4, 0], sizes = [1, 16, 16], strides = [1, 1, 1]} : vector<1x22x16xf32> to vector<1x16x16xf32>
    %310 = vector.broadcast %308 : f32 to vector<1x16x16xf32>
    %311 = arith.mulf %310, %309 : vector<1x16x16xf32>
    %312 = arith.addf %292, %311 : vector<1x16x16xf32>
    %c39 = arith.constant 39 : index
    %313 = memref.load %arg2[%c39] : memref<98xf32, #tpu.memory_space<smem>>
    %314 = vector.extract_strided_slice %287 {offsets = [0, 5, 0], sizes = [1, 16, 16], strides = [1, 1, 1]} : vector<1x22x16xf32> to vector<1x16x16xf32>
    %315 = vector.broadcast %313 : f32 to vector<1x16x16xf32>
    %316 = arith.mulf %315, %314 : vector<1x16x16xf32>
    %317 = arith.addf %297, %316 : vector<1x16x16xf32>
    %c46 = arith.constant 46 : index
    %318 = memref.load %arg2[%c46] : memref<98xf32, #tpu.memory_space<smem>>
    %319 = vector.extract_strided_slice %287 {offsets = [0, 6, 0], sizes = [1, 16, 16], strides = [1, 1, 1]} : vector<1x22x16xf32> to vector<1x16x16xf32>
    %320 = vector.broadcast %318 : f32 to vector<1x16x16xf32>
    %321 = arith.mulf %320, %319 : vector<1x16x16xf32>
    %322 = arith.addf %302, %321 : vector<1x16x16xf32>
    %c0_122 = arith.constant 0 : index
    %c0_123 = arith.constant 0 : index
    %c5_124 = arith.constant 5 : index
    %323 = vector.load %arg4[%c0_122, %c0_123, %c5_124] : memref<2x22x22xf32, #tpu.memory_space<vmem>>, vector<1x22x16xf32>
    %c5_125 = arith.constant 5 : index
    %324 = memref.load %arg2[%c5_125] : memref<98xf32, #tpu.memory_space<smem>>
    %325 = vector.extract_strided_slice %323 {offsets = [0, 0, 0], sizes = [1, 16, 16], strides = [1, 1, 1]} : vector<1x22x16xf32> to vector<1x16x16xf32>
    %326 = vector.broadcast %324 : f32 to vector<1x16x16xf32>
    %327 = arith.mulf %326, %325 : vector<1x16x16xf32>
    %328 = arith.addf %307, %327 : vector<1x16x16xf32>
    %c12_126 = arith.constant 12 : index
    %329 = memref.load %arg2[%c12_126] : memref<98xf32, #tpu.memory_space<smem>>
    %330 = vector.extract_strided_slice %323 {offsets = [0, 1, 0], sizes = [1, 16, 16], strides = [1, 1, 1]} : vector<1x22x16xf32> to vector<1x16x16xf32>
    %331 = vector.broadcast %329 : f32 to vector<1x16x16xf32>
    %332 = arith.mulf %331, %330 : vector<1x16x16xf32>
    %333 = arith.addf %312, %332 : vector<1x16x16xf32>
    %c19 = arith.constant 19 : index
    %334 = memref.load %arg2[%c19] : memref<98xf32, #tpu.memory_space<smem>>
    %335 = vector.extract_strided_slice %323 {offsets = [0, 2, 0], sizes = [1, 16, 16], strides = [1, 1, 1]} : vector<1x22x16xf32> to vector<1x16x16xf32>
    %336 = vector.broadcast %334 : f32 to vector<1x16x16xf32>
    %337 = arith.mulf %336, %335 : vector<1x16x16xf32>
    %338 = arith.addf %317, %337 : vector<1x16x16xf32>
    %c26 = arith.constant 26 : index
    %339 = memref.load %arg2[%c26] : memref<98xf32, #tpu.memory_space<smem>>
    %340 = vector.extract_strided_slice %323 {offsets = [0, 3, 0], sizes = [1, 16, 16], strides = [1, 1, 1]} : vector<1x22x16xf32> to vector<1x16x16xf32>
    %341 = vector.broadcast %339 : f32 to vector<1x16x16xf32>
    %342 = arith.mulf %341, %340 : vector<1x16x16xf32>
    %343 = arith.addf %322, %342 : vector<1x16x16xf32>
    %c33 = arith.constant 33 : index
    %344 = memref.load %arg2[%c33] : memref<98xf32, #tpu.memory_space<smem>>
    %345 = vector.extract_strided_slice %323 {offsets = [0, 4, 0], sizes = [1, 16, 16], strides = [1, 1, 1]} : vector<1x22x16xf32> to vector<1x16x16xf32>
    %346 = vector.broadcast %344 : f32 to vector<1x16x16xf32>
    %347 = arith.mulf %346, %345 : vector<1x16x16xf32>
    %348 = arith.addf %328, %347 : vector<1x16x16xf32>
    %c40 = arith.constant 40 : index
    %349 = memref.load %arg2[%c40] : memref<98xf32, #tpu.memory_space<smem>>
    %350 = vector.extract_strided_slice %323 {offsets = [0, 5, 0], sizes = [1, 16, 16], strides = [1, 1, 1]} : vector<1x22x16xf32> to vector<1x16x16xf32>
    %351 = vector.broadcast %349 : f32 to vector<1x16x16xf32>
    %352 = arith.mulf %351, %350 : vector<1x16x16xf32>
    %353 = arith.addf %333, %352 : vector<1x16x16xf32>
    %c47 = arith.constant 47 : index
    %354 = memref.load %arg2[%c47] : memref<98xf32, #tpu.memory_space<smem>>
    %355 = vector.extract_strided_slice %323 {offsets = [0, 6, 0], sizes = [1, 16, 16], strides = [1, 1, 1]} : vector<1x22x16xf32> to vector<1x16x16xf32>
    %356 = vector.broadcast %354 : f32 to vector<1x16x16xf32>
    %357 = arith.mulf %356, %355 : vector<1x16x16xf32>
    %358 = arith.addf %338, %357 : vector<1x16x16xf32>
    %c0_127 = arith.constant 0 : index
    %c0_128 = arith.constant 0 : index
    %c6_129 = arith.constant 6 : index
    %359 = vector.load %arg4[%c0_127, %c0_128, %c6_129] : memref<2x22x22xf32, #tpu.memory_space<vmem>>, vector<1x22x16xf32>
    %c6_130 = arith.constant 6 : index
    %360 = memref.load %arg2[%c6_130] : memref<98xf32, #tpu.memory_space<smem>>
    %361 = vector.extract_strided_slice %359 {offsets = [0, 0, 0], sizes = [1, 16, 16], strides = [1, 1, 1]} : vector<1x22x16xf32> to vector<1x16x16xf32>
    %362 = vector.broadcast %360 : f32 to vector<1x16x16xf32>
    %363 = arith.mulf %362, %361 : vector<1x16x16xf32>
    %364 = arith.addf %343, %363 : vector<1x16x16xf32>
    %c13_131 = arith.constant 13 : index
    %365 = memref.load %arg2[%c13_131] : memref<98xf32, #tpu.memory_space<smem>>
    %366 = vector.extract_strided_slice %359 {offsets = [0, 1, 0], sizes = [1, 16, 16], strides = [1, 1, 1]} : vector<1x22x16xf32> to vector<1x16x16xf32>
    %367 = vector.broadcast %365 : f32 to vector<1x16x16xf32>
    %368 = arith.mulf %367, %366 : vector<1x16x16xf32>
    %369 = arith.addf %348, %368 : vector<1x16x16xf32>
    %c20 = arith.constant 20 : index
    %370 = memref.load %arg2[%c20] : memref<98xf32, #tpu.memory_space<smem>>
    %371 = vector.extract_strided_slice %359 {offsets = [0, 2, 0], sizes = [1, 16, 16], strides = [1, 1, 1]} : vector<1x22x16xf32> to vector<1x16x16xf32>
    %372 = vector.broadcast %370 : f32 to vector<1x16x16xf32>
    %373 = arith.mulf %372, %371 : vector<1x16x16xf32>
    %374 = arith.addf %353, %373 : vector<1x16x16xf32>
    %c27 = arith.constant 27 : index
    %375 = memref.load %arg2[%c27] : memref<98xf32, #tpu.memory_space<smem>>
    %376 = vector.extract_strided_slice %359 {offsets = [0, 3, 0], sizes = [1, 16, 16], strides = [1, 1, 1]} : vector<1x22x16xf32> to vector<1x16x16xf32>
    %377 = vector.broadcast %375 : f32 to vector<1x16x16xf32>
    %378 = arith.mulf %377, %376 : vector<1x16x16xf32>
    %379 = arith.addf %358, %378 : vector<1x16x16xf32>
    %c34 = arith.constant 34 : index
    %380 = memref.load %arg2[%c34] : memref<98xf32, #tpu.memory_space<smem>>
    %381 = vector.extract_strided_slice %359 {offsets = [0, 4, 0], sizes = [1, 16, 16], strides = [1, 1, 1]} : vector<1x22x16xf32> to vector<1x16x16xf32>
    %382 = vector.broadcast %380 : f32 to vector<1x16x16xf32>
    %383 = arith.mulf %382, %381 : vector<1x16x16xf32>
    %384 = arith.addf %364, %383 : vector<1x16x16xf32>
    %c41 = arith.constant 41 : index
    %385 = memref.load %arg2[%c41] : memref<98xf32, #tpu.memory_space<smem>>
    %386 = vector.extract_strided_slice %359 {offsets = [0, 5, 0], sizes = [1, 16, 16], strides = [1, 1, 1]} : vector<1x22x16xf32> to vector<1x16x16xf32>
    %387 = vector.broadcast %385 : f32 to vector<1x16x16xf32>
    %388 = arith.mulf %387, %386 : vector<1x16x16xf32>
    %389 = arith.addf %369, %388 : vector<1x16x16xf32>
    %c48 = arith.constant 48 : index
    %390 = memref.load %arg2[%c48] : memref<98xf32, #tpu.memory_space<smem>>
    %391 = vector.extract_strided_slice %359 {offsets = [0, 6, 0], sizes = [1, 16, 16], strides = [1, 1, 1]} : vector<1x22x16xf32> to vector<1x16x16xf32>
    %392 = vector.broadcast %390 : f32 to vector<1x16x16xf32>
    %393 = arith.mulf %392, %391 : vector<1x16x16xf32>
    %394 = arith.addf %374, %393 : vector<1x16x16xf32>
    %c1_132 = arith.constant 1 : index
    %c0_133 = arith.constant 0 : index
    %c0_134 = arith.constant 0 : index
    %395 = vector.load %arg4[%c1_132, %c0_133, %c0_134] : memref<2x22x22xf32, #tpu.memory_space<vmem>>, vector<1x22x16xf32>
    %c49 = arith.constant 49 : index
    %396 = memref.load %arg2[%c49] : memref<98xf32, #tpu.memory_space<smem>>
    %397 = vector.extract_strided_slice %395 {offsets = [0, 0, 0], sizes = [1, 16, 16], strides = [1, 1, 1]} : vector<1x22x16xf32> to vector<1x16x16xf32>
    %398 = vector.broadcast %396 : f32 to vector<1x16x16xf32>
    %399 = arith.mulf %398, %397 : vector<1x16x16xf32>
    %400 = arith.addf %379, %399 : vector<1x16x16xf32>
    %c56 = arith.constant 56 : index
    %401 = memref.load %arg2[%c56] : memref<98xf32, #tpu.memory_space<smem>>
    %402 = vector.extract_strided_slice %395 {offsets = [0, 1, 0], sizes = [1, 16, 16], strides = [1, 1, 1]} : vector<1x22x16xf32> to vector<1x16x16xf32>
    %403 = vector.broadcast %401 : f32 to vector<1x16x16xf32>
    %404 = arith.mulf %403, %402 : vector<1x16x16xf32>
    %405 = arith.addf %384, %404 : vector<1x16x16xf32>
    %c63 = arith.constant 63 : index
    %406 = memref.load %arg2[%c63] : memref<98xf32, #tpu.memory_space<smem>>
    %407 = vector.extract_strided_slice %395 {offsets = [0, 2, 0], sizes = [1, 16, 16], strides = [1, 1, 1]} : vector<1x22x16xf32> to vector<1x16x16xf32>
    %408 = vector.broadcast %406 : f32 to vector<1x16x16xf32>
    %409 = arith.mulf %408, %407 : vector<1x16x16xf32>
    %410 = arith.addf %389, %409 : vector<1x16x16xf32>
    %c70 = arith.constant 70 : index
    %411 = memref.load %arg2[%c70] : memref<98xf32, #tpu.memory_space<smem>>
    %412 = vector.extract_strided_slice %395 {offsets = [0, 3, 0], sizes = [1, 16, 16], strides = [1, 1, 1]} : vector<1x22x16xf32> to vector<1x16x16xf32>
    %413 = vector.broadcast %411 : f32 to vector<1x16x16xf32>
    %414 = arith.mulf %413, %412 : vector<1x16x16xf32>
    %415 = arith.addf %394, %414 : vector<1x16x16xf32>
    %c77 = arith.constant 77 : index
    %416 = memref.load %arg2[%c77] : memref<98xf32, #tpu.memory_space<smem>>
    %417 = vector.extract_strided_slice %395 {offsets = [0, 4, 0], sizes = [1, 16, 16], strides = [1, 1, 1]} : vector<1x22x16xf32> to vector<1x16x16xf32>
    %418 = vector.broadcast %416 : f32 to vector<1x16x16xf32>
    %419 = arith.mulf %418, %417 : vector<1x16x16xf32>
    %420 = arith.addf %400, %419 : vector<1x16x16xf32>
    %c84 = arith.constant 84 : index
    %421 = memref.load %arg2[%c84] : memref<98xf32, #tpu.memory_space<smem>>
    %422 = vector.extract_strided_slice %395 {offsets = [0, 5, 0], sizes = [1, 16, 16], strides = [1, 1, 1]} : vector<1x22x16xf32> to vector<1x16x16xf32>
    %423 = vector.broadcast %421 : f32 to vector<1x16x16xf32>
    %424 = arith.mulf %423, %422 : vector<1x16x16xf32>
    %425 = arith.addf %405, %424 : vector<1x16x16xf32>
    %c91 = arith.constant 91 : index
    %426 = memref.load %arg2[%c91] : memref<98xf32, #tpu.memory_space<smem>>
    %427 = vector.extract_strided_slice %395 {offsets = [0, 6, 0], sizes = [1, 16, 16], strides = [1, 1, 1]} : vector<1x22x16xf32> to vector<1x16x16xf32>
    %428 = vector.broadcast %426 : f32 to vector<1x16x16xf32>
    %429 = arith.mulf %428, %427 : vector<1x16x16xf32>
    %430 = arith.addf %410, %429 : vector<1x16x16xf32>
    %c1_135 = arith.constant 1 : index
    %c0_136 = arith.constant 0 : index
    %c1_137 = arith.constant 1 : index
    %431 = vector.load %arg4[%c1_135, %c0_136, %c1_137] : memref<2x22x22xf32, #tpu.memory_space<vmem>>, vector<1x22x16xf32>
    %c50 = arith.constant 50 : index
    %432 = memref.load %arg2[%c50] : memref<98xf32, #tpu.memory_space<smem>>
    %433 = vector.extract_strided_slice %431 {offsets = [0, 0, 0], sizes = [1, 16, 16], strides = [1, 1, 1]} : vector<1x22x16xf32> to vector<1x16x16xf32>
    %434 = vector.broadcast %432 : f32 to vector<1x16x16xf32>
    %435 = arith.mulf %434, %433 : vector<1x16x16xf32>
    %436 = arith.addf %415, %435 : vector<1x16x16xf32>
    %c57 = arith.constant 57 : index
    %437 = memref.load %arg2[%c57] : memref<98xf32, #tpu.memory_space<smem>>
    %438 = vector.extract_strided_slice %431 {offsets = [0, 1, 0], sizes = [1, 16, 16], strides = [1, 1, 1]} : vector<1x22x16xf32> to vector<1x16x16xf32>
    %439 = vector.broadcast %437 : f32 to vector<1x16x16xf32>
    %440 = arith.mulf %439, %438 : vector<1x16x16xf32>
    %441 = arith.addf %420, %440 : vector<1x16x16xf32>
    %c64 = arith.constant 64 : index
    %442 = memref.load %arg2[%c64] : memref<98xf32, #tpu.memory_space<smem>>
    %443 = vector.extract_strided_slice %431 {offsets = [0, 2, 0], sizes = [1, 16, 16], strides = [1, 1, 1]} : vector<1x22x16xf32> to vector<1x16x16xf32>
    %444 = vector.broadcast %442 : f32 to vector<1x16x16xf32>
    %445 = arith.mulf %444, %443 : vector<1x16x16xf32>
    %446 = arith.addf %425, %445 : vector<1x16x16xf32>
    %c71 = arith.constant 71 : index
    %447 = memref.load %arg2[%c71] : memref<98xf32, #tpu.memory_space<smem>>
    %448 = vector.extract_strided_slice %431 {offsets = [0, 3, 0], sizes = [1, 16, 16], strides = [1, 1, 1]} : vector<1x22x16xf32> to vector<1x16x16xf32>
    %449 = vector.broadcast %447 : f32 to vector<1x16x16xf32>
    %450 = arith.mulf %449, %448 : vector<1x16x16xf32>
    %451 = arith.addf %430, %450 : vector<1x16x16xf32>
    %c78 = arith.constant 78 : index
    %452 = memref.load %arg2[%c78] : memref<98xf32, #tpu.memory_space<smem>>
    %453 = vector.extract_strided_slice %431 {offsets = [0, 4, 0], sizes = [1, 16, 16], strides = [1, 1, 1]} : vector<1x22x16xf32> to vector<1x16x16xf32>
    %454 = vector.broadcast %452 : f32 to vector<1x16x16xf32>
    %455 = arith.mulf %454, %453 : vector<1x16x16xf32>
    %456 = arith.addf %436, %455 : vector<1x16x16xf32>
    %c85 = arith.constant 85 : index
    %457 = memref.load %arg2[%c85] : memref<98xf32, #tpu.memory_space<smem>>
    %458 = vector.extract_strided_slice %431 {offsets = [0, 5, 0], sizes = [1, 16, 16], strides = [1, 1, 1]} : vector<1x22x16xf32> to vector<1x16x16xf32>
    %459 = vector.broadcast %457 : f32 to vector<1x16x16xf32>
    %460 = arith.mulf %459, %458 : vector<1x16x16xf32>
    %461 = arith.addf %441, %460 : vector<1x16x16xf32>
    %c92 = arith.constant 92 : index
    %462 = memref.load %arg2[%c92] : memref<98xf32, #tpu.memory_space<smem>>
    %463 = vector.extract_strided_slice %431 {offsets = [0, 6, 0], sizes = [1, 16, 16], strides = [1, 1, 1]} : vector<1x22x16xf32> to vector<1x16x16xf32>
    %464 = vector.broadcast %462 : f32 to vector<1x16x16xf32>
    %465 = arith.mulf %464, %463 : vector<1x16x16xf32>
    %466 = arith.addf %446, %465 : vector<1x16x16xf32>
    %c1_138 = arith.constant 1 : index
    %c0_139 = arith.constant 0 : index
    %c2_140 = arith.constant 2 : index
    %467 = vector.load %arg4[%c1_138, %c0_139, %c2_140] : memref<2x22x22xf32, #tpu.memory_space<vmem>>, vector<1x22x16xf32>
    %c51 = arith.constant 51 : index
    %468 = memref.load %arg2[%c51] : memref<98xf32, #tpu.memory_space<smem>>
    %469 = vector.extract_strided_slice %467 {offsets = [0, 0, 0], sizes = [1, 16, 16], strides = [1, 1, 1]} : vector<1x22x16xf32> to vector<1x16x16xf32>
    %470 = vector.broadcast %468 : f32 to vector<1x16x16xf32>
    %471 = arith.mulf %470, %469 : vector<1x16x16xf32>
    %472 = arith.addf %451, %471 : vector<1x16x16xf32>
    %c58 = arith.constant 58 : index
    %473 = memref.load %arg2[%c58] : memref<98xf32, #tpu.memory_space<smem>>
    %474 = vector.extract_strided_slice %467 {offsets = [0, 1, 0], sizes = [1, 16, 16], strides = [1, 1, 1]} : vector<1x22x16xf32> to vector<1x16x16xf32>
    %475 = vector.broadcast %473 : f32 to vector<1x16x16xf32>
    %476 = arith.mulf %475, %474 : vector<1x16x16xf32>
    %477 = arith.addf %456, %476 : vector<1x16x16xf32>
    %c65 = arith.constant 65 : index
    %478 = memref.load %arg2[%c65] : memref<98xf32, #tpu.memory_space<smem>>
    %479 = vector.extract_strided_slice %467 {offsets = [0, 2, 0], sizes = [1, 16, 16], strides = [1, 1, 1]} : vector<1x22x16xf32> to vector<1x16x16xf32>
    %480 = vector.broadcast %478 : f32 to vector<1x16x16xf32>
    %481 = arith.mulf %480, %479 : vector<1x16x16xf32>
    %482 = arith.addf %461, %481 : vector<1x16x16xf32>
    %c72 = arith.constant 72 : index
    %483 = memref.load %arg2[%c72] : memref<98xf32, #tpu.memory_space<smem>>
    %484 = vector.extract_strided_slice %467 {offsets = [0, 3, 0], sizes = [1, 16, 16], strides = [1, 1, 1]} : vector<1x22x16xf32> to vector<1x16x16xf32>
    %485 = vector.broadcast %483 : f32 to vector<1x16x16xf32>
    %486 = arith.mulf %485, %484 : vector<1x16x16xf32>
    %487 = arith.addf %466, %486 : vector<1x16x16xf32>
    %c79 = arith.constant 79 : index
    %488 = memref.load %arg2[%c79] : memref<98xf32, #tpu.memory_space<smem>>
    %489 = vector.extract_strided_slice %467 {offsets = [0, 4, 0], sizes = [1, 16, 16], strides = [1, 1, 1]} : vector<1x22x16xf32> to vector<1x16x16xf32>
    %490 = vector.broadcast %488 : f32 to vector<1x16x16xf32>
    %491 = arith.mulf %490, %489 : vector<1x16x16xf32>
    %492 = arith.addf %472, %491 : vector<1x16x16xf32>
    %c86 = arith.constant 86 : index
    %493 = memref.load %arg2[%c86] : memref<98xf32, #tpu.memory_space<smem>>
    %494 = vector.extract_strided_slice %467 {offsets = [0, 5, 0], sizes = [1, 16, 16], strides = [1, 1, 1]} : vector<1x22x16xf32> to vector<1x16x16xf32>
    %495 = vector.broadcast %493 : f32 to vector<1x16x16xf32>
    %496 = arith.mulf %495, %494 : vector<1x16x16xf32>
    %497 = arith.addf %477, %496 : vector<1x16x16xf32>
    %c93 = arith.constant 93 : index
    %498 = memref.load %arg2[%c93] : memref<98xf32, #tpu.memory_space<smem>>
    %499 = vector.extract_strided_slice %467 {offsets = [0, 6, 0], sizes = [1, 16, 16], strides = [1, 1, 1]} : vector<1x22x16xf32> to vector<1x16x16xf32>
    %500 = vector.broadcast %498 : f32 to vector<1x16x16xf32>
    %501 = arith.mulf %500, %499 : vector<1x16x16xf32>
    %502 = arith.addf %482, %501 : vector<1x16x16xf32>
    %c1_141 = arith.constant 1 : index
    %c0_142 = arith.constant 0 : index
    %c3_143 = arith.constant 3 : index
    %503 = vector.load %arg4[%c1_141, %c0_142, %c3_143] : memref<2x22x22xf32, #tpu.memory_space<vmem>>, vector<1x22x16xf32>
    %c52 = arith.constant 52 : index
    %504 = memref.load %arg2[%c52] : memref<98xf32, #tpu.memory_space<smem>>
    %505 = vector.extract_strided_slice %503 {offsets = [0, 0, 0], sizes = [1, 16, 16], strides = [1, 1, 1]} : vector<1x22x16xf32> to vector<1x16x16xf32>
    %506 = vector.broadcast %504 : f32 to vector<1x16x16xf32>
    %507 = arith.mulf %506, %505 : vector<1x16x16xf32>
    %508 = arith.addf %487, %507 : vector<1x16x16xf32>
    %c59 = arith.constant 59 : index
    %509 = memref.load %arg2[%c59] : memref<98xf32, #tpu.memory_space<smem>>
    %510 = vector.extract_strided_slice %503 {offsets = [0, 1, 0], sizes = [1, 16, 16], strides = [1, 1, 1]} : vector<1x22x16xf32> to vector<1x16x16xf32>
    %511 = vector.broadcast %509 : f32 to vector<1x16x16xf32>
    %512 = arith.mulf %511, %510 : vector<1x16x16xf32>
    %513 = arith.addf %492, %512 : vector<1x16x16xf32>
    %c66 = arith.constant 66 : index
    %514 = memref.load %arg2[%c66] : memref<98xf32, #tpu.memory_space<smem>>
    %515 = vector.extract_strided_slice %503 {offsets = [0, 2, 0], sizes = [1, 16, 16], strides = [1, 1, 1]} : vector<1x22x16xf32> to vector<1x16x16xf32>
    %516 = vector.broadcast %514 : f32 to vector<1x16x16xf32>
    %517 = arith.mulf %516, %515 : vector<1x16x16xf32>
    %518 = arith.addf %497, %517 : vector<1x16x16xf32>
    %c73 = arith.constant 73 : index
    %519 = memref.load %arg2[%c73] : memref<98xf32, #tpu.memory_space<smem>>
    %520 = vector.extract_strided_slice %503 {offsets = [0, 3, 0], sizes = [1, 16, 16], strides = [1, 1, 1]} : vector<1x22x16xf32> to vector<1x16x16xf32>
    %521 = vector.broadcast %519 : f32 to vector<1x16x16xf32>
    %522 = arith.mulf %521, %520 : vector<1x16x16xf32>
    %523 = arith.addf %502, %522 : vector<1x16x16xf32>
    %c80 = arith.constant 80 : index
    %524 = memref.load %arg2[%c80] : memref<98xf32, #tpu.memory_space<smem>>
    %525 = vector.extract_strided_slice %503 {offsets = [0, 4, 0], sizes = [1, 16, 16], strides = [1, 1, 1]} : vector<1x22x16xf32> to vector<1x16x16xf32>
    %526 = vector.broadcast %524 : f32 to vector<1x16x16xf32>
    %527 = arith.mulf %526, %525 : vector<1x16x16xf32>
    %528 = arith.addf %508, %527 : vector<1x16x16xf32>
    %c87 = arith.constant 87 : index
    %529 = memref.load %arg2[%c87] : memref<98xf32, #tpu.memory_space<smem>>
    %530 = vector.extract_strided_slice %503 {offsets = [0, 5, 0], sizes = [1, 16, 16], strides = [1, 1, 1]} : vector<1x22x16xf32> to vector<1x16x16xf32>
    %531 = vector.broadcast %529 : f32 to vector<1x16x16xf32>
    %532 = arith.mulf %531, %530 : vector<1x16x16xf32>
    %533 = arith.addf %513, %532 : vector<1x16x16xf32>
    %c94 = arith.constant 94 : index
    %534 = memref.load %arg2[%c94] : memref<98xf32, #tpu.memory_space<smem>>
    %535 = vector.extract_strided_slice %503 {offsets = [0, 6, 0], sizes = [1, 16, 16], strides = [1, 1, 1]} : vector<1x22x16xf32> to vector<1x16x16xf32>
    %536 = vector.broadcast %534 : f32 to vector<1x16x16xf32>
    %537 = arith.mulf %536, %535 : vector<1x16x16xf32>
    %538 = arith.addf %518, %537 : vector<1x16x16xf32>
    %c1_144 = arith.constant 1 : index
    %c0_145 = arith.constant 0 : index
    %c4_146 = arith.constant 4 : index
    %539 = vector.load %arg4[%c1_144, %c0_145, %c4_146] : memref<2x22x22xf32, #tpu.memory_space<vmem>>, vector<1x22x16xf32>
    %c53 = arith.constant 53 : index
    %540 = memref.load %arg2[%c53] : memref<98xf32, #tpu.memory_space<smem>>
    %541 = vector.extract_strided_slice %539 {offsets = [0, 0, 0], sizes = [1, 16, 16], strides = [1, 1, 1]} : vector<1x22x16xf32> to vector<1x16x16xf32>
    %542 = vector.broadcast %540 : f32 to vector<1x16x16xf32>
    %543 = arith.mulf %542, %541 : vector<1x16x16xf32>
    %544 = arith.addf %523, %543 : vector<1x16x16xf32>
    %c60 = arith.constant 60 : index
    %545 = memref.load %arg2[%c60] : memref<98xf32, #tpu.memory_space<smem>>
    %546 = vector.extract_strided_slice %539 {offsets = [0, 1, 0], sizes = [1, 16, 16], strides = [1, 1, 1]} : vector<1x22x16xf32> to vector<1x16x16xf32>
    %547 = vector.broadcast %545 : f32 to vector<1x16x16xf32>
    %548 = arith.mulf %547, %546 : vector<1x16x16xf32>
    %549 = arith.addf %528, %548 : vector<1x16x16xf32>
    %c67 = arith.constant 67 : index
    %550 = memref.load %arg2[%c67] : memref<98xf32, #tpu.memory_space<smem>>
    %551 = vector.extract_strided_slice %539 {offsets = [0, 2, 0], sizes = [1, 16, 16], strides = [1, 1, 1]} : vector<1x22x16xf32> to vector<1x16x16xf32>
    %552 = vector.broadcast %550 : f32 to vector<1x16x16xf32>
    %553 = arith.mulf %552, %551 : vector<1x16x16xf32>
    %554 = arith.addf %533, %553 : vector<1x16x16xf32>
    %c74 = arith.constant 74 : index
    %555 = memref.load %arg2[%c74] : memref<98xf32, #tpu.memory_space<smem>>
    %556 = vector.extract_strided_slice %539 {offsets = [0, 3, 0], sizes = [1, 16, 16], strides = [1, 1, 1]} : vector<1x22x16xf32> to vector<1x16x16xf32>
    %557 = vector.broadcast %555 : f32 to vector<1x16x16xf32>
    %558 = arith.mulf %557, %556 : vector<1x16x16xf32>
    %559 = arith.addf %538, %558 : vector<1x16x16xf32>
    %c81 = arith.constant 81 : index
    %560 = memref.load %arg2[%c81] : memref<98xf32, #tpu.memory_space<smem>>
    %561 = vector.extract_strided_slice %539 {offsets = [0, 4, 0], sizes = [1, 16, 16], strides = [1, 1, 1]} : vector<1x22x16xf32> to vector<1x16x16xf32>
    %562 = vector.broadcast %560 : f32 to vector<1x16x16xf32>
    %563 = arith.mulf %562, %561 : vector<1x16x16xf32>
    %564 = arith.addf %544, %563 : vector<1x16x16xf32>
    %c88 = arith.constant 88 : index
    %565 = memref.load %arg2[%c88] : memref<98xf32, #tpu.memory_space<smem>>
    %566 = vector.extract_strided_slice %539 {offsets = [0, 5, 0], sizes = [1, 16, 16], strides = [1, 1, 1]} : vector<1x22x16xf32> to vector<1x16x16xf32>
    %567 = vector.broadcast %565 : f32 to vector<1x16x16xf32>
    %568 = arith.mulf %567, %566 : vector<1x16x16xf32>
    %569 = arith.addf %549, %568 : vector<1x16x16xf32>
    %c95 = arith.constant 95 : index
    %570 = memref.load %arg2[%c95] : memref<98xf32, #tpu.memory_space<smem>>
    %571 = vector.extract_strided_slice %539 {offsets = [0, 6, 0], sizes = [1, 16, 16], strides = [1, 1, 1]} : vector<1x22x16xf32> to vector<1x16x16xf32>
    %572 = vector.broadcast %570 : f32 to vector<1x16x16xf32>
    %573 = arith.mulf %572, %571 : vector<1x16x16xf32>
    %574 = arith.addf %554, %573 : vector<1x16x16xf32>
    %c1_147 = arith.constant 1 : index
    %c0_148 = arith.constant 0 : index
    %c5_149 = arith.constant 5 : index
    %575 = vector.load %arg4[%c1_147, %c0_148, %c5_149] : memref<2x22x22xf32, #tpu.memory_space<vmem>>, vector<1x22x16xf32>
    %c54 = arith.constant 54 : index
    %576 = memref.load %arg2[%c54] : memref<98xf32, #tpu.memory_space<smem>>
    %577 = vector.extract_strided_slice %575 {offsets = [0, 0, 0], sizes = [1, 16, 16], strides = [1, 1, 1]} : vector<1x22x16xf32> to vector<1x16x16xf32>
    %578 = vector.broadcast %576 : f32 to vector<1x16x16xf32>
    %579 = arith.mulf %578, %577 : vector<1x16x16xf32>
    %580 = arith.addf %559, %579 : vector<1x16x16xf32>
    %c61 = arith.constant 61 : index
    %581 = memref.load %arg2[%c61] : memref<98xf32, #tpu.memory_space<smem>>
    %582 = vector.extract_strided_slice %575 {offsets = [0, 1, 0], sizes = [1, 16, 16], strides = [1, 1, 1]} : vector<1x22x16xf32> to vector<1x16x16xf32>
    %583 = vector.broadcast %581 : f32 to vector<1x16x16xf32>
    %584 = arith.mulf %583, %582 : vector<1x16x16xf32>
    %585 = arith.addf %564, %584 : vector<1x16x16xf32>
    %c68 = arith.constant 68 : index
    %586 = memref.load %arg2[%c68] : memref<98xf32, #tpu.memory_space<smem>>
    %587 = vector.extract_strided_slice %575 {offsets = [0, 2, 0], sizes = [1, 16, 16], strides = [1, 1, 1]} : vector<1x22x16xf32> to vector<1x16x16xf32>
    %588 = vector.broadcast %586 : f32 to vector<1x16x16xf32>
    %589 = arith.mulf %588, %587 : vector<1x16x16xf32>
    %590 = arith.addf %569, %589 : vector<1x16x16xf32>
    %c75 = arith.constant 75 : index
    %591 = memref.load %arg2[%c75] : memref<98xf32, #tpu.memory_space<smem>>
    %592 = vector.extract_strided_slice %575 {offsets = [0, 3, 0], sizes = [1, 16, 16], strides = [1, 1, 1]} : vector<1x22x16xf32> to vector<1x16x16xf32>
    %593 = vector.broadcast %591 : f32 to vector<1x16x16xf32>
    %594 = arith.mulf %593, %592 : vector<1x16x16xf32>
    %595 = arith.addf %574, %594 : vector<1x16x16xf32>
    %c82 = arith.constant 82 : index
    %596 = memref.load %arg2[%c82] : memref<98xf32, #tpu.memory_space<smem>>
    %597 = vector.extract_strided_slice %575 {offsets = [0, 4, 0], sizes = [1, 16, 16], strides = [1, 1, 1]} : vector<1x22x16xf32> to vector<1x16x16xf32>
    %598 = vector.broadcast %596 : f32 to vector<1x16x16xf32>
    %599 = arith.mulf %598, %597 : vector<1x16x16xf32>
    %600 = arith.addf %580, %599 : vector<1x16x16xf32>
    %c89 = arith.constant 89 : index
    %601 = memref.load %arg2[%c89] : memref<98xf32, #tpu.memory_space<smem>>
    %602 = vector.extract_strided_slice %575 {offsets = [0, 5, 0], sizes = [1, 16, 16], strides = [1, 1, 1]} : vector<1x22x16xf32> to vector<1x16x16xf32>
    %603 = vector.broadcast %601 : f32 to vector<1x16x16xf32>
    %604 = arith.mulf %603, %602 : vector<1x16x16xf32>
    %605 = arith.addf %585, %604 : vector<1x16x16xf32>
    %c96 = arith.constant 96 : index
    %606 = memref.load %arg2[%c96] : memref<98xf32, #tpu.memory_space<smem>>
    %607 = vector.extract_strided_slice %575 {offsets = [0, 6, 0], sizes = [1, 16, 16], strides = [1, 1, 1]} : vector<1x22x16xf32> to vector<1x16x16xf32>
    %608 = vector.broadcast %606 : f32 to vector<1x16x16xf32>
    %609 = arith.mulf %608, %607 : vector<1x16x16xf32>
    %610 = arith.addf %590, %609 : vector<1x16x16xf32>
    %c1_150 = arith.constant 1 : index
    %c0_151 = arith.constant 0 : index
    %c6_152 = arith.constant 6 : index
    %611 = vector.load %arg4[%c1_150, %c0_151, %c6_152] : memref<2x22x22xf32, #tpu.memory_space<vmem>>, vector<1x22x16xf32>
    %c55 = arith.constant 55 : index
    %612 = memref.load %arg2[%c55] : memref<98xf32, #tpu.memory_space<smem>>
    %613 = vector.extract_strided_slice %611 {offsets = [0, 0, 0], sizes = [1, 16, 16], strides = [1, 1, 1]} : vector<1x22x16xf32> to vector<1x16x16xf32>
    %614 = vector.broadcast %612 : f32 to vector<1x16x16xf32>
    %615 = arith.mulf %614, %613 : vector<1x16x16xf32>
    %616 = arith.addf %595, %615 : vector<1x16x16xf32>
    %c62 = arith.constant 62 : index
    %617 = memref.load %arg2[%c62] : memref<98xf32, #tpu.memory_space<smem>>
    %618 = vector.extract_strided_slice %611 {offsets = [0, 1, 0], sizes = [1, 16, 16], strides = [1, 1, 1]} : vector<1x22x16xf32> to vector<1x16x16xf32>
    %619 = vector.broadcast %617 : f32 to vector<1x16x16xf32>
    %620 = arith.mulf %619, %618 : vector<1x16x16xf32>
    %621 = arith.addf %600, %620 : vector<1x16x16xf32>
    %c69 = arith.constant 69 : index
    %622 = memref.load %arg2[%c69] : memref<98xf32, #tpu.memory_space<smem>>
    %623 = vector.extract_strided_slice %611 {offsets = [0, 2, 0], sizes = [1, 16, 16], strides = [1, 1, 1]} : vector<1x22x16xf32> to vector<1x16x16xf32>
    %624 = vector.broadcast %622 : f32 to vector<1x16x16xf32>
    %625 = arith.mulf %624, %623 : vector<1x16x16xf32>
    %626 = arith.addf %605, %625 : vector<1x16x16xf32>
    %c76 = arith.constant 76 : index
    %627 = memref.load %arg2[%c76] : memref<98xf32, #tpu.memory_space<smem>>
    %628 = vector.extract_strided_slice %611 {offsets = [0, 3, 0], sizes = [1, 16, 16], strides = [1, 1, 1]} : vector<1x22x16xf32> to vector<1x16x16xf32>
    %629 = vector.broadcast %627 : f32 to vector<1x16x16xf32>
    %630 = arith.mulf %629, %628 : vector<1x16x16xf32>
    %631 = arith.addf %610, %630 : vector<1x16x16xf32>
    %c83 = arith.constant 83 : index
    %632 = memref.load %arg2[%c83] : memref<98xf32, #tpu.memory_space<smem>>
    %633 = vector.extract_strided_slice %611 {offsets = [0, 4, 0], sizes = [1, 16, 16], strides = [1, 1, 1]} : vector<1x22x16xf32> to vector<1x16x16xf32>
    %634 = vector.broadcast %632 : f32 to vector<1x16x16xf32>
    %635 = arith.mulf %634, %633 : vector<1x16x16xf32>
    %636 = arith.addf %616, %635 : vector<1x16x16xf32>
    %c90 = arith.constant 90 : index
    %637 = memref.load %arg2[%c90] : memref<98xf32, #tpu.memory_space<smem>>
    %638 = vector.extract_strided_slice %611 {offsets = [0, 5, 0], sizes = [1, 16, 16], strides = [1, 1, 1]} : vector<1x22x16xf32> to vector<1x16x16xf32>
    %639 = vector.broadcast %637 : f32 to vector<1x16x16xf32>
    %640 = arith.mulf %639, %638 : vector<1x16x16xf32>
    %641 = arith.addf %621, %640 : vector<1x16x16xf32>
    %c97 = arith.constant 97 : index
    %642 = memref.load %arg2[%c97] : memref<98xf32, #tpu.memory_space<smem>>
    %643 = vector.extract_strided_slice %611 {offsets = [0, 6, 0], sizes = [1, 16, 16], strides = [1, 1, 1]} : vector<1x22x16xf32> to vector<1x16x16xf32>
    %644 = vector.broadcast %642 : f32 to vector<1x16x16xf32>
    %645 = arith.mulf %644, %643 : vector<1x16x16xf32>
    %646 = arith.addf %626, %645 : vector<1x16x16xf32>
    %647 = arith.addf %641, %646 : vector<1x16x16xf32>
    %648 = arith.addf %631, %636 : vector<1x16x16xf32>
    %649 = arith.addf %647, %648 : vector<1x16x16xf32>
    %650 = arith.negf %649 : vector<1x16x16xf32>
    %651 = math.exp %650 : vector<1x16x16xf32>
    %cst_153 = arith.constant 1.000000e+00 : f32
    %652 = vector.broadcast %cst_153 : f32 to vector<1x16x16xf32>
    %653 = arith.addf %652, %651 : vector<1x16x16xf32>
    %654 = arith.divf %652, %653 : vector<1x16x16xf32>
    %655 = vector.extract_strided_slice %654 {offsets = [0, 0, 0], sizes = [1, 1, 16], strides = [1, 1, 1]} : vector<1x16x16xf32> to vector<1x1x16xf32>
    %656 = vector.shape_cast %655 : vector<1x1x16xf32> to vector<1x16xf32>
    %c0_154 = arith.constant 0 : index
    %c0_155 = arith.constant 0 : index
    %c0_156 = arith.constant 0 : index
    %657 = vector.load %arg5[%c0_154, %c0_155, %c0_156] : memref<1x1x256xf32, #tpu.memory_space<vmem>>, vector<1x1x16xf32>
    %658 = vector.shape_cast %657 : vector<1x1x16xf32> to vector<1x16xf32>
    %659 = vector.shape_cast %656 : vector<1x16xf32> to vector<1x1x16xf32>
    tpu.vector_store %arg5[%c0_154, %c0_155, %c0_156], %659 {strides = array<i32>} : memref<1x1x256xf32, #tpu.memory_space<vmem>>, vector<1x1x16xf32>,
    %660 = vector.extract_strided_slice %654 {offsets = [0, 1, 0], sizes = [1, 1, 16], strides = [1, 1, 1]} : vector<1x16x16xf32> to vector<1x1x16xf32>
    %661 = vector.shape_cast %660 : vector<1x1x16xf32> to vector<1x16xf32>
    %c0_157 = arith.constant 0 : index
    %c0_158 = arith.constant 0 : index
    %c16_159 = arith.constant 16 : index
    %662 = vector.load %arg5[%c0_157, %c0_158, %c16_159] : memref<1x1x256xf32, #tpu.memory_space<vmem>>, vector<1x1x16xf32>
    %663 = vector.shape_cast %662 : vector<1x1x16xf32> to vector<1x16xf32>
    %664 = vector.shape_cast %661 : vector<1x16xf32> to vector<1x1x16xf32>
    tpu.vector_store %arg5[%c0_157, %c0_158, %c16_159], %664 {strides = array<i32>} : memref<1x1x256xf32, #tpu.memory_space<vmem>>, vector<1x1x16xf32>,
    %665 = vector.extract_strided_slice %654 {offsets = [0, 2, 0], sizes = [1, 1, 16], strides = [1, 1, 1]} : vector<1x16x16xf32> to vector<1x1x16xf32>
    %666 = vector.shape_cast %665 : vector<1x1x16xf32> to vector<1x16xf32>
    %c0_160 = arith.constant 0 : index
    %c0_161 = arith.constant 0 : index
    %c32_162 = arith.constant 32 : index
    %667 = vector.load %arg5[%c0_160, %c0_161, %c32_162] : memref<1x1x256xf32, #tpu.memory_space<vmem>>, vector<1x1x16xf32>
    %668 = vector.shape_cast %667 : vector<1x1x16xf32> to vector<1x16xf32>
    %669 = vector.shape_cast %666 : vector<1x16xf32> to vector<1x1x16xf32>
    tpu.vector_store %arg5[%c0_160, %c0_161, %c32_162], %669 {strides = array<i32>} : memref<1x1x256xf32, #tpu.memory_space<vmem>>, vector<1x1x16xf32>,
    %670 = vector.extract_strided_slice %654 {offsets = [0, 3, 0], sizes = [1, 1, 16], strides = [1, 1, 1]} : vector<1x16x16xf32> to vector<1x1x16xf32>
    %671 = vector.shape_cast %670 : vector<1x1x16xf32> to vector<1x16xf32>
    %c0_163 = arith.constant 0 : index
    %c0_164 = arith.constant 0 : index
    %c48_165 = arith.constant 48 : index
    %672 = vector.load %arg5[%c0_163, %c0_164, %c48_165] : memref<1x1x256xf32, #tpu.memory_space<vmem>>, vector<1x1x16xf32>
    %673 = vector.shape_cast %672 : vector<1x1x16xf32> to vector<1x16xf32>
    %674 = vector.shape_cast %671 : vector<1x16xf32> to vector<1x1x16xf32>
    tpu.vector_store %arg5[%c0_163, %c0_164, %c48_165], %674 {strides = array<i32>} : memref<1x1x256xf32, #tpu.memory_space<vmem>>, vector<1x1x16xf32>,
    %675 = vector.extract_strided_slice %654 {offsets = [0, 4, 0], sizes = [1, 1, 16], strides = [1, 1, 1]} : vector<1x16x16xf32> to vector<1x1x16xf32>
    %676 = vector.shape_cast %675 : vector<1x1x16xf32> to vector<1x16xf32>
    %c0_166 = arith.constant 0 : index
    %c0_167 = arith.constant 0 : index
    %c64_168 = arith.constant 64 : index
    %677 = vector.load %arg5[%c0_166, %c0_167, %c64_168] : memref<1x1x256xf32, #tpu.memory_space<vmem>>, vector<1x1x16xf32>
    %678 = vector.shape_cast %677 : vector<1x1x16xf32> to vector<1x16xf32>
    %679 = vector.shape_cast %676 : vector<1x16xf32> to vector<1x1x16xf32>
    tpu.vector_store %arg5[%c0_166, %c0_167, %c64_168], %679 {strides = array<i32>} : memref<1x1x256xf32, #tpu.memory_space<vmem>>, vector<1x1x16xf32>,
    %680 = vector.extract_strided_slice %654 {offsets = [0, 5, 0], sizes = [1, 1, 16], strides = [1, 1, 1]} : vector<1x16x16xf32> to vector<1x1x16xf32>
    %681 = vector.shape_cast %680 : vector<1x1x16xf32> to vector<1x16xf32>
    %c0_169 = arith.constant 0 : index
    %c0_170 = arith.constant 0 : index
    %c80_171 = arith.constant 80 : index
    %682 = vector.load %arg5[%c0_169, %c0_170, %c80_171] : memref<1x1x256xf32, #tpu.memory_space<vmem>>, vector<1x1x16xf32>
    %683 = vector.shape_cast %682 : vector<1x1x16xf32> to vector<1x16xf32>
    %684 = vector.shape_cast %681 : vector<1x16xf32> to vector<1x1x16xf32>
    tpu.vector_store %arg5[%c0_169, %c0_170, %c80_171], %684 {strides = array<i32>} : memref<1x1x256xf32, #tpu.memory_space<vmem>>, vector<1x1x16xf32>,
    %685 = vector.extract_strided_slice %654 {offsets = [0, 6, 0], sizes = [1, 1, 16], strides = [1, 1, 1]} : vector<1x16x16xf32> to vector<1x1x16xf32>
    %686 = vector.shape_cast %685 : vector<1x1x16xf32> to vector<1x16xf32>
    %c0_172 = arith.constant 0 : index
    %c0_173 = arith.constant 0 : index
    %c96_174 = arith.constant 96 : index
    %687 = vector.load %arg5[%c0_172, %c0_173, %c96_174] : memref<1x1x256xf32, #tpu.memory_space<vmem>>, vector<1x1x16xf32>
    %688 = vector.shape_cast %687 : vector<1x1x16xf32> to vector<1x16xf32>
    %689 = vector.shape_cast %686 : vector<1x16xf32> to vector<1x1x16xf32>
    tpu.vector_store %arg5[%c0_172, %c0_173, %c96_174], %689 {strides = array<i32>} : memref<1x1x256xf32, #tpu.memory_space<vmem>>, vector<1x1x16xf32>,
    %690 = vector.extract_strided_slice %654 {offsets = [0, 7, 0], sizes = [1, 1, 16], strides = [1, 1, 1]} : vector<1x16x16xf32> to vector<1x1x16xf32>
    %691 = vector.shape_cast %690 : vector<1x1x16xf32> to vector<1x16xf32>
    %c0_175 = arith.constant 0 : index
    %c0_176 = arith.constant 0 : index
    %c112 = arith.constant 112 : index
    %692 = vector.load %arg5[%c0_175, %c0_176, %c112] : memref<1x1x256xf32, #tpu.memory_space<vmem>>, vector<1x1x16xf32>
    %693 = vector.shape_cast %692 : vector<1x1x16xf32> to vector<1x16xf32>
    %694 = vector.shape_cast %691 : vector<1x16xf32> to vector<1x1x16xf32>
    tpu.vector_store %arg5[%c0_175, %c0_176, %c112], %694 {strides = array<i32>} : memref<1x1x256xf32, #tpu.memory_space<vmem>>, vector<1x1x16xf32>,
    %695 = vector.extract_strided_slice %654 {offsets = [0, 8, 0], sizes = [1, 1, 16], strides = [1, 1, 1]} : vector<1x16x16xf32> to vector<1x1x16xf32>
    %696 = vector.shape_cast %695 : vector<1x1x16xf32> to vector<1x16xf32>
    %c0_177 = arith.constant 0 : index
    %c0_178 = arith.constant 0 : index
    %c128 = arith.constant 128 : index
    %697 = vector.load %arg5[%c0_177, %c0_178, %c128] : memref<1x1x256xf32, #tpu.memory_space<vmem>>, vector<1x1x16xf32>
    %698 = vector.shape_cast %697 : vector<1x1x16xf32> to vector<1x16xf32>
    %699 = vector.shape_cast %696 : vector<1x16xf32> to vector<1x1x16xf32>
    tpu.vector_store %arg5[%c0_177, %c0_178, %c128], %699 {strides = array<i32>} : memref<1x1x256xf32, #tpu.memory_space<vmem>>, vector<1x1x16xf32>,
    %700 = vector.extract_strided_slice %654 {offsets = [0, 9, 0], sizes = [1, 1, 16], strides = [1, 1, 1]} : vector<1x16x16xf32> to vector<1x1x16xf32>
    %701 = vector.shape_cast %700 : vector<1x1x16xf32> to vector<1x16xf32>
    %c0_179 = arith.constant 0 : index
    %c0_180 = arith.constant 0 : index
    %c144 = arith.constant 144 : index
    %702 = vector.load %arg5[%c0_179, %c0_180, %c144] : memref<1x1x256xf32, #tpu.memory_space<vmem>>, vector<1x1x16xf32>
    %703 = vector.shape_cast %702 : vector<1x1x16xf32> to vector<1x16xf32>
    %704 = vector.shape_cast %701 : vector<1x16xf32> to vector<1x1x16xf32>
    tpu.vector_store %arg5[%c0_179, %c0_180, %c144], %704 {strides = array<i32>} : memref<1x1x256xf32, #tpu.memory_space<vmem>>, vector<1x1x16xf32>,
    %705 = vector.extract_strided_slice %654 {offsets = [0, 10, 0], sizes = [1, 1, 16], strides = [1, 1, 1]} : vector<1x16x16xf32> to vector<1x1x16xf32>
    %706 = vector.shape_cast %705 : vector<1x1x16xf32> to vector<1x16xf32>
    %c0_181 = arith.constant 0 : index
    %c0_182 = arith.constant 0 : index
    %c160 = arith.constant 160 : index
    %707 = vector.load %arg5[%c0_181, %c0_182, %c160] : memref<1x1x256xf32, #tpu.memory_space<vmem>>, vector<1x1x16xf32>
    %708 = vector.shape_cast %707 : vector<1x1x16xf32> to vector<1x16xf32>
    %709 = vector.shape_cast %706 : vector<1x16xf32> to vector<1x1x16xf32>
    tpu.vector_store %arg5[%c0_181, %c0_182, %c160], %709 {strides = array<i32>} : memref<1x1x256xf32, #tpu.memory_space<vmem>>, vector<1x1x16xf32>,
    %710 = vector.extract_strided_slice %654 {offsets = [0, 11, 0], sizes = [1, 1, 16], strides = [1, 1, 1]} : vector<1x16x16xf32> to vector<1x1x16xf32>
    %711 = vector.shape_cast %710 : vector<1x1x16xf32> to vector<1x16xf32>
    %c0_183 = arith.constant 0 : index
    %c0_184 = arith.constant 0 : index
    %c176 = arith.constant 176 : index
    %712 = vector.load %arg5[%c0_183, %c0_184, %c176] : memref<1x1x256xf32, #tpu.memory_space<vmem>>, vector<1x1x16xf32>
    %713 = vector.shape_cast %712 : vector<1x1x16xf32> to vector<1x16xf32>
    %714 = vector.shape_cast %711 : vector<1x16xf32> to vector<1x1x16xf32>
    tpu.vector_store %arg5[%c0_183, %c0_184, %c176], %714 {strides = array<i32>} : memref<1x1x256xf32, #tpu.memory_space<vmem>>, vector<1x1x16xf32>,
    %715 = vector.extract_strided_slice %654 {offsets = [0, 12, 0], sizes = [1, 1, 16], strides = [1, 1, 1]} : vector<1x16x16xf32> to vector<1x1x16xf32>
    %716 = vector.shape_cast %715 : vector<1x1x16xf32> to vector<1x16xf32>
    %c0_185 = arith.constant 0 : index
    %c0_186 = arith.constant 0 : index
    %c192 = arith.constant 192 : index
    %717 = vector.load %arg5[%c0_185, %c0_186, %c192] : memref<1x1x256xf32, #tpu.memory_space<vmem>>, vector<1x1x16xf32>
    %718 = vector.shape_cast %717 : vector<1x1x16xf32> to vector<1x16xf32>
    %719 = vector.shape_cast %716 : vector<1x16xf32> to vector<1x1x16xf32>
    tpu.vector_store %arg5[%c0_185, %c0_186, %c192], %719 {strides = array<i32>} : memref<1x1x256xf32, #tpu.memory_space<vmem>>, vector<1x1x16xf32>,
    %720 = vector.extract_strided_slice %654 {offsets = [0, 13, 0], sizes = [1, 1, 16], strides = [1, 1, 1]} : vector<1x16x16xf32> to vector<1x1x16xf32>
    %721 = vector.shape_cast %720 : vector<1x1x16xf32> to vector<1x16xf32>
    %c0_187 = arith.constant 0 : index
    %c0_188 = arith.constant 0 : index
    %c208 = arith.constant 208 : index
    %722 = vector.load %arg5[%c0_187, %c0_188, %c208] : memref<1x1x256xf32, #tpu.memory_space<vmem>>, vector<1x1x16xf32>
    %723 = vector.shape_cast %722 : vector<1x1x16xf32> to vector<1x16xf32>
    %724 = vector.shape_cast %721 : vector<1x16xf32> to vector<1x1x16xf32>
    tpu.vector_store %arg5[%c0_187, %c0_188, %c208], %724 {strides = array<i32>} : memref<1x1x256xf32, #tpu.memory_space<vmem>>, vector<1x1x16xf32>,
    %725 = vector.extract_strided_slice %654 {offsets = [0, 14, 0], sizes = [1, 1, 16], strides = [1, 1, 1]} : vector<1x16x16xf32> to vector<1x1x16xf32>
    %726 = vector.shape_cast %725 : vector<1x1x16xf32> to vector<1x16xf32>
    %c0_189 = arith.constant 0 : index
    %c0_190 = arith.constant 0 : index
    %c224 = arith.constant 224 : index
    %727 = vector.load %arg5[%c0_189, %c0_190, %c224] : memref<1x1x256xf32, #tpu.memory_space<vmem>>, vector<1x1x16xf32>
    %728 = vector.shape_cast %727 : vector<1x1x16xf32> to vector<1x16xf32>
    %729 = vector.shape_cast %726 : vector<1x16xf32> to vector<1x1x16xf32>
    tpu.vector_store %arg5[%c0_189, %c0_190, %c224], %729 {strides = array<i32>} : memref<1x1x256xf32, #tpu.memory_space<vmem>>, vector<1x1x16xf32>,
    %730 = vector.extract_strided_slice %654 {offsets = [0, 15, 0], sizes = [1, 1, 16], strides = [1, 1, 1]} : vector<1x16x16xf32> to vector<1x1x16xf32>
    %731 = vector.shape_cast %730 : vector<1x1x16xf32> to vector<1x16xf32>
    %c0_191 = arith.constant 0 : index
    %c0_192 = arith.constant 0 : index
    %c240 = arith.constant 240 : index
    %732 = vector.load %arg5[%c0_191, %c0_192, %c240] : memref<1x1x256xf32, #tpu.memory_space<vmem>>, vector<1x1x16xf32>
    %733 = vector.shape_cast %732 : vector<1x1x16xf32> to vector<1x16xf32>
    %734 = vector.shape_cast %731 : vector<1x16xf32> to vector<1x1x16xf32>
    tpu.vector_store %arg5[%c0_191, %c0_192, %c240], %734 {strides = array<i32>} : memref<1x1x256xf32, #tpu.memory_space<vmem>>, vector<1x1x16xf32>,
    %c0_193 = arith.constant 0 : index
    %c0_194 = arith.constant 0 : index
    %c0_195 = arith.constant 0 : index
    %735 = vector.load %arg5[%c0_193, %c0_194, %c0_195] : memref<1x1x256xf32, #tpu.memory_space<vmem>>, vector<1x1x256xf32>
    %c0_196 = arith.constant 0 : index
    %c0_197 = arith.constant 0 : index
    %c0_198 = arith.constant 0 : index
    %736 = vector.load %arg1[%c0_196, %c0_197, %c0_198] : memref<1x4x256xf32, #tpu.memory_space<vmem>>, vector<1x4x256xf32>
    %737 = vector.broadcast %735 : vector<1x1x256xf32> to vector<1x4x256xf32>
    %738 = arith.mulf %736, %737 : vector<1x4x256xf32>
    %c0_199 = arith.constant 0 : index
    %c0_200 = arith.constant 0 : index
    %c0_201 = arith.constant 0 : index
    %739 = vector.load %arg3[%c0_199, %c0_200, %c0_201] : memref<1x4x256xf32, #tpu.memory_space<vmem>>, vector<1x4x256xf32>
    tpu.vector_store %arg3[%c0_199, %c0_200, %c0_201], %738 {strides = array<i32>} : memref<1x4x256xf32, #tpu.memory_space<vmem>>, vector<1x4x256xf32>,
    return
  }
  func.func @transform_0(%arg0: i32) -> (i32, i32, i32) {
    %c0_i32 = arith.constant 0 : i32
    %c0_i32_0 = arith.constant 0 : i32
    %c0_i32_1 = arith.constant 0 : i32
    return %arg0, %c0_i32, %c0_i32_0 : i32, i32, i32
  }
  func.func @transform_1(%arg0: i32) -> i32 {
    %c0_i32 = arith.constant 0 : i32
    %c0_i32_0 = arith.constant 0 : i32
    return %c0_i32 : i32
  }
  func.func @transform_2(%arg0: i32) -> (i32, i32, i32) {
    %c0_i32 = arith.constant 0 : i32
    %c0_i32_0 = arith.constant 0 : i32
    %c0_i32_1 = arith.constant 0 : i32
    return %arg0, %c0_i32, %c0_i32_0 : i32, i32, i32
  }
}

</mosaic_0001>

<llo_original>
// kernel: tpu_custom_call.1
$region0: #{tpu_custom_call.1}
  #allocation0 [shape = 'u32[]', space=smem, size = 0x4, offset = 0x4, fixed_abs, tag = 'smem constant byte address 0x4 - core index']
  #allocation1 [shape = 'u32[72,128]{1,0:T(1,128)}', space=vmem, size = 0x9000, scoped, tag = 'internal scratch']
  #allocation2 [shape = 'f32[2,22,22]{2,1,0:T(8,128)}', space=vmem, size = 0x6000, scoped, tag = 'scratch operand']
  #allocation3 [shape = 'f32[1,1,256]{2,1,0:T(1,128)}', space=vmem, size = 0x400, scoped, tag = 'scratch operand']
  %s0 = inlined_call_operand.hbm [shape: f32[2,4,256], index: 0, kind: input, shape index: {}]
  %s1 = inlined_call_operand.hbm [shape: f32[98], index: 1, kind: input, shape index: {}]
  %s2 = inlined_call_operand.hbm [shape: f32[2,4,256], index: 2, kind: output, shape index: {}]
  %s3 = sld [smem:[#allocation0]]
  $region49: #{tpu_custom_call.1} parent=0
    _
  %s5 = ssub.s32 1, %s3
  %s6 = scalar_select 0, %s5, %s3
  $region1: #{tpu_custom_call.1} parent=0
    #allocation4 [shape = 'u8[8192]{0}', space=vmem, size = 0x2000, scoped, tag = 'input window, operand 0']
    #allocation5 [shape = 's32[2]{0}', space=sflag, size = 0x8, scoped, tag = 'scoped memory for tpu_custom_call.1']
    #allocation6 [shape = 's32[2]{0}', space=sflag, size = 0x8, scoped, tag = 'scoped memory for tpu_custom_call.1']
    #allocation7 [shape = 's32[2]{0}', space=sflag, size = 0x8, scoped, tag = 'scoped memory for tpu_custom_call.1']
    #allocation8 [shape = 'u8[512]{0}', space=smem, size = 0x200, scoped, tag = 'input window, operand 1, single buffered']
    #allocation9 [shape = 'u8[8192]{0}', space=vmem, size = 0x2000, scoped, tag = 'output window, operand 0']
    %7 = vsyncpa [#allocation5], 0
    %s8 = scalar_lea.sflag [#allocation5], 1
    %9 = vsyncpa %s8, 0
    %10 = vsyncpa [#allocation7], 0
    %11 = vsyncpa [#allocation6], 0
    %s12 = scalar_lea.sflag [#allocation6], 1
    %13 = vsyncpa %s12, 0
    loop: start=0, step=1, limit=4
    $region2: #{tpu_custom_call.1} parent=1 // loop_pre_header
      _
    $region3: #{tpu_custom_call.1} parent=1 // loop_header
      %s15 = sphi 0, %s19
      %p16 = scmp.ge.s32.totalorder %s15, 4
      %s25 = sphi 0, %s27
      %s28 = sphi 0, %s25
      %s29 = sphi 0, %s28
      %s45 = sphi 0, %s29
      %s49 = sphi 0, %s49
      %s51 = sphi 0, %s49
      %s52 = sphi 0, %s51
      %s66 = sphi 0, %s52
      %s72 = sphi 0, %s74
      %s75 = sphi 0, %s72
      %s76 = sphi 0, %s75
      %s92 = sphi 0, %s76
    $region4: #{tpu_custom_call.1} parent=1 // loop_header_branch
      %18 = sbr.rel (%p16) target = $region8
    $region5: #{tpu_custom_call.1} parent=1 // loop_body
      %s20 = ssub.s32 %s15, 1
      %s21 = ssub.s32 %s15, 2
      %s22 = sadd.s32 %s15, 1
      %s23 = ssub.s32 %s15, %s22
      %p24 = scmp.eq.s32.totalorder %s23, 0
      %s26 = sadd.s32 %s25, 1
      %s27 = scalar_select %p24, %s25, %s26
      %p30 = pneg %p24
      %p31 = scmp.eq.s32.totalorder %s15, 1
      %p32 = por %p30, %p31
      %p33 = scmp.ne.s32.totalorder %s25, %s28
      %p34 = scmp.eq.s32.totalorder %s15, 0
      %p35 = por %p33, %p34
      %p36 = scmp.ne.s32.totalorder %s25, %s28
      %p37 = scmp.eq.s32.totalorder %s20, 1
      %p38 = por %p36, %p37
      %p39 = scmp.ne.s32.totalorder %s28, %s29
      %p40 = scmp.eq.s32.totalorder %s20, 0
      %p41 = por %p39, %p40
      %p42 = scmp.ne.s32.totalorder %s28, %s29
      %p43 = scmp.eq.s32.totalorder %s21, 1
      %p44 = por %p42, %p43
      %p46 = scmp.ne.s32.totalorder %s29, %s45
      %p47 = scmp.eq.s32.totalorder %s21, 0
      %p48 = por %p46, %p47
      %s50 = sadd.s32 %s49, 1
      %p53 = scmp.eq.s32.totalorder %s15, 1
      %p54 = scmp.ne.s32.totalorder %s49, %s51
      %p55 = scmp.eq.s32.totalorder %s15, 0
      %p56 = por %p54, %p55
      %p57 = scmp.ne.s32.totalorder %s49, %s51
      %p58 = scmp.eq.s32.totalorder %s20, 1
      %p59 = por %p57, %p58
      %p60 = scmp.ne.s32.totalorder %s51, %s52
      %p61 = scmp.eq.s32.totalorder %s20, 0
      %p62 = por %p60, %p61
      %p63 = scmp.ne.s32.totalorder %s51, %s52
      %p64 = scmp.eq.s32.totalorder %s21, 1
      %p65 = por %p63, %p64
      %p67 = scmp.ne.s32.totalorder %s52, %s66
      %p68 = scmp.eq.s32.totalorder %s21, 0
      %p69 = por %p67, %p68
      %s70 = ssub.s32 %s15, %s22
      %p71 = scmp.eq.s32.totalorder %s70, 0
      %s73 = sadd.s32 %s72, 1
      %s74 = scalar_select %p71, %s72, %s73
      %p77 = pneg %p71
      %p78 = scmp.eq.s32.totalorder %s15, 1
      %p79 = por %p77, %p78
      %p80 = scmp.ne.s32.totalorder %s72, %s75
      %p81 = scmp.eq.s32.totalorder %s15, 0
      %p82 = por %p80, %p81
      %p83 = scmp.ne.s32.totalorder %s72, %s75
      %p84 = scmp.eq.s32.totalorder %s20, 1
      %p85 = por %p83, %p84
      %p86 = scmp.ne.s32.totalorder %s75, %s76
      %p87 = scmp.eq.s32.totalorder %s20, 0
      %p88 = por %p86, %p87
      %p89 = scmp.ne.s32.totalorder %s75, %s76
      %p90 = scmp.eq.s32.totalorder %s21, 1
      %p91 = por %p89, %p90
      %p93 = scmp.ne.s32.totalorder %s76, %s92
      %p94 = scmp.eq.s32.totalorder %s21, 0
      %p95 = por %p93, %p94
      %p96 = scmp.le.s32.totalorder 1, %s15
      %p97 = scmp.lt.s32.totalorder %s15, 3
      %p98 = pnand %p96, %p97
      %p99 = pneg %p98
      // Predicated region
      $region9: #{tpu_custom_call.1} parent=5 // pred_check
        _
      $region10: #{tpu_custom_call.1} parent=5 // pred_check_branch
        %101 = sbr.rel (%p98) target = $region12
      $region11: #{tpu_custom_call.1} parent=5 // pred_region
        %s102 = ssub.s32 %s15, 1
        // Predicated region
        $region13: #{tpu_custom_call.1} parent=11 // pred_check
          %p103 = pneg %p62
        $region14: #{tpu_custom_call.1} parent=11 // pred_check_branch
          %105 = sbr.rel (%p103) target = $region16
        $region15: #{tpu_custom_call.1} parent=11 // pred_region
          %107 = vsyncadd [#allocation7], 0
          %s109 = sshll.u32 %s1, 4
          %s110 = int_to_ptr.hbm [resolvable:$true] %s109
          %112 = dma.hbm_to_smem %s110, 16, [#allocation8], [#allocation7]
        $region16: #{tpu_custom_call.1} parent=11 // pred_fallthru
          _
      $region12: #{tpu_custom_call.1} parent=5 // pred_fallthru
        _
      %p113 = scmp.lt.s32.totalorder %s15, 2
      // Predicated region
      $region17: #{tpu_custom_call.1} parent=5 // pred_check
        %p114 = pneg %p113
      $region18: #{tpu_custom_call.1} parent=5 // pred_check_branch
        %116 = sbr.rel (%p114) target = $region20
      $region19: #{tpu_custom_call.1} parent=5 // pred_region
        // Predicated region
        $region21: #{tpu_custom_call.1} parent=19 // pred_check
          %p117 = pneg %p35
        $region22: #{tpu_custom_call.1} parent=19 // pred_check_branch
          %119 = sbr.rel (%p117) target = $region24
        $region23: #{tpu_custom_call.1} parent=19 // pred_region
          %s120 = sand.u32 %s25, 1
          %s121 = scalar_lea.sflag [#allocation5], %s120
          %s122 = sand.u32 %s25, 1
          %s123 = smul.addr %s122, 8
          %s124 = scalar_lea.vmem [#allocation4], %s123
          %126 = vsyncadd %s121, 0
          %s127 = smul.addr %s15, 2
          %s128 = smul.addr %s127, 4
          %s129 = scalar_lea.hbm %s0, %s128
          %s131 = sshll.u32 %s129, 4
          %s132 = int_to_ptr.hbm [resolvable:$true] %s131
          %s133 = sshll.u32 %s124, 4
          %s134 = int_to_ptr.vmem [resolvable:$true] %s133
          %136 = dma.hbm_to_vmem [thread:$0]  %s132, 128, %s134, %s121
        $region24: #{tpu_custom_call.1} parent=19 // pred_fallthru
          _
      $region20: #{tpu_custom_call.1} parent=5 // pred_fallthru
        _
      %p137 = scmp.le.s32.totalorder 1, %s15
      %p138 = scmp.lt.s32.totalorder %s15, 3
      %p139 = pnand %p137, %p138
      %p140 = pneg %p139
      // Predicated region
      $region25: #{tpu_custom_call.1} parent=5 // pred_check
        _
      $region26: #{tpu_custom_call.1} parent=5 // pred_check_branch
        %142 = sbr.rel (%p139) target = $region28
      $region27: #{tpu_custom_call.1} parent=5 // pred_region
        %s143 = ssub.s32 %s15, 1
        %s144 = sand.u32 %s28, 1
        %s145 = scalar_lea.sflag [#allocation5], %s144
        %s146 = sand.u32 %s28, 1
        %s147 = smul.addr %s146, 8
        %s148 = scalar_lea.vmem [#allocation4], %s147
        // Predicated region
        $region29: #{tpu_custom_call.1} parent=27 // pred_check
          %p149 = pneg %p41
        $region30: #{tpu_custom_call.1} parent=27 // pred_check_branch
          %151 = sbr.rel (%p149) target = $region32
        $region31: #{tpu_custom_call.1} parent=27 // pred_region
          %153 = dma.done %s145, 128
        $region32: #{tpu_custom_call.1} parent=27 // pred_fallthru
          _
        // Predicated region
        $region33: #{tpu_custom_call.1} parent=27 // pred_check
          %p154 = pneg %p62
        $region34: #{tpu_custom_call.1} parent=27 // pred_check_branch
          %156 = sbr.rel (%p154) target = $region36
        $region35: #{tpu_custom_call.1} parent=27 // pred_region
          %158 = dma.done [#allocation7], 16
        $region36: #{tpu_custom_call.1} parent=27 // pred_fallthru
          _
        %159 = sfence
        %s160 = sand.u32 %s28, 1
        %s161 = scalar_lea.sflag [#allocation5], %s160
        %s162 = sand.u32 %s28, 1
        %s163 = smul.addr %s162, 8
        %s164 = scalar_lea.vmem [#allocation4], %s163
        %p165 = pneg %p41
        %p166 = pneg %p38
        %p167 = pneg %p62
        %p168 = pneg %p59
        %p169 = pneg %p88
        %p170 = pneg %p85
        %s171 = sand.u32 %s75, 1
        %s172 = scalar_lea.sflag [#allocation6], %s171
        %s173 = sand.u32 %s75, 1
        %s174 = smul.addr %s173, 8
        %s175 = scalar_lea.vmem [#allocation9], %s174
        %v176 = vld [vmem:[%s148] sm:$0xff]
        %178 = vst [vmem:[#allocation1] ss:$2 sm:$0xff] %v176
        %v179 = vld.sshfl [vmem:[#allocation1] sm:$0xff pattern:$0x75316420]
        %v180 = vld.sshfl [vmem:[#allocation1 + $0x8] sm:$0xff pattern:$0x75316420]
        %vm183 = vcmask 1043456
        %v184 = vsel %vm183, %v179, 0.0
        %v185 = vrot.slane %v184, 4
        %v186 = vadd.f32 %v184, %v185
        %v187 = vrot.slane %v186, 2
        %v188 = vadd.f32 %v186, %v187
        %v189 = vrot.slane %v188, 1
        %v190 = vadd.f32 %v188, %v189
        %v191 = vsel %vm183, %v180, 0.0
        %v192 = vrot.slane %v191, 4
        %v193 = vadd.f32 %v191, %v192
        %v194 = vrot.slane %v193, 2
        %v195 = vadd.f32 %v193, %v194
        %v196 = vrot.slane %v195, 1
        %v197 = vadd.f32 %v195, %v196
        %v198 = vadd.f32 %v190, 0.0
        %v199 = vadd.f32 %v197, 0.0
        %200 = vst [vmem:[#allocation1] ss:$2 sm:$0xff] %v176
        %v201 = vld.sshfl [vmem:[#allocation1] sm:$0xff pattern:$0x75316420]
        %v202 = vld.sshfl [vmem:[#allocation1 + $0x8] sm:$0xff pattern:$0x75316420]
        %v205 = vsel %vm183, %v201, -inf
        %v206 = vrot.slane %v205, 4
        %v207 = vmax.f32 %v205, %v206
        %v208 = vrot.slane %v207, 2
        %v209 = vmax.f32 %v207, %v208
        %v210 = vrot.slane %v209, 1
        %v211 = vmax.f32 %v209, %v210
        %v212 = vsel %vm183, %v202, -inf
        %v213 = vrot.slane %v212, 4
        %v214 = vmax.f32 %v212, %v213
        %v215 = vrot.slane %v214, 2
        %v216 = vmax.f32 %v214, %v215
        %v217 = vrot.slane %v216, 1
        %v218 = vmax.f32 %v216, %v217
        %v219 = vmul.f32 %v198, 0.25
        %v220 = vmul.f32 %v199, 0.25
        %vm221 = vcmask 179200
        %222 = vst.msk [vmem:[#allocation2] sm:$0xff] %vm221, 0.0
        %223 = vst.msk [vmem:[#allocation2 + $0x8] sm:$0xff] %vm221, 0.0
        %vm224 = vcmask 177152
        %225 = vst.msk [vmem:[#allocation2 + $0x10] sm:$0x3f] %vm224, 0.0
        %226 = vst.msk [vmem:[#allocation2 + $0x18] sm:$0xff] %vm221, 0.0
        %227 = vst.msk [vmem:[#allocation2 + $0x20] sm:$0xff] %vm221, 0.0
        %228 = vst.msk [vmem:[#allocation2 + $0x28] sm:$0x3f] %vm224, 0.0
        %230 = vrot.lane.b32.xlu0 %v219, 3
        %v231 = vpop.permute.xlu0 %230
        %vm233 = vcmask 147480
        %234 = vst.msk [vmem:[#allocation2 + $0x3] sm:$0x1] %vm233, %v231
        %236 = vrot.lane.b32.xlu0 %v211, 3
        %v237 = vpop.permute.xlu0 %236
        %s239 = scalar_lea.vmem [#allocation2], 24
        %240 = vst.msk [vmem:[%s239 + $0x3] sm:$0x1] %vm233, %v237
        %241 = vrot.lane.b32.xlu0 %v219, 115
        %v242 = vpop.permute.xlu0 %241
        %244 = vst.msk [vmem:[#allocation2 + $0x4] sm:$0x1] %vm233, %v242
        %245 = vrot.lane.b32.xlu0 %v211, 115
        %v246 = vpop.permute.xlu0 %245
        %248 = vst.msk [vmem:[%s239 + $0x4] sm:$0x1] %vm233, %v246
        %249 = vrot.lane.b32.xlu0 %v219, 99
        %v250 = vpop.permute.xlu0 %249
        %252 = vst.msk [vmem:[#allocation2 + $0x5] sm:$0x1] %vm233, %v250
        %253 = vrot.lane.b32.xlu0 %v211, 99
        %v254 = vpop.permute.xlu0 %253
        %256 = vst.msk [vmem:[%s239 + $0x5] sm:$0x1] %vm233, %v254
        %257 = vrot.lane.b32.xlu0 %v219, 83
        %v258 = vpop.permute.xlu0 %257
        %260 = vst.msk [vmem:[#allocation2 + $0x6] sm:$0x1] %vm233, %v258
        %261 = vrot.lane.b32.xlu0 %v211, 83
        %v262 = vpop.permute.xlu0 %261
        %264 = vst.msk [vmem:[%s239 + $0x6] sm:$0x1] %vm233, %v262
        %265 = vrot.lane.b32.xlu0 %v219, 67
        %v266 = vpop.permute.xlu0 %265
        %268 = vst.msk [vmem:[#allocation2 + $0x7] sm:$0x1] %vm233, %v266
        %269 = vrot.lane.b32.xlu0 %v211, 67
        %v270 = vpop.permute.xlu0 %269
        %272 = vst.msk [vmem:[%s239 + $0x7] sm:$0x1] %vm233, %v270
        %273 = vrot.lane.b32.xlu0 %v219, 51
        %v274 = vpop.permute.xlu0 %273
        %276 = vst.msk [vmem:[#allocation2 + $0x8] sm:$0x1] %vm233, %v274
        %277 = vrot.lane.b32.xlu0 %v211, 51
        %v278 = vpop.permute.xlu0 %277
        %280 = vst.msk [vmem:[%s239 + $0x8] sm:$0x1] %vm233, %v278
        %281 = vrot.lane.b32.xlu0 %v219, 35
        %v282 = vpop.permute.xlu0 %281
        %284 = vst.msk [vmem:[#allocation2 + $0x9] sm:$0x1] %vm233, %v282
        %285 = vrot.lane.b32.xlu0 %v211, 35
        %v286 = vpop.permute.xlu0 %285
        %288 = vst.msk [vmem:[%s239 + $0x9] sm:$0x1] %vm233, %v286
        %289 = vrot.lane.b32.xlu0 %v219, 19
        %v290 = vpop.permute.xlu0 %289
        %292 = vst.msk [vmem:[#allocation2 + $0xa] sm:$0x1] %vm233, %v290
        %293 = vrot.lane.b32.xlu0 %v211, 19
        %v294 = vpop.permute.xlu0 %293
        %296 = vst.msk [vmem:[%s239 + $0xa] sm:$0x1] %vm233, %v294
        %298 = vrot.lane.b32.xlu0 %v220, 3
        %v299 = vpop.permute.xlu0 %298
        %301 = vst.msk [vmem:[#allocation2 + $0xb] sm:$0x1] %vm233, %v299
        %303 = vrot.lane.b32.xlu0 %v218, 3
        %v304 = vpop.permute.xlu0 %303
        %306 = vst.msk [vmem:[%s239 + $0xb] sm:$0x1] %vm233, %v304
        %307 = vrot.lane.b32.xlu0 %v220, 115
        %v308 = vpop.permute.xlu0 %307
        %310 = vst.msk [vmem:[#allocation2 + $0xc] sm:$0x1] %vm233, %v308
        %311 = vrot.lane.b32.xlu0 %v218, 115
        %v312 = vpop.permute.xlu0 %311
        %314 = vst.msk [vmem:[%s239 + $0xc] sm:$0x1] %vm233, %v312
        %315 = vrot.lane.b32.xlu0 %v220, 99
        %v316 = vpop.permute.xlu0 %315
        %318 = vst.msk [vmem:[#allocation2 + $0xd] sm:$0x1] %vm233, %v316
        %319 = vrot.lane.b32.xlu0 %v218, 99
        %v320 = vpop.permute.xlu0 %319
        %322 = vst.msk [vmem:[%s239 + $0xd] sm:$0x1] %vm233, %v320
        %323 = vrot.lane.b32.xlu0 %v220, 83
        %v324 = vpop.permute.xlu0 %323
        %326 = vst.msk [vmem:[#allocation2 + $0xe] sm:$0x1] %vm233, %v324
        %327 = vrot.lane.b32.xlu0 %v218, 83
        %v328 = vpop.permute.xlu0 %327
        %330 = vst.msk [vmem:[%s239 + $0xe] sm:$0x1] %vm233, %v328
        %331 = vrot.lane.b32.xlu0 %v220, 67
        %v332 = vpop.permute.xlu0 %331
        %334 = vst.msk [vmem:[#allocation2 + $0xf] sm:$0x1] %vm233, %v332
        %335 = vrot.lane.b32.xlu0 %v218, 67
        %v336 = vpop.permute.xlu0 %335
        %338 = vst.msk [vmem:[%s239 + $0xf] sm:$0x1] %vm233, %v336
        %339 = vrot.lane.b32.xlu0 %v220, 51
        %v340 = vpop.permute.xlu0 %339
        %342 = vst.msk [vmem:[#allocation2 + $0x10] sm:$0x1] %vm233, %v340
        %343 = vrot.lane.b32.xlu0 %v218, 51
        %v344 = vpop.permute.xlu0 %343
        %346 = vst.msk [vmem:[%s239 + $0x10] sm:$0x1] %vm233, %v344
        %347 = vrot.lane.b32.xlu0 %v220, 35
        %v348 = vpop.permute.xlu0 %347
        %350 = vst.msk [vmem:[#allocation2 + $0x11] sm:$0x1] %vm233, %v348
        %351 = vrot.lane.b32.xlu0 %v218, 35
        %v352 = vpop.permute.xlu0 %351
        %354 = vst.msk [vmem:[%s239 + $0x11] sm:$0x1] %vm233, %v352
        %355 = vrot.lane.b32.xlu0 %v220, 19
        %v356 = vpop.permute.xlu0 %355
        %358 = vst.msk [vmem:[#allocation2 + $0x12] sm:$0x1] %vm233, %v356
        %359 = vrot.lane.b32.xlu0 %v218, 19
        %v360 = vpop.permute.xlu0 %359
        %362 = vst.msk [vmem:[%s239 + $0x12] sm:$0x1] %vm233, %v360
        %v363 = vld [vmem:[#allocation2] sm:$0xff]
        %v364 = vld [vmem:[#allocation2 + $0x8] sm:$0xff]
        %v365 = vld [vmem:[#allocation2 + $0x10] sm:$0x3f]
        %s366 = sld [smem:[#allocation8]]
        %v367 = vstv %s366
        %v368 = vmul.f32 %v367, %v363
        %v369 = vmul.f32 %v367, %v364
        %v370 = vadd.f32 %v368, 0.0
        %v371 = vadd.f32 %v369, 0.0
        %s372 = sld [smem:[#allocation8 + $0x7]]
        %v373 = vstv %s372
        %v374 = vmul.f32 %v373, %v363
        %v375 = vmul.f32 %v373, %v364
        %v376 = vmul.f32 %v373, %v365
        %v377 = vadd.f32 %v374, 0.0
        %v378 = vadd.f32 %v375, 0.0
        %v379 = vadd.f32 %v376, 0.0
        %s380 = sld [smem:[#allocation8 + $0xe]]
        %v381 = vstv %s380
        %v382 = vmul.f32 %v381, %v363
        %v383 = vmul.f32 %v381, %v364
        %v384 = vmul.f32 %v381, %v365
        %v385 = vadd.f32 %v382, 0.0
        %v386 = vadd.f32 %v383, 0.0
        %v387 = vadd.f32 %v384, 0.0
        %s388 = sld [smem:[#allocation8 + $0x15]]
        %v389 = vstv %s388
        %v390 = vmul.f32 %v389, %v363
        %v391 = vmul.f32 %v389, %v364
        %v392 = vmul.f32 %v389, %v365
        %v393 = vadd.f32 %v390, 0.0
        %v394 = vadd.f32 %v391, 0.0
        %v395 = vadd.f32 %v392, 0.0
        %s396 = sld [smem:[#allocation8 + $0x1c]]
        %v397 = vstv %s396
        %v398 = vmul.f32 %v397, %v363
        %v399 = vmul.f32 %v397, %v364
        %v400 = vmul.f32 %v397, %v365
        %v404 = vrot.slane %v398, 4
        %v405 = vrot.slane %v399, 4
        %v406 = vsel %vm183, %v404, %v405
        %v407 = vrot.slane %v400, 4
        %v408 = vsel %vm183, %v405, %v407
        %v411 = vadd.f32 %v370, %v406
        %v412 = vadd.f32 %v371, %v408
        %s413 = sld [smem:[#allocation8 + $0x23]]
        %v414 = vstv %s413
        %v415 = vmul.f32 %v414, %v363
        %v416 = vmul.f32 %v414, %v364
        %v417 = vmul.f32 %v414, %v365
        %v421 = vrot.slane %v415, 4
        %v422 = vrot.slane %v416, 4
        %v423 = vsel %vm183, %v421, %v422
        %v424 = vrot.slane %v417, 4
        %v425 = vsel %vm183, %v422, %v424
        %v429 = vadd.f32 %v377, %v423
        %v430 = vadd.f32 %v378, %v425
        %v431 = vadd.f32 %v379, %v424
        %s432 = sld [smem:[#allocation8 + $0x2a]]
        %v433 = vstv %s432
        %v434 = vmul.f32 %v433, %v363
        %v435 = vmul.f32 %v433, %v364
        %v436 = vmul.f32 %v433, %v365
        %v440 = vrot.slane %v434, 4
        %v441 = vrot.slane %v435, 4
        %v442 = vsel %vm183, %v440, %v441
        %v443 = vrot.slane %v436, 4
        %v444 = vsel %vm183, %v441, %v443
        %v448 = vadd.f32 %v385, %v442
        %v449 = vadd.f32 %v386, %v444
        %v450 = vadd.f32 %v387, %v443
        %s451 = sld [smem:[#allocation8 + $0x1]]
        %v452 = vstv %s451
        %v453 = vmul.f32 %v452, %v363
        %v454 = vmul.f32 %v452, %v364
        %vm457 = vcmask 1042432
        %v458 = vrot.slane %v453, 5
        %v459 = vrot.slane %v454, 5
        %v460 = vsel %vm457, %v458, %v459
        %461 = vrot.lane.b32.xlu0 %v458, 127
        %v462 = vpop.permute.xlu0 %461
        %463 = vrot.lane.b32.xlu0 %v460, 127
        %v464 = vpop.permute.xlu0 %463
        %465 = vrot.lane.b32.xlu0 %v459, 127
        %v466 = vpop.permute.xlu0 %465
        %v470 = vadd.f32 %v393, %v462
        %v471 = vadd.f32 %v394, %v464
        %v472 = vadd.f32 %v395, %v466
        %s473 = sld [smem:[#allocation8 + $0x8]]
        %v474 = vstv %s473
        %v475 = vmul.f32 %v474, %v363
        %v476 = vmul.f32 %v474, %v364
        %v477 = vmul.f32 %v474, %v365
        %vm481 = vcmask 1046528
        %v482 = vrot.slane %v475, 1
        %v483 = vrot.slane %v476, 1
        %v484 = vsel %vm481, %v482, %v483
        %v485 = vrot.slane %v477, 1
        %v486 = vsel %vm481, %v483, %v485
        %487 = vrot.lane.b32.xlu0 %v484, 127
        %v488 = vpop.permute.xlu0 %487
        %489 = vrot.lane.b32.xlu0 %v486, 127
        %v490 = vpop.permute.xlu0 %489
        %v493 = vadd.f32 %v411, %v488
        %v494 = vadd.f32 %v412, %v490
        %s495 = sld [smem:[#allocation8 + $0xf]]
        %v496 = vstv %s495
        %v497 = vmul.f32 %v496, %v363
        %v498 = vmul.f32 %v496, %v364
        %v499 = vmul.f32 %v496, %v365
        %v503 = vrot.slane %v497, 1
        %v504 = vrot.slane %v498, 1
        %v505 = vsel %vm481, %v503, %v504
        %v506 = vrot.slane %v499, 1
        %v507 = vsel %vm481, %v504, %v506
        %508 = vrot.lane.b32.xlu0 %v505, 127
        %v509 = vpop.permute.xlu0 %508
        %510 = vrot.lane.b32.xlu0 %v507, 127
        %v511 = vpop.permute.xlu0 %510
        %512 = vrot.lane.b32.xlu0 %v506, 127
        %v513 = vpop.permute.xlu0 %512
        %v517 = vadd.f32 %v429, %v509
        %v518 = vadd.f32 %v430, %v511
        %v519 = vadd.f32 %v431, %v513
        %s520 = sld [smem:[#allocation8 + $0x16]]
        %v521 = vstv %s520
        %v522 = vmul.f32 %v521, %v363
        %v523 = vmul.f32 %v521, %v364
        %v524 = vmul.f32 %v521, %v365
        %v528 = vrot.slane %v522, 1
        %v529 = vrot.slane %v523, 1
        %v530 = vsel %vm481, %v528, %v529
        %v531 = vrot.slane %v524, 1
        %v532 = vsel %vm481, %v529, %v531
        %533 = vrot.lane.b32.xlu0 %v530, 127
        %v534 = vpop.permute.xlu0 %533
        %535 = vrot.lane.b32.xlu0 %v532, 127
        %v536 = vpop.permute.xlu0 %535
        %537 = vrot.lane.b32.xlu0 %v531, 127
        %v538 = vpop.permute.xlu0 %537
        %v542 = vadd.f32 %v448, %v534
        %v543 = vadd.f32 %v449, %v536
        %v544 = vadd.f32 %v450, %v538
        %s545 = sld [smem:[#allocation8 + $0x1d]]
        %v546 = vstv %s545
        %v547 = vmul.f32 %v546, %v363
        %v548 = vmul.f32 %v546, %v364
        %v549 = vmul.f32 %v546, %v365
        %v553 = vrot.slane %v547, 1
        %v554 = vrot.slane %v548, 1
        %v555 = vsel %vm481, %v553, %v554
        %v556 = vrot.slane %v549, 1
        %v557 = vsel %vm481, %v554, %v556
        %558 = vrot.lane.b32.xlu0 %v555, 127
        %v559 = vpop.permute.xlu0 %558
        %560 = vrot.lane.b32.xlu0 %v557, 127
        %v561 = vpop.permute.xlu0 %560
        %562 = vrot.lane.b32.xlu0 %v556, 127
        %v563 = vpop.permute.xlu0 %562
        %v567 = vadd.f32 %v470, %v559
        %v568 = vadd.f32 %v471, %v561
        %v569 = vadd.f32 %v472, %v563
        %s570 = sld [smem:[#allocation8 + $0x24]]
        %v571 = vstv %s570
        %v572 = vmul.f32 %v571, %v363
        %v573 = vmul.f32 %v571, %v364
        %v574 = vmul.f32 %v571, %v365
        %v578 = vrot.slane %v572, 5
        %v579 = vrot.slane %v573, 5
        %v580 = vsel %vm457, %v578, %v579
        %v581 = vrot.slane %v574, 5
        %v582 = vsel %vm457, %v579, %v581
        %583 = vrot.lane.b32.xlu0 %v580, 127
        %v584 = vpop.permute.xlu0 %583
        %585 = vrot.lane.b32.xlu0 %v582, 127
        %v586 = vpop.permute.xlu0 %585
        %v589 = vadd.f32 %v493, %v584
        %v590 = vadd.f32 %v494, %v586
        %s591 = sld [smem:[#allocation8 + $0x2b]]
        %v592 = vstv %s591
        %v593 = vmul.f32 %v592, %v363
        %v594 = vmul.f32 %v592, %v364
        %v595 = vmul.f32 %v592, %v365
        %v599 = vrot.slane %v593, 5
        %v600 = vrot.slane %v594, 5
        %v601 = vsel %vm457, %v599, %v600
        %v602 = vrot.slane %v595, 5
        %v603 = vsel %vm457, %v600, %v602
        %604 = vrot.lane.b32.xlu0 %v601, 127
        %v605 = vpop.permute.xlu0 %604
        %606 = vrot.lane.b32.xlu0 %v603, 127
        %v607 = vpop.permute.xlu0 %606
        %608 = vrot.lane.b32.xlu0 %v602, 127
        %v609 = vpop.permute.xlu0 %608
        %v613 = vadd.f32 %v517, %v605
        %v614 = vadd.f32 %v518, %v607
        %v615 = vadd.f32 %v519, %v609
        %s616 = sld [smem:[#allocation8 + $0x2]]
        %v617 = vstv %s616
        %v618 = vmul.f32 %v617, %v363
        %v619 = vmul.f32 %v617, %v364
        %vm622 = vcmask 1041408
        %v623 = vrot.slane %v618, 6
        %v624 = vrot.slane %v619, 6
        %v625 = vsel %vm622, %v623, %v624
        %626 = vrot.lane.b32.xlu0 %v623, 126
        %v627 = vpop.permute.xlu0 %626
        %628 = vrot.lane.b32.xlu0 %v625, 126
        %v629 = vpop.permute.xlu0 %628
        %630 = vrot.lane.b32.xlu0 %v624, 126
        %v631 = vpop.permute.xlu0 %630
        %v635 = vadd.f32 %v542, %v627
        %v636 = vadd.f32 %v543, %v629
        %v637 = vadd.f32 %v544, %v631
        %s638 = sld [smem:[#allocation8 + $0x9]]
        %v639 = vstv %s638
        %v640 = vmul.f32 %v639, %v363
        %v641 = vmul.f32 %v639, %v364
        %v642 = vmul.f32 %v639, %v365
        %v646 = vrot.slane %v640, 6
        %v647 = vrot.slane %v641, 6
        %v648 = vsel %vm622, %v646, %v647
        %v649 = vrot.slane %v642, 6
        %v650 = vsel %vm622, %v647, %v649
        %651 = vrot.lane.b32.xlu0 %v646, 126
        %v652 = vpop.permute.xlu0 %651
        %653 = vrot.lane.b32.xlu0 %v648, 126
        %v654 = vpop.permute.xlu0 %653
        %655 = vrot.lane.b32.xlu0 %v650, 126
        %v656 = vpop.permute.xlu0 %655
        %v660 = vadd.f32 %v567, %v652
        %v661 = vadd.f32 %v568, %v654
        %v662 = vadd.f32 %v569, %v656
        %s663 = sld [smem:[#allocation8 + $0x10]]
        %v664 = vstv %s663
        %v665 = vmul.f32 %v664, %v363
        %v666 = vmul.f32 %v664, %v364
        %v667 = vmul.f32 %v664, %v365
        %vm671 = vcmask 1045504
        %v672 = vrot.slane %v665, 2
        %v673 = vrot.slane %v666, 2
        %v674 = vsel %vm671, %v672, %v673
        %v675 = vrot.slane %v667, 2
        %v676 = vsel %vm671, %v673, %v675
        %677 = vrot.lane.b32.xlu0 %v674, 126
        %v678 = vpop.permute.xlu0 %677
        %679 = vrot.lane.b32.xlu0 %v676, 126
        %v680 = vpop.permute.xlu0 %679
        %v683 = vadd.f32 %v589, %v678
        %v684 = vadd.f32 %v590, %v680
        %s685 = sld [smem:[#allocation8 + $0x17]]
        %v686 = vstv %s685
        %v687 = vmul.f32 %v686, %v363
        %v688 = vmul.f32 %v686, %v364
        %v689 = vmul.f32 %v686, %v365
        %v693 = vrot.slane %v687, 2
        %v694 = vrot.slane %v688, 2
        %v695 = vsel %vm671, %v693, %v694
        %v696 = vrot.slane %v689, 2
        %v697 = vsel %vm671, %v694, %v696
        %698 = vrot.lane.b32.xlu0 %v695, 126
        %v699 = vpop.permute.xlu0 %698
        %700 = vrot.lane.b32.xlu0 %v697, 126
        %v701 = vpop.permute.xlu0 %700
        %702 = vrot.lane.b32.xlu0 %v696, 126
        %v703 = vpop.permute.xlu0 %702
        %v707 = vadd.f32 %v613, %v699
        %v708 = vadd.f32 %v614, %v701
        %v709 = vadd.f32 %v615, %v703
        %s710 = sld [smem:[#allocation8 + $0x1e]]
        %v711 = vstv %s710
        %v712 = vmul.f32 %v711, %v363
        %v713 = vmul.f32 %v711, %v364
        %v714 = vmul.f32 %v711, %v365
        %v718 = vrot.slane %v712, 2
        %v719 = vrot.slane %v713, 2
        %v720 = vsel %vm671, %v718, %v719
        %v721 = vrot.slane %v714, 2
        %v722 = vsel %vm671, %v719, %v721
        %723 = vrot.lane.b32.xlu0 %v720, 126
        %v724 = vpop.permute.xlu0 %723
        %725 = vrot.lane.b32.xlu0 %v722, 126
        %v726 = vpop.permute.xlu0 %725
        %727 = vrot.lane.b32.xlu0 %v721, 126
        %v728 = vpop.permute.xlu0 %727
        %v732 = vadd.f32 %v635, %v724
        %v733 = vadd.f32 %v636, %v726
        %v734 = vadd.f32 %v637, %v728
        %s735 = sld [smem:[#allocation8 + $0x25]]
        %v736 = vstv %s735
        %v737 = vmul.f32 %v736, %v363
        %v738 = vmul.f32 %v736, %v364
        %v739 = vmul.f32 %v736, %v365
        %v743 = vrot.slane %v737, 2
        %v744 = vrot.slane %v738, 2
        %v745 = vsel %vm671, %v743, %v744
        %v746 = vrot.slane %v739, 2
        %v747 = vsel %vm671, %v744, %v746
        %748 = vrot.lane.b32.xlu0 %v745, 126
        %v749 = vpop.permute.xlu0 %748
        %750 = vrot.lane.b32.xlu0 %v747, 126
        %v751 = vpop.permute.xlu0 %750
        %752 = vrot.lane.b32.xlu0 %v746, 126
        %v753 = vpop.permute.xlu0 %752
        %v757 = vadd.f32 %v660, %v749
        %v758 = vadd.f32 %v661, %v751
        %v759 = vadd.f32 %v662, %v753
        %s760 = sld [smem:[#allocation8 + $0x2c]]
        %v761 = vstv %s760
        %v762 = vmul.f32 %v761, %v363
        %v763 = vmul.f32 %v761, %v364
        %v764 = vmul.f32 %v761, %v365
        %v768 = vrot.slane %v762, 6
        %v769 = vrot.slane %v763, 6
        %v770 = vsel %vm622, %v768, %v769
        %v771 = vrot.slane %v764, 6
        %v772 = vsel %vm622, %v769, %v771
        %773 = vrot.lane.b32.xlu0 %v770, 126
        %v774 = vpop.permute.xlu0 %773
        %775 = vrot.lane.b32.xlu0 %v772, 126
        %v776 = vpop.permute.xlu0 %775
        %v779 = vadd.f32 %v683, %v774
        %v780 = vadd.f32 %v684, %v776
        %s781 = sld [smem:[#allocation8 + $0x3]]
        %v782 = vstv %s781
        %v783 = vmul.f32 %v782, %v363
        %v784 = vmul.f32 %v782, %v364
        %vm787 = vcmask 1040384
        %v788 = vrot.slane %v783, 7
        %v789 = vrot.slane %v784, 7
        %v790 = vsel %vm787, %v788, %v789
        %791 = vrot.lane.b32.xlu0 %v788, 125
        %v792 = vpop.permute.xlu0 %791
        %793 = vrot.lane.b32.xlu0 %v790, 125
        %v794 = vpop.permute.xlu0 %793
        %795 = vrot.lane.b32.xlu0 %v789, 125
        %v796 = vpop.permute.xlu0 %795
        %v800 = vadd.f32 %v707, %v792
        %v801 = vadd.f32 %v708, %v794
        %v802 = vadd.f32 %v709, %v796
        %s803 = sld [smem:[#allocation8 + $0xa]]
        %v804 = vstv %s803
        %v805 = vmul.f32 %v804, %v363
        %v806 = vmul.f32 %v804, %v364
        %v807 = vmul.f32 %v804, %v365
        %v811 = vrot.slane %v805, 7
        %v812 = vrot.slane %v806, 7
        %v813 = vsel %vm787, %v811, %v812
        %v814 = vrot.slane %v807, 7
        %v815 = vsel %vm787, %v812, %v814
        %816 = vrot.lane.b32.xlu0 %v811, 125
        %v817 = vpop.permute.xlu0 %816
        %818 = vrot.lane.b32.xlu0 %v813, 125
        %v819 = vpop.permute.xlu0 %818
        %820 = vrot.lane.b32.xlu0 %v815, 125
        %v821 = vpop.permute.xlu0 %820
        %v825 = vadd.f32 %v732, %v817
        %v826 = vadd.f32 %v733, %v819
        %v827 = vadd.f32 %v734, %v821
        %s828 = sld [smem:[#allocation8 + $0x11]]
        %v829 = vstv %s828
        %v830 = vmul.f32 %v829, %v363
        %v831 = vmul.f32 %v829, %v364
        %v832 = vmul.f32 %v829, %v365
        %v836 = vrot.slane %v830, 7
        %v837 = vrot.slane %v831, 7
        %v838 = vsel %vm787, %v836, %v837
        %v839 = vrot.slane %v832, 7
        %v840 = vsel %vm787, %v837, %v839
        %841 = vrot.lane.b32.xlu0 %v836, 125
        %v842 = vpop.permute.xlu0 %841
        %843 = vrot.lane.b32.xlu0 %v838, 125
        %v844 = vpop.permute.xlu0 %843
        %845 = vrot.lane.b32.xlu0 %v840, 125
        %v846 = vpop.permute.xlu0 %845
        %v850 = vadd.f32 %v757, %v842
        %v851 = vadd.f32 %v758, %v844
        %v852 = vadd.f32 %v759, %v846
        %s853 = sld [smem:[#allocation8 + $0x18]]
        %v854 = vstv %s853
        %v855 = vmul.f32 %v854, %v363
        %v856 = vmul.f32 %v854, %v364
        %v857 = vmul.f32 %v854, %v365
        %vm861 = vcmask 1044480
        %v862 = vrot.slane %v855, 3
        %v863 = vrot.slane %v856, 3
        %v864 = vsel %vm861, %v862, %v863
        %v865 = vrot.slane %v857, 3
        %v866 = vsel %vm861, %v863, %v865
        %867 = vrot.lane.b32.xlu0 %v864, 125
        %v868 = vpop.permute.xlu0 %867
        %869 = vrot.lane.b32.xlu0 %v866, 125
        %v870 = vpop.permute.xlu0 %869
        %v873 = vadd.f32 %v779, %v868
        %v874 = vadd.f32 %v780, %v870
        %s875 = sld [smem:[#allocation8 + $0x1f]]
        %v876 = vstv %s875
        %v877 = vmul.f32 %v876, %v363
        %v878 = vmul.f32 %v876, %v364
        %v879 = vmul.f32 %v876, %v365
        %v883 = vrot.slane %v877, 3
        %v884 = vrot.slane %v878, 3
        %v885 = vsel %vm861, %v883, %v884
        %v886 = vrot.slane %v879, 3
        %v887 = vsel %vm861, %v884, %v886
        %888 = vrot.lane.b32.xlu0 %v885, 125
        %v889 = vpop.permute.xlu0 %888
        %890 = vrot.lane.b32.xlu0 %v887, 125
        %v891 = vpop.permute.xlu0 %890
        %892 = vrot.lane.b32.xlu0 %v886, 125
        %v893 = vpop.permute.xlu0 %892
        %v897 = vadd.f32 %v800, %v889
        %v898 = vadd.f32 %v801, %v891
        %v899 = vadd.f32 %v802, %v893
        %s900 = sld [smem:[#allocation8 + $0x26]]
        %v901 = vstv %s900
        %v902 = vmul.f32 %v901, %v363
        %v903 = vmul.f32 %v901, %v364
        %v904 = vmul.f32 %v901, %v365
        %v908 = vrot.slane %v902, 3
        %v909 = vrot.slane %v903, 3
        %v910 = vsel %vm861, %v908, %v909
        %v911 = vrot.slane %v904, 3
        %v912 = vsel %vm861, %v909, %v911
        %913 = vrot.lane.b32.xlu0 %v910, 125
        %v914 = vpop.permute.xlu0 %913
        %915 = vrot.lane.b32.xlu0 %v912, 125
        %v916 = vpop.permute.xlu0 %915
        %917 = vrot.lane.b32.xlu0 %v911, 125
        %v918 = vpop.permute.xlu0 %917
        %v922 = vadd.f32 %v825, %v914
        %v923 = vadd.f32 %v826, %v916
        %v924 = vadd.f32 %v827, %v918
        %s925 = sld [smem:[#allocation8 + $0x2d]]
        %v926 = vstv %s925
        %v927 = vmul.f32 %v926, %v363
        %v928 = vmul.f32 %v926, %v364
        %v929 = vmul.f32 %v926, %v365
        %v933 = vrot.slane %v927, 3
        %v934 = vrot.slane %v928, 3
        %v935 = vsel %vm861, %v933, %v934
        %v936 = vrot.slane %v929, 3
        %v937 = vsel %vm861, %v934, %v936
        %938 = vrot.lane.b32.xlu0 %v935, 125
        %v939 = vpop.permute.xlu0 %938
        %940 = vrot.lane.b32.xlu0 %v937, 125
        %v941 = vpop.permute.xlu0 %940
        %942 = vrot.lane.b32.xlu0 %v936, 125
        %v943 = vpop.permute.xlu0 %942
        %v947 = vadd.f32 %v850, %v939
        %v948 = vadd.f32 %v851, %v941
        %v949 = vadd.f32 %v852, %v943
        %s950 = sld [smem:[#allocation8 + $0x4]]
        %v951 = vstv %s950
        %v952 = vmul.f32 %v951, %v363
        %v953 = vmul.f32 %v951, %v364
        %956 = vrot.lane.b32.xlu0 %v952, 124
        %v957 = vpop.permute.xlu0 %956
        %958 = vrot.lane.b32.xlu0 %v953, 124
        %v959 = vpop.permute.xlu0 %958
        %v962 = vadd.f32 %v873, %v957
        %v963 = vadd.f32 %v874, %v959
        %s964 = sld [smem:[#allocation8 + $0xb]]
        %v965 = vstv %s964
        %v966 = vmul.f32 %v965, %v363
        %v967 = vmul.f32 %v965, %v364
        %v968 = vmul.f32 %v965, %v365
        %972 = vrot.lane.b32.xlu0 %v966, 124
        %v973 = vpop.permute.xlu0 %972
        %974 = vrot.lane.b32.xlu0 %v967, 124
        %v975 = vpop.permute.xlu0 %974
        %976 = vrot.lane.b32.xlu0 %v968, 124
        %v977 = vpop.permute.xlu0 %976
        %v981 = vadd.f32 %v897, %v973
        %v982 = vadd.f32 %v898, %v975
        %v983 = vadd.f32 %v899, %v977
        %s984 = sld [smem:[#allocation8 + $0x12]]
        %v985 = vstv %s984
        %v986 = vmul.f32 %v985, %v363
        %v987 = vmul.f32 %v985, %v364
        %v988 = vmul.f32 %v985, %v365
        %992 = vrot.lane.b32.xlu0 %v986, 124
        %v993 = vpop.permute.xlu0 %992
        %994 = vrot.lane.b32.xlu0 %v987, 124
        %v995 = vpop.permute.xlu0 %994
        %996 = vrot.lane.b32.xlu0 %v988, 124
        %v997 = vpop.permute.xlu0 %996
        %v1001 = vadd.f32 %v922, %v993
        %v1002 = vadd.f32 %v923, %v995
        %v1003 = vadd.f32 %v924, %v997
        %s1004 = sld [smem:[#allocation8 + $0x19]]
        %v1005 = vstv %s1004
        %v1006 = vmul.f32 %v1005, %v363
        %v1007 = vmul.f32 %v1005, %v364
        %v1008 = vmul.f32 %v1005, %v365
        %1012 = vrot.lane.b32.xlu0 %v1006, 124
        %v1013 = vpop.permute.xlu0 %1012
        %1014 = vrot.lane.b32.xlu0 %v1007, 124
        %v1015 = vpop.permute.xlu0 %1014
        %1016 = vrot.lane.b32.xlu0 %v1008, 124
        %v1017 = vpop.permute.xlu0 %1016
        %v1021 = vadd.f32 %v947, %v1013
        %v1022 = vadd.f32 %v948, %v1015
        %v1023 = vadd.f32 %v949, %v1017
        %s1024 = sld [smem:[#allocation8 + $0x20]]
        %v1025 = vstv %s1024
        %v1026 = vmul.f32 %v1025, %v363
        %v1027 = vmul.f32 %v1025, %v364
        %v1028 = vmul.f32 %v1025, %v365
        %v1032 = vrot.slane %v1026, 4
        %v1033 = vrot.slane %v1027, 4
        %v1034 = vsel %vm183, %v1032, %v1033
        %v1035 = vrot.slane %v1028, 4
        %v1036 = vsel %vm183, %v1033, %v1035
        %1037 = vrot.lane.b32.xlu0 %v1034, 124
        %v1038 = vpop.permute.xlu0 %1037
        %1039 = vrot.lane.b32.xlu0 %v1036, 124
        %v1040 = vpop.permute.xlu0 %1039
        %v1043 = vadd.f32 %v962, %v1038
        %v1044 = vadd.f32 %v963, %v1040
        %s1045 = sld [smem:[#allocation8 + $0x27]]
        %v1046 = vstv %s1045
        %v1047 = vmul.f32 %v1046, %v363
        %v1048 = vmul.f32 %v1046, %v364
        %v1049 = vmul.f32 %v1046, %v365
        %v1053 = vrot.slane %v1047, 4
        %v1054 = vrot.slane %v1048, 4
        %v1055 = vsel %vm183, %v1053, %v1054
        %v1056 = vrot.slane %v1049, 4
        %v1057 = vsel %vm183, %v1054, %v1056
        %1058 = vrot.lane.b32.xlu0 %v1055, 124
        %v1059 = vpop.permute.xlu0 %1058
        %1060 = vrot.lane.b32.xlu0 %v1057, 124
        %v1061 = vpop.permute.xlu0 %1060
        %1062 = vrot.lane.b32.xlu0 %v1056, 124
        %v1063 = vpop.permute.xlu0 %1062
        %v1067 = vadd.f32 %v981, %v1059
        %v1068 = vadd.f32 %v982, %v1061
        %v1069 = vadd.f32 %v983, %v1063
        %s1070 = sld [smem:[#allocation8 + $0x2e]]
        %v1071 = vstv %s1070
        %v1072 = vmul.f32 %v1071, %v363
        %v1073 = vmul.f32 %v1071, %v364
        %v1074 = vmul.f32 %v1071, %v365
        %v1078 = vrot.slane %v1072, 4
        %v1079 = vrot.slane %v1073, 4
        %v1080 = vsel %vm183, %v1078, %v1079
        %v1081 = vrot.slane %v1074, 4
        %v1082 = vsel %vm183, %v1079, %v1081
        %1083 = vrot.lane.b32.xlu0 %v1080, 124
        %v1084 = vpop.permute.xlu0 %1083
        %1085 = vrot.lane.b32.xlu0 %v1082, 124
        %v1086 = vpop.permute.xlu0 %1085
        %1087 = vrot.lane.b32.xlu0 %v1081, 124
        %v1088 = vpop.permute.xlu0 %1087
        %v1092 = vadd.f32 %v1001, %v1084
        %v1093 = vadd.f32 %v1002, %v1086
        %v1094 = vadd.f32 %v1003, %v1088
        %s1095 = sld [smem:[#allocation8 + $0x5]]
        %v1096 = vstv %s1095
        %v1097 = vmul.f32 %v1096, %v363
        %v1098 = vmul.f32 %v1096, %v364
        %v1101 = vrot.slane %v1097, 5
        %v1102 = vrot.slane %v1098, 5
        %v1103 = vsel %vm457, %v1101, %v1102
        %1104 = vrot.lane.b32.xlu0 %v1101, 123
        %v1105 = vpop.permute.xlu0 %1104
        %1106 = vrot.lane.b32.xlu0 %v1103, 123
        %v1107 = vpop.permute.xlu0 %1106
        %1108 = vrot.lane.b32.xlu0 %v1102, 123
        %v1109 = vpop.permute.xlu0 %1108
        %v1113 = vadd.f32 %v1021, %v1105
        %v1114 = vadd.f32 %v1022, %v1107
        %v1115 = vadd.f32 %v1023, %v1109
        %s1116 = sld [smem:[#allocation8 + $0xc]]
        %v1117 = vstv %s1116
        %v1118 = vmul.f32 %v1117, %v363
        %v1119 = vmul.f32 %v1117, %v364
        %v1120 = vmul.f32 %v1117, %v365
        %v1124 = vrot.slane %v1118, 1
        %v1125 = vrot.slane %v1119, 1
        %v1126 = vsel %vm481, %v1124, %v1125
        %v1127 = vrot.slane %v1120, 1
        %v1128 = vsel %vm481, %v1125, %v1127
        %1129 = vrot.lane.b32.xlu0 %v1126, 123
        %v1130 = vpop.permute.xlu0 %1129
        %1131 = vrot.lane.b32.xlu0 %v1128, 123
        %v1132 = vpop.permute.xlu0 %1131
        %v1135 = vadd.f32 %v1043, %v1130
        %v1136 = vadd.f32 %v1044, %v1132
        %s1137 = sld [smem:[#allocation8 + $0x13]]
        %v1138 = vstv %s1137
        %v1139 = vmul.f32 %v1138, %v363
        %v1140 = vmul.f32 %v1138, %v364
        %v1141 = vmul.f32 %v1138, %v365
        %v1145 = vrot.slane %v1139, 1
        %v1146 = vrot.slane %v1140, 1
        %v1147 = vsel %vm481, %v1145, %v1146
        %v1148 = vrot.slane %v1141, 1
        %v1149 = vsel %vm481, %v1146, %v1148
        %1150 = vrot.lane.b32.xlu0 %v1147, 123
        %v1151 = vpop.permute.xlu0 %1150
        %1152 = vrot.lane.b32.xlu0 %v1149, 123
        %v1153 = vpop.permute.xlu0 %1152
        %1154 = vrot.lane.b32.xlu0 %v1148, 123
        %v1155 = vpop.permute.xlu0 %1154
        %v1159 = vadd.f32 %v1067, %v1151
        %v1160 = vadd.f32 %v1068, %v1153
        %v1161 = vadd.f32 %v1069, %v1155
        %s1162 = sld [smem:[#allocation8 + $0x1a]]
        %v1163 = vstv %s1162
        %v1164 = vmul.f32 %v1163, %v363
        %v1165 = vmul.f32 %v1163, %v364
        %v1166 = vmul.f32 %v1163, %v365
        %v1170 = vrot.slane %v1164, 1
        %v1171 = vrot.slane %v1165, 1
        %v1172 = vsel %vm481, %v1170, %v1171
        %v1173 = vrot.slane %v1166, 1
        %v1174 = vsel %vm481, %v1171, %v1173
        %1175 = vrot.lane.b32.xlu0 %v1172, 123
        %v1176 = vpop.permute.xlu0 %1175
        %1177 = vrot.lane.b32.xlu0 %v1174, 123
        %v1178 = vpop.permute.xlu0 %1177
        %1179 = vrot.lane.b32.xlu0 %v1173, 123
        %v1180 = vpop.permute.xlu0 %1179
        %v1184 = vadd.f32 %v1092, %v1176
        %v1185 = vadd.f32 %v1093, %v1178
        %v1186 = vadd.f32 %v1094, %v1180
        %s1187 = sld [smem:[#allocation8 + $0x21]]
        %v1188 = vstv %s1187
        %v1189 = vmul.f32 %v1188, %v363
        %v1190 = vmul.f32 %v1188, %v364
        %v1191 = vmul.f32 %v1188, %v365
        %v1195 = vrot.slane %v1189, 1
        %v1196 = vrot.slane %v1190, 1
        %v1197 = vsel %vm481, %v1195, %v1196
        %v1198 = vrot.slane %v1191, 1
        %v1199 = vsel %vm481, %v1196, %v1198
        %1200 = vrot.lane.b32.xlu0 %v1197, 123
        %v1201 = vpop.permute.xlu0 %1200
        %1202 = vrot.lane.b32.xlu0 %v1199, 123
        %v1203 = vpop.permute.xlu0 %1202
        %1204 = vrot.lane.b32.xlu0 %v1198, 123
        %v1205 = vpop.permute.xlu0 %1204
        %v1209 = vadd.f32 %v1113, %v1201
        %v1210 = vadd.f32 %v1114, %v1203
        %v1211 = vadd.f32 %v1115, %v1205
        %s1212 = sld [smem:[#allocation8 + $0x28]]
        %v1213 = vstv %s1212
        %v1214 = vmul.f32 %v1213, %v363
        %v1215 = vmul.f32 %v1213, %v364
        %v1216 = vmul.f32 %v1213, %v365
        %v1220 = vrot.slane %v1214, 5
        %v1221 = vrot.slane %v1215, 5
        %v1222 = vsel %vm457, %v1220, %v1221
        %v1223 = vrot.slane %v1216, 5
        %v1224 = vsel %vm457, %v1221, %v1223
        %1225 = vrot.lane.b32.xlu0 %v1222, 123
        %v1226 = vpop.permute.xlu0 %1225
        %1227 = vrot.lane.b32.xlu0 %v1224, 123
        %v1228 = vpop.permute.xlu0 %1227
        %v1231 = vadd.f32 %v1135, %v1226
        %v1232 = vadd.f32 %v1136, %v1228
        %s1233 = sld [smem:[#allocation8 + $0x2f]]
        %v1234 = vstv %s1233
        %v1235 = vmul.f32 %v1234, %v363
        %v1236 = vmul.f32 %v1234, %v364
        %v1237 = vmul.f32 %v1234, %v365
        %v1241 = vrot.slane %v1235, 5
        %v1242 = vrot.slane %v1236, 5
        %v1243 = vsel %vm457, %v1241, %v1242
        %v1244 = vrot.slane %v1237, 5
        %v1245 = vsel %vm457, %v1242, %v1244
        %1246 = vrot.lane.b32.xlu0 %v1243, 123
        %v1247 = vpop.permute.xlu0 %1246
        %1248 = vrot.lane.b32.xlu0 %v1245, 123
        %v1249 = vpop.permute.xlu0 %1248
        %1250 = vrot.lane.b32.xlu0 %v1244, 123
        %v1251 = vpop.permute.xlu0 %1250
        %v1255 = vadd.f32 %v1159, %v1247
        %v1256 = vadd.f32 %v1160, %v1249
        %v1257 = vadd.f32 %v1161, %v1251
        %s1258 = sld [smem:[#allocation8 + $0x6]]
        %v1259 = vstv %s1258
        %v1260 = vmul.f32 %v1259, %v363
        %v1261 = vmul.f32 %v1259, %v364
        %v1264 = vrot.slane %v1260, 6
        %v1265 = vrot.slane %v1261, 6
        %v1266 = vsel %vm622, %v1264, %v1265
        %1267 = vrot.lane.b32.xlu0 %v1264, 122
        %v1268 = vpop.permute.xlu0 %1267
        %1269 = vrot.lane.b32.xlu0 %v1266, 122
        %v1270 = vpop.permute.xlu0 %1269
        %1271 = vrot.lane.b32.xlu0 %v1265, 122
        %v1272 = vpop.permute.xlu0 %1271
        %v1276 = vadd.f32 %v1184, %v1268
        %v1277 = vadd.f32 %v1185, %v1270
        %v1278 = vadd.f32 %v1186, %v1272
        %s1279 = sld [smem:[#allocation8 + $0xd]]
        %v1280 = vstv %s1279
        %v1281 = vmul.f32 %v1280, %v363
        %v1282 = vmul.f32 %v1280, %v364
        %v1283 = vmul.f32 %v1280, %v365
        %v1287 = vrot.slane %v1281, 6
        %v1288 = vrot.slane %v1282, 6
        %v1289 = vsel %vm622, %v1287, %v1288
        %v1290 = vrot.slane %v1283, 6
        %v1291 = vsel %vm622, %v1288, %v1290
        %1292 = vrot.lane.b32.xlu0 %v1287, 122
        %v1293 = vpop.permute.xlu0 %1292
        %1294 = vrot.lane.b32.xlu0 %v1289, 122
        %v1295 = vpop.permute.xlu0 %1294
        %1296 = vrot.lane.b32.xlu0 %v1291, 122
        %v1297 = vpop.permute.xlu0 %1296
        %v1301 = vadd.f32 %v1209, %v1293
        %v1302 = vadd.f32 %v1210, %v1295
        %v1303 = vadd.f32 %v1211, %v1297
        %s1304 = sld [smem:[#allocation8 + $0x14]]
        %v1305 = vstv %s1304
        %v1306 = vmul.f32 %v1305, %v363
        %v1307 = vmul.f32 %v1305, %v364
        %v1308 = vmul.f32 %v1305, %v365
        %v1312 = vrot.slane %v1306, 2
        %v1313 = vrot.slane %v1307, 2
        %v1314 = vsel %vm671, %v1312, %v1313
        %v1315 = vrot.slane %v1308, 2
        %v1316 = vsel %vm671, %v1313, %v1315
        %1317 = vrot.lane.b32.xlu0 %v1314, 122
        %v1318 = vpop.permute.xlu0 %1317
        %1319 = vrot.lane.b32.xlu0 %v1316, 122
        %v1320 = vpop.permute.xlu0 %1319
        %v1323 = vadd.f32 %v1231, %v1318
        %v1324 = vadd.f32 %v1232, %v1320
        %s1325 = sld [smem:[#allocation8 + $0x1b]]
        %v1326 = vstv %s1325
        %v1327 = vmul.f32 %v1326, %v363
        %v1328 = vmul.f32 %v1326, %v364
        %v1329 = vmul.f32 %v1326, %v365
        %v1333 = vrot.slane %v1327, 2
        %v1334 = vrot.slane %v1328, 2
        %v1335 = vsel %vm671, %v1333, %v1334
        %v1336 = vrot.slane %v1329, 2
        %v1337 = vsel %vm671, %v1334, %v1336
        %1338 = vrot.lane.b32.xlu0 %v1335, 122
        %v1339 = vpop.permute.xlu0 %1338
        %1340 = vrot.lane.b32.xlu0 %v1337, 122
        %v1341 = vpop.permute.xlu0 %1340
        %1342 = vrot.lane.b32.xlu0 %v1336, 122
        %v1343 = vpop.permute.xlu0 %1342
        %v1347 = vadd.f32 %v1255, %v1339
        %v1348 = vadd.f32 %v1256, %v1341
        %v1349 = vadd.f32 %v1257, %v1343
        %s1350 = sld [smem:[#allocation8 + $0x22]]
        %v1351 = vstv %s1350
        %v1352 = vmul.f32 %v1351, %v363
        %v1353 = vmul.f32 %v1351, %v364
        %v1354 = vmul.f32 %v1351, %v365
        %v1358 = vrot.slane %v1352, 2
        %v1359 = vrot.slane %v1353, 2
        %v1360 = vsel %vm671, %v1358, %v1359
        %v1361 = vrot.slane %v1354, 2
        %v1362 = vsel %vm671, %v1359, %v1361
        %1363 = vrot.lane.b32.xlu0 %v1360, 122
        %v1364 = vpop.permute.xlu0 %1363
        %1365 = vrot.lane.b32.xlu0 %v1362, 122
        %v1366 = vpop.permute.xlu0 %1365
        %1367 = vrot.lane.b32.xlu0 %v1361, 122
        %v1368 = vpop.permute.xlu0 %1367
        %v1372 = vadd.f32 %v1276, %v1364
        %v1373 = vadd.f32 %v1277, %v1366
        %v1374 = vadd.f32 %v1278, %v1368
        %s1375 = sld [smem:[#allocation8 + $0x29]]
        %v1376 = vstv %s1375
        %v1377 = vmul.f32 %v1376, %v363
        %v1378 = vmul.f32 %v1376, %v364
        %v1379 = vmul.f32 %v1376, %v365
        %v1383 = vrot.slane %v1377, 2
        %v1384 = vrot.slane %v1378, 2
        %v1385 = vsel %vm671, %v1383, %v1384
        %v1386 = vrot.slane %v1379, 2
        %v1387 = vsel %vm671, %v1384, %v1386
        %1388 = vrot.lane.b32.xlu0 %v1385, 122
        %v1389 = vpop.permute.xlu0 %1388
        %1390 = vrot.lane.b32.xlu0 %v1387, 122
        %v1391 = vpop.permute.xlu0 %1390
        %1392 = vrot.lane.b32.xlu0 %v1386, 122
        %v1393 = vpop.permute.xlu0 %1392
        %v1397 = vadd.f32 %v1301, %v1389
        %v1398 = vadd.f32 %v1302, %v1391
        %v1399 = vadd.f32 %v1303, %v1393
        %s1400 = sld [smem:[#allocation8 + $0x30]]
        %v1401 = vstv %s1400
        %v1402 = vmul.f32 %v1401, %v363
        %v1403 = vmul.f32 %v1401, %v364
        %v1404 = vmul.f32 %v1401, %v365
        %v1408 = vrot.slane %v1402, 6
        %v1409 = vrot.slane %v1403, 6
        %v1410 = vsel %vm622, %v1408, %v1409
        %v1411 = vrot.slane %v1404, 6
        %v1412 = vsel %vm622, %v1409, %v1411
        %1413 = vrot.lane.b32.xlu0 %v1410, 122
        %v1414 = vpop.permute.xlu0 %1413
        %1415 = vrot.lane.b32.xlu0 %v1412, 122
        %v1416 = vpop.permute.xlu0 %1415
        %v1419 = vadd.f32 %v1323, %v1414
        %v1420 = vadd.f32 %v1324, %v1416
        %v1421 = vld [vmem:[%s239] sm:$0xff]
        %v1422 = vld [vmem:[%s239 + $0x8] sm:$0xff]
        %v1423 = vld [vmem:[%s239 + $0x10] sm:$0x3f]
        %s1424 = sld [smem:[#allocation8 + $0x31]]
        %v1425 = vstv %s1424
        %v1426 = vmul.f32 %v1425, %v1421
        %v1427 = vmul.f32 %v1425, %v1422
        %v1430 = vrot.slane %v1426, 7
        %v1431 = vrot.slane %v1427, 7
        %v1432 = vsel %vm787, %v1430, %v1431
        %v1436 = vadd.f32 %v1347, %v1430
        %v1437 = vadd.f32 %v1348, %v1432
        %v1438 = vadd.f32 %v1349, %v1431
        %s1439 = sld [smem:[#allocation8 + $0x38]]
        %v1440 = vstv %s1439
        %v1441 = vmul.f32 %v1440, %v1421
        %v1442 = vmul.f32 %v1440, %v1422
        %v1443 = vmul.f32 %v1440, %v1423
        %v1447 = vrot.slane %v1441, 7
        %v1448 = vrot.slane %v1442, 7
        %v1449 = vsel %vm787, %v1447, %v1448
        %v1450 = vrot.slane %v1443, 7
        %v1451 = vsel %vm787, %v1448, %v1450
        %v1455 = vadd.f32 %v1372, %v1447
        %v1456 = vadd.f32 %v1373, %v1449
        %v1457 = vadd.f32 %v1374, %v1451
        %s1458 = sld [smem:[#allocation8 + $0x3f]]
        %v1459 = vstv %s1458
        %v1460 = vmul.f32 %v1459, %v1421
        %v1461 = vmul.f32 %v1459, %v1422
        %v1462 = vmul.f32 %v1459, %v1423
        %v1466 = vrot.slane %v1460, 7
        %v1467 = vrot.slane %v1461, 7
        %v1468 = vsel %vm787, %v1466, %v1467
        %v1469 = vrot.slane %v1462, 7
        %v1470 = vsel %vm787, %v1467, %v1469
        %v1474 = vadd.f32 %v1397, %v1466
        %v1475 = vadd.f32 %v1398, %v1468
        %v1476 = vadd.f32 %v1399, %v1470
        %s1477 = sld [smem:[#allocation8 + $0x46]]
        %v1478 = vstv %s1477
        %v1479 = vmul.f32 %v1478, %v1421
        %v1480 = vmul.f32 %v1478, %v1422
        %v1481 = vmul.f32 %v1478, %v1423
        %v1485 = vrot.slane %v1479, 3
        %v1486 = vrot.slane %v1480, 3
        %v1487 = vsel %vm861, %v1485, %v1486
        %v1488 = vrot.slane %v1481, 3
        %v1489 = vsel %vm861, %v1486, %v1488
        %v1492 = vadd.f32 %v1419, %v1487
        %v1493 = vadd.f32 %v1420, %v1489
        %s1494 = sld [smem:[#allocation8 + $0x4d]]
        %v1495 = vstv %s1494
        %v1496 = vmul.f32 %v1495, %v1421
        %v1497 = vmul.f32 %v1495, %v1422
        %v1498 = vmul.f32 %v1495, %v1423
        %v1502 = vrot.slane %v1496, 3
        %v1503 = vrot.slane %v1497, 3
        %v1504 = vsel %vm861, %v1502, %v1503
        %v1505 = vrot.slane %v1498, 3
        %v1506 = vsel %vm861, %v1503, %v1505
        %v1510 = vadd.f32 %v1436, %v1504
        %v1511 = vadd.f32 %v1437, %v1506
        %v1512 = vadd.f32 %v1438, %v1505
        %s1513 = sld [smem:[#allocation8 + $0x54]]
        %v1514 = vstv %s1513
        %v1515 = vmul.f32 %v1514, %v1421
        %v1516 = vmul.f32 %v1514, %v1422
        %v1517 = vmul.f32 %v1514, %v1423
        %v1521 = vrot.slane %v1515, 3
        %v1522 = vrot.slane %v1516, 3
        %v1523 = vsel %vm861, %v1521, %v1522
        %v1524 = vrot.slane %v1517, 3
        %v1525 = vsel %vm861, %v1522, %v1524
        %v1529 = vadd.f32 %v1455, %v1523
        %v1530 = vadd.f32 %v1456, %v1525
        %v1531 = vadd.f32 %v1457, %v1524
        %s1532 = sld [smem:[#allocation8 + $0x5b]]
        %v1533 = vstv %s1532
        %v1534 = vmul.f32 %v1533, %v1421
        %v1535 = vmul.f32 %v1533, %v1422
        %v1536 = vmul.f32 %v1533, %v1423
        %v1540 = vrot.slane %v1534, 3
        %v1541 = vrot.slane %v1535, 3
        %v1542 = vsel %vm861, %v1540, %v1541
        %v1543 = vrot.slane %v1536, 3
        %v1544 = vsel %vm861, %v1541, %v1543
        %v1548 = vadd.f32 %v1474, %v1542
        %v1549 = vadd.f32 %v1475, %v1544
        %v1550 = vadd.f32 %v1476, %v1543
        %s1551 = sld [smem:[#allocation8 + $0x32]]
        %v1552 = vstv %s1551
        %v1553 = vmul.f32 %v1552, %v1421
        %v1554 = vmul.f32 %v1552, %v1422
        %1557 = vrot.lane.b32.xlu0 %v1553, 127
        %v1558 = vpop.permute.xlu0 %1557
        %1559 = vrot.lane.b32.xlu0 %v1554, 127
        %v1560 = vpop.permute.xlu0 %1559
        %v1563 = vadd.f32 %v1492, %v1558
        %v1564 = vadd.f32 %v1493, %v1560
        %s1565 = sld [smem:[#allocation8 + $0x39]]
        %v1566 = vstv %s1565
        %v1567 = vmul.f32 %v1566, %v1421
        %v1568 = vmul.f32 %v1566, %v1422
        %v1569 = vmul.f32 %v1566, %v1423
        %1573 = vrot.lane.b32.xlu0 %v1567, 127
        %v1574 = vpop.permute.xlu0 %1573
        %1575 = vrot.lane.b32.xlu0 %v1568, 127
        %v1576 = vpop.permute.xlu0 %1575
        %1577 = vrot.lane.b32.xlu0 %v1569, 127
        %v1578 = vpop.permute.xlu0 %1577
        %v1582 = vadd.f32 %v1510, %v1574
        %v1583 = vadd.f32 %v1511, %v1576
        %v1584 = vadd.f32 %v1512, %v1578
        %s1585 = sld [smem:[#allocation8 + $0x40]]
        %v1586 = vstv %s1585
        %v1587 = vmul.f32 %v1586, %v1421
        %v1588 = vmul.f32 %v1586, %v1422
        %v1589 = vmul.f32 %v1586, %v1423
        %1593 = vrot.lane.b32.xlu0 %v1587, 127
        %v1594 = vpop.permute.xlu0 %1593
        %1595 = vrot.lane.b32.xlu0 %v1588, 127
        %v1596 = vpop.permute.xlu0 %1595
        %1597 = vrot.lane.b32.xlu0 %v1589, 127
        %v1598 = vpop.permute.xlu0 %1597
        %v1602 = vadd.f32 %v1529, %v1594
        %v1603 = vadd.f32 %v1530, %v1596
        %v1604 = vadd.f32 %v1531, %v1598
        %s1605 = sld [smem:[#allocation8 + $0x47]]
        %v1606 = vstv %s1605
        %v1607 = vmul.f32 %v1606, %v1421
        %v1608 = vmul.f32 %v1606, %v1422
        %v1609 = vmul.f32 %v1606, %v1423
        %1613 = vrot.lane.b32.xlu0 %v1607, 127
        %v1614 = vpop.permute.xlu0 %1613
        %1615 = vrot.lane.b32.xlu0 %v1608, 127
        %v1616 = vpop.permute.xlu0 %1615
        %1617 = vrot.lane.b32.xlu0 %v1609, 127
        %v1618 = vpop.permute.xlu0 %1617
        %v1622 = vadd.f32 %v1548, %v1614
        %v1623 = vadd.f32 %v1549, %v1616
        %v1624 = vadd.f32 %v1550, %v1618
        %s1625 = sld [smem:[#allocation8 + $0x4e]]
        %v1626 = vstv %s1625
        %v1627 = vmul.f32 %v1626, %v1421
        %v1628 = vmul.f32 %v1626, %v1422
        %v1629 = vmul.f32 %v1626, %v1423
        %v1633 = vrot.slane %v1627, 4
        %v1634 = vrot.slane %v1628, 4
        %v1635 = vsel %vm183, %v1633, %v1634
        %v1636 = vrot.slane %v1629, 4
        %v1637 = vsel %vm183, %v1634, %v1636
        %1638 = vrot.lane.b32.xlu0 %v1635, 127
        %v1639 = vpop.permute.xlu0 %1638
        %1640 = vrot.lane.b32.xlu0 %v1637, 127
        %v1641 = vpop.permute.xlu0 %1640
        %v1644 = vadd.f32 %v1563, %v1639
        %v1645 = vadd.f32 %v1564, %v1641
        %s1646 = sld [smem:[#allocation8 + $0x55]]
        %v1647 = vstv %s1646
        %v1648 = vmul.f32 %v1647, %v1421
        %v1649 = vmul.f32 %v1647, %v1422
        %v1650 = vmul.f32 %v1647, %v1423
        %v1654 = vrot.slane %v1648, 4
        %v1655 = vrot.slane %v1649, 4
        %v1656 = vsel %vm183, %v1654, %v1655
        %v1657 = vrot.slane %v1650, 4
        %v1658 = vsel %vm183, %v1655, %v1657
        %1659 = vrot.lane.b32.xlu0 %v1656, 127
        %v1660 = vpop.permute.xlu0 %1659
        %1661 = vrot.lane.b32.xlu0 %v1658, 127
        %v1662 = vpop.permute.xlu0 %1661
        %1663 = vrot.lane.b32.xlu0 %v1657, 127
        %v1664 = vpop.permute.xlu0 %1663
        %v1668 = vadd.f32 %v1582, %v1660
        %v1669 = vadd.f32 %v1583, %v1662
        %v1670 = vadd.f32 %v1584, %v1664
        %s1671 = sld [smem:[#allocation8 + $0x5c]]
        %v1672 = vstv %s1671
        %v1673 = vmul.f32 %v1672, %v1421
        %v1674 = vmul.f32 %v1672, %v1422
        %v1675 = vmul.f32 %v1672, %v1423
        %v1679 = vrot.slane %v1673, 4
        %v1680 = vrot.slane %v1674, 4
        %v1681 = vsel %vm183, %v1679, %v1680
        %v1682 = vrot.slane %v1675, 4
        %v1683 = vsel %vm183, %v1680, %v1682
        %1684 = vrot.lane.b32.xlu0 %v1681, 127
        %v1685 = vpop.permute.xlu0 %1684
        %1686 = vrot.lane.b32.xlu0 %v1683, 127
        %v1687 = vpop.permute.xlu0 %1686
        %1688 = vrot.lane.b32.xlu0 %v1682, 127
        %v1689 = vpop.permute.xlu0 %1688
        %v1693 = vadd.f32 %v1602, %v1685
        %v1694 = vadd.f32 %v1603, %v1687
        %v1695 = vadd.f32 %v1604, %v1689
        %s1696 = sld [smem:[#allocation8 + $0x33]]
        %v1697 = vstv %s1696
        %v1698 = vmul.f32 %v1697, %v1421
        %v1699 = vmul.f32 %v1697, %v1422
        %v1702 = vrot.slane %v1698, 5
        %v1703 = vrot.slane %v1699, 5
        %v1704 = vsel %vm457, %v1702, %v1703
        %1705 = vrot.lane.b32.xlu0 %v1702, 126
        %v1706 = vpop.permute.xlu0 %1705
        %1707 = vrot.lane.b32.xlu0 %v1704, 126
        %v1708 = vpop.permute.xlu0 %1707
        %1709 = vrot.lane.b32.xlu0 %v1703, 126
        %v1710 = vpop.permute.xlu0 %1709
        %v1714 = vadd.f32 %v1622, %v1706
        %v1715 = vadd.f32 %v1623, %v1708
        %v1716 = vadd.f32 %v1624, %v1710
        %s1717 = sld [smem:[#allocation8 + $0x3a]]
        %v1718 = vstv %s1717
        %v1719 = vmul.f32 %v1718, %v1421
        %v1720 = vmul.f32 %v1718, %v1422
        %v1721 = vmul.f32 %v1718, %v1423
        %v1725 = vrot.slane %v1719, 1
        %v1726 = vrot.slane %v1720, 1
        %v1727 = vsel %vm481, %v1725, %v1726
        %v1728 = vrot.slane %v1721, 1
        %v1729 = vsel %vm481, %v1726, %v1728
        %1730 = vrot.lane.b32.xlu0 %v1727, 126
        %v1731 = vpop.permute.xlu0 %1730
        %1732 = vrot.lane.b32.xlu0 %v1729, 126
        %v1733 = vpop.permute.xlu0 %1732
        %v1736 = vadd.f32 %v1644, %v1731
        %v1737 = vadd.f32 %v1645, %v1733
        %s1738 = sld [smem:[#allocation8 + $0x41]]
        %v1739 = vstv %s1738
        %v1740 = vmul.f32 %v1739, %v1421
        %v1741 = vmul.f32 %v1739, %v1422
        %v1742 = vmul.f32 %v1739, %v1423
        %v1746 = vrot.slane %v1740, 1
        %v1747 = vrot.slane %v1741, 1
        %v1748 = vsel %vm481, %v1746, %v1747
        %v1749 = vrot.slane %v1742, 1
        %v1750 = vsel %vm481, %v1747, %v1749
        %1751 = vrot.lane.b32.xlu0 %v1748, 126
        %v1752 = vpop.permute.xlu0 %1751
        %1753 = vrot.lane.b32.xlu0 %v1750, 126
        %v1754 = vpop.permute.xlu0 %1753
        %1755 = vrot.lane.b32.xlu0 %v1749, 126
        %v1756 = vpop.permute.xlu0 %1755
        %v1760 = vadd.f32 %v1668, %v1752
        %v1761 = vadd.f32 %v1669, %v1754
        %v1762 = vadd.f32 %v1670, %v1756
        %s1763 = sld [smem:[#allocation8 + $0x48]]
        %v1764 = vstv %s1763
        %v1765 = vmul.f32 %v1764, %v1421
        %v1766 = vmul.f32 %v1764, %v1422
        %v1767 = vmul.f32 %v1764, %v1423
        %v1771 = vrot.slane %v1765, 1
        %v1772 = vrot.slane %v1766, 1
        %v1773 = vsel %vm481, %v1771, %v1772
        %v1774 = vrot.slane %v1767, 1
        %v1775 = vsel %vm481, %v1772, %v1774
        %1776 = vrot.lane.b32.xlu0 %v1773, 126
        %v1777 = vpop.permute.xlu0 %1776
        %1778 = vrot.lane.b32.xlu0 %v1775, 126
        %v1779 = vpop.permute.xlu0 %1778
        %1780 = vrot.lane.b32.xlu0 %v1774, 126
        %v1781 = vpop.permute.xlu0 %1780
        %v1785 = vadd.f32 %v1693, %v1777
        %v1786 = vadd.f32 %v1694, %v1779
        %v1787 = vadd.f32 %v1695, %v1781
        %s1788 = sld [smem:[#allocation8 + $0x4f]]
        %v1789 = vstv %s1788
        %v1790 = vmul.f32 %v1789, %v1421
        %v1791 = vmul.f32 %v1789, %v1422
        %v1792 = vmul.f32 %v1789, %v1423
        %v1796 = vrot.slane %v1790, 1
        %v1797 = vrot.slane %v1791, 1
        %v1798 = vsel %vm481, %v1796, %v1797
        %v1799 = vrot.slane %v1792, 1
        %v1800 = vsel %vm481, %v1797, %v1799
        %1801 = vrot.lane.b32.xlu0 %v1798, 126
        %v1802 = vpop.permute.xlu0 %1801
        %1803 = vrot.lane.b32.xlu0 %v1800, 126
        %v1804 = vpop.permute.xlu0 %1803
        %1805 = vrot.lane.b32.xlu0 %v1799, 126
        %v1806 = vpop.permute.xlu0 %1805
        %v1810 = vadd.f32 %v1714, %v1802
        %v1811 = vadd.f32 %v1715, %v1804
        %v1812 = vadd.f32 %v1716, %v1806
        %s1813 = sld [smem:[#allocation8 + $0x56]]
        %v1814 = vstv %s1813
        %v1815 = vmul.f32 %v1814, %v1421
        %v1816 = vmul.f32 %v1814, %v1422
        %v1817 = vmul.f32 %v1814, %v1423
        %v1821 = vrot.slane %v1815, 5
        %v1822 = vrot.slane %v1816, 5
        %v1823 = vsel %vm457, %v1821, %v1822
        %v1824 = vrot.slane %v1817, 5
        %v1825 = vsel %vm457, %v1822, %v1824
        %1826 = vrot.lane.b32.xlu0 %v1823, 126
        %v1827 = vpop.permute.xlu0 %1826
        %1828 = vrot.lane.b32.xlu0 %v1825, 126
        %v1829 = vpop.permute.xlu0 %1828
        %v1832 = vadd.f32 %v1736, %v1827
        %v1833 = vadd.f32 %v1737, %v1829
        %s1834 = sld [smem:[#allocation8 + $0x5d]]
        %v1835 = vstv %s1834
        %v1836 = vmul.f32 %v1835, %v1421
        %v1837 = vmul.f32 %v1835, %v1422
        %v1838 = vmul.f32 %v1835, %v1423
        %v1842 = vrot.slane %v1836, 5
        %v1843 = vrot.slane %v1837, 5
        %v1844 = vsel %vm457, %v1842, %v1843
        %v1845 = vrot.slane %v1838, 5
        %v1846 = vsel %vm457, %v1843, %v1845
        %1847 = vrot.lane.b32.xlu0 %v1844, 126
        %v1848 = vpop.permute.xlu0 %1847
        %1849 = vrot.lane.b32.xlu0 %v1846, 126
        %v1850 = vpop.permute.xlu0 %1849
        %1851 = vrot.lane.b32.xlu0 %v1845, 126
        %v1852 = vpop.permute.xlu0 %1851
        %v1856 = vadd.f32 %v1760, %v1848
        %v1857 = vadd.f32 %v1761, %v1850
        %v1858 = vadd.f32 %v1762, %v1852
        %s1859 = sld [smem:[#allocation8 + $0x34]]
        %v1860 = vstv %s1859
        %v1861 = vmul.f32 %v1860, %v1421
        %v1862 = vmul.f32 %v1860, %v1422
        %v1865 = vrot.slane %v1861, 6
        %v1866 = vrot.slane %v1862, 6
        %v1867 = vsel %vm622, %v1865, %v1866
        %1868 = vrot.lane.b32.xlu0 %v1865, 125
        %v1869 = vpop.permute.xlu0 %1868
        %1870 = vrot.lane.b32.xlu0 %v1867, 125
        %v1871 = vpop.permute.xlu0 %1870
        %1872 = vrot.lane.b32.xlu0 %v1866, 125
        %v1873 = vpop.permute.xlu0 %1872
        %v1877 = vadd.f32 %v1785, %v1869
        %v1878 = vadd.f32 %v1786, %v1871
        %v1879 = vadd.f32 %v1787, %v1873
        %s1880 = sld [smem:[#allocation8 + $0x3b]]
        %v1881 = vstv %s1880
        %v1882 = vmul.f32 %v1881, %v1421
        %v1883 = vmul.f32 %v1881, %v1422
        %v1884 = vmul.f32 %v1881, %v1423
        %v1888 = vrot.slane %v1882, 6
        %v1889 = vrot.slane %v1883, 6
        %v1890 = vsel %vm622, %v1888, %v1889
        %v1891 = vrot.slane %v1884, 6
        %v1892 = vsel %vm622, %v1889, %v1891
        %1893 = vrot.lane.b32.xlu0 %v1888, 125
        %v1894 = vpop.permute.xlu0 %1893
        %1895 = vrot.lane.b32.xlu0 %v1890, 125
        %v1896 = vpop.permute.xlu0 %1895
        %1897 = vrot.lane.b32.xlu0 %v1892, 125
        %v1898 = vpop.permute.xlu0 %1897
        %v1902 = vadd.f32 %v1810, %v1894
        %v1903 = vadd.f32 %v1811, %v1896
        %v1904 = vadd.f32 %v1812, %v1898
        %s1905 = sld [smem:[#allocation8 + $0x42]]
        %v1906 = vstv %s1905
        %v1907 = vmul.f32 %v1906, %v1421
        %v1908 = vmul.f32 %v1906, %v1422
        %v1909 = vmul.f32 %v1906, %v1423
        %v1913 = vrot.slane %v1907, 2
        %v1914 = vrot.slane %v1908, 2
        %v1915 = vsel %vm671, %v1913, %v1914
        %v1916 = vrot.slane %v1909, 2
        %v1917 = vsel %vm671, %v1914, %v1916
        %1918 = vrot.lane.b32.xlu0 %v1915, 125
        %v1919 = vpop.permute.xlu0 %1918
        %1920 = vrot.lane.b32.xlu0 %v1917, 125
        %v1921 = vpop.permute.xlu0 %1920
        %v1924 = vadd.f32 %v1832, %v1919
        %v1925 = vadd.f32 %v1833, %v1921
        %s1926 = sld [smem:[#allocation8 + $0x49]]
        %v1927 = vstv %s1926
        %v1928 = vmul.f32 %v1927, %v1421
        %v1929 = vmul.f32 %v1927, %v1422
        %v1930 = vmul.f32 %v1927, %v1423
        %v1934 = vrot.slane %v1928, 2
        %v1935 = vrot.slane %v1929, 2
        %v1936 = vsel %vm671, %v1934, %v1935
        %v1937 = vrot.slane %v1930, 2
        %v1938 = vsel %vm671, %v1935, %v1937
        %1939 = vrot.lane.b32.xlu0 %v1936, 125
        %v1940 = vpop.permute.xlu0 %1939
        %1941 = vrot.lane.b32.xlu0 %v1938, 125
        %v1942 = vpop.permute.xlu0 %1941
        %1943 = vrot.lane.b32.xlu0 %v1937, 125
        %v1944 = vpop.permute.xlu0 %1943
        %v1948 = vadd.f32 %v1856, %v1940
        %v1949 = vadd.f32 %v1857, %v1942
        %v1950 = vadd.f32 %v1858, %v1944
        %s1951 = sld [smem:[#allocation8 + $0x50]]
        %v1952 = vstv %s1951
        %v1953 = vmul.f32 %v1952, %v1421
        %v1954 = vmul.f32 %v1952, %v1422
        %v1955 = vmul.f32 %v1952, %v1423
        %v1959 = vrot.slane %v1953, 2
        %v1960 = vrot.slane %v1954, 2
        %v1961 = vsel %vm671, %v1959, %v1960
        %v1962 = vrot.slane %v1955, 2
        %v1963 = vsel %vm671, %v1960, %v1962
        %1964 = vrot.lane.b32.xlu0 %v1961, 125
        %v1965 = vpop.permute.xlu0 %1964
        %1966 = vrot.lane.b32.xlu0 %v1963, 125
        %v1967 = vpop.permute.xlu0 %1966
        %1968 = vrot.lane.b32.xlu0 %v1962, 125
        %v1969 = vpop.permute.xlu0 %1968
        %v1973 = vadd.f32 %v1877, %v1965
        %v1974 = vadd.f32 %v1878, %v1967
        %v1975 = vadd.f32 %v1879, %v1969
        %s1976 = sld [smem:[#allocation8 + $0x57]]
        %v1977 = vstv %s1976
        %v1978 = vmul.f32 %v1977, %v1421
        %v1979 = vmul.f32 %v1977, %v1422
        %v1980 = vmul.f32 %v1977, %v1423
        %v1984 = vrot.slane %v1978, 2
        %v1985 = vrot.slane %v1979, 2
        %v1986 = vsel %vm671, %v1984, %v1985
        %v1987 = vrot.slane %v1980, 2
        %v1988 = vsel %vm671, %v1985, %v1987
        %1989 = vrot.lane.b32.xlu0 %v1986, 125
        %v1990 = vpop.permute.xlu0 %1989
        %1991 = vrot.lane.b32.xlu0 %v1988, 125
        %v1992 = vpop.permute.xlu0 %1991
        %1993 = vrot.lane.b32.xlu0 %v1987, 125
        %v1994 = vpop.permute.xlu0 %1993
        %v1998 = vadd.f32 %v1902, %v1990
        %v1999 = vadd.f32 %v1903, %v1992
        %v2000 = vadd.f32 %v1904, %v1994
        %s2001 = sld [smem:[#allocation8 + $0x5e]]
        %v2002 = vstv %s2001
        %v2003 = vmul.f32 %v2002, %v1421
        %v2004 = vmul.f32 %v2002, %v1422
        %v2005 = vmul.f32 %v2002, %v1423
        %v2009 = vrot.slane %v2003, 6
        %v2010 = vrot.slane %v2004, 6
        %v2011 = vsel %vm622, %v2009, %v2010
        %v2012 = vrot.slane %v2005, 6
        %v2013 = vsel %vm622, %v2010, %v2012
        %2014 = vrot.lane.b32.xlu0 %v2011, 125
        %v2015 = vpop.permute.xlu0 %2014
        %2016 = vrot.lane.b32.xlu0 %v2013, 125
        %v2017 = vpop.permute.xlu0 %2016
        %v2020 = vadd.f32 %v1924, %v2015
        %v2021 = vadd.f32 %v1925, %v2017
        %s2022 = sld [smem:[#allocation8 + $0x35]]
        %v2023 = vstv %s2022
        %v2024 = vmul.f32 %v2023, %v1421
        %v2025 = vmul.f32 %v2023, %v1422
        %v2028 = vrot.slane %v2024, 7
        %v2029 = vrot.slane %v2025, 7
        %v2030 = vsel %vm787, %v2028, %v2029
        %2031 = vrot.lane.b32.xlu0 %v2028, 124
        %v2032 = vpop.permute.xlu0 %2031
        %2033 = vrot.lane.b32.xlu0 %v2030, 124
        %v2034 = vpop.permute.xlu0 %2033
        %2035 = vrot.lane.b32.xlu0 %v2029, 124
        %v2036 = vpop.permute.xlu0 %2035
        %v2040 = vadd.f32 %v1948, %v2032
        %v2041 = vadd.f32 %v1949, %v2034
        %v2042 = vadd.f32 %v1950, %v2036
        %s2043 = sld [smem:[#allocation8 + $0x3c]]
        %v2044 = vstv %s2043
        %v2045 = vmul.f32 %v2044, %v1421
        %v2046 = vmul.f32 %v2044, %v1422
        %v2047 = vmul.f32 %v2044, %v1423
        %v2051 = vrot.slane %v2045, 7
        %v2052 = vrot.slane %v2046, 7
        %v2053 = vsel %vm787, %v2051, %v2052
        %v2054 = vrot.slane %v2047, 7
        %v2055 = vsel %vm787, %v2052, %v2054
        %2056 = vrot.lane.b32.xlu0 %v2051, 124
        %v2057 = vpop.permute.xlu0 %2056
        %2058 = vrot.lane.b32.xlu0 %v2053, 124
        %v2059 = vpop.permute.xlu0 %2058
        %2060 = vrot.lane.b32.xlu0 %v2055, 124
        %v2061 = vpop.permute.xlu0 %2060
        %v2065 = vadd.f32 %v1973, %v2057
        %v2066 = vadd.f32 %v1974, %v2059
        %v2067 = vadd.f32 %v1975, %v2061
        %s2068 = sld [smem:[#allocation8 + $0x43]]
        %v2069 = vstv %s2068
        %v2070 = vmul.f32 %v2069, %v1421
        %v2071 = vmul.f32 %v2069, %v1422
        %v2072 = vmul.f32 %v2069, %v1423
        %v2076 = vrot.slane %v2070, 7
        %v2077 = vrot.slane %v2071, 7
        %v2078 = vsel %vm787, %v2076, %v2077
        %v2079 = vrot.slane %v2072, 7
        %v2080 = vsel %vm787, %v2077, %v2079
        %2081 = vrot.lane.b32.xlu0 %v2076, 124
        %v2082 = vpop.permute.xlu0 %2081
        %2083 = vrot.lane.b32.xlu0 %v2078, 124
        %v2084 = vpop.permute.xlu0 %2083
        %2085 = vrot.lane.b32.xlu0 %v2080, 124
        %v2086 = vpop.permute.xlu0 %2085
        %v2090 = vadd.f32 %v1998, %v2082
        %v2091 = vadd.f32 %v1999, %v2084
        %v2092 = vadd.f32 %v2000, %v2086
        %s2093 = sld [smem:[#allocation8 + $0x4a]]
        %v2094 = vstv %s2093
        %v2095 = vmul.f32 %v2094, %v1421
        %v2096 = vmul.f32 %v2094, %v1422
        %v2097 = vmul.f32 %v2094, %v1423
        %v2101 = vrot.slane %v2095, 3
        %v2102 = vrot.slane %v2096, 3
        %v2103 = vsel %vm861, %v2101, %v2102
        %v2104 = vrot.slane %v2097, 3
        %v2105 = vsel %vm861, %v2102, %v2104
        %2106 = vrot.lane.b32.xlu0 %v2103, 124
        %v2107 = vpop.permute.xlu0 %2106
        %2108 = vrot.lane.b32.xlu0 %v2105, 124
        %v2109 = vpop.permute.xlu0 %2108
        %v2112 = vadd.f32 %v2020, %v2107
        %v2113 = vadd.f32 %v2021, %v2109
        %s2114 = sld [smem:[#allocation8 + $0x51]]
        %v2115 = vstv %s2114
        %v2116 = vmul.f32 %v2115, %v1421
        %v2117 = vmul.f32 %v2115, %v1422
        %v2118 = vmul.f32 %v2115, %v1423
        %v2122 = vrot.slane %v2116, 3
        %v2123 = vrot.slane %v2117, 3
        %v2124 = vsel %vm861, %v2122, %v2123
        %v2125 = vrot.slane %v2118, 3
        %v2126 = vsel %vm861, %v2123, %v2125
        %2127 = vrot.lane.b32.xlu0 %v2124, 124
        %v2128 = vpop.permute.xlu0 %2127
        %2129 = vrot.lane.b32.xlu0 %v2126, 124
        %v2130 = vpop.permute.xlu0 %2129
        %2131 = vrot.lane.b32.xlu0 %v2125, 124
        %v2132 = vpop.permute.xlu0 %2131
        %v2136 = vadd.f32 %v2040, %v2128
        %v2137 = vadd.f32 %v2041, %v2130
        %v2138 = vadd.f32 %v2042, %v2132
        %s2139 = sld [smem:[#allocation8 + $0x58]]
        %v2140 = vstv %s2139
        %v2141 = vmul.f32 %v2140, %v1421
        %v2142 = vmul.f32 %v2140, %v1422
        %v2143 = vmul.f32 %v2140, %v1423
        %v2147 = vrot.slane %v2141, 3
        %v2148 = vrot.slane %v2142, 3
        %v2149 = vsel %vm861, %v2147, %v2148
        %v2150 = vrot.slane %v2143, 3
        %v2151 = vsel %vm861, %v2148, %v2150
        %2152 = vrot.lane.b32.xlu0 %v2149, 124
        %v2153 = vpop.permute.xlu0 %2152
        %2154 = vrot.lane.b32.xlu0 %v2151, 124
        %v2155 = vpop.permute.xlu0 %2154
        %2156 = vrot.lane.b32.xlu0 %v2150, 124
        %v2157 = vpop.permute.xlu0 %2156
        %v2161 = vadd.f32 %v2065, %v2153
        %v2162 = vadd.f32 %v2066, %v2155
        %v2163 = vadd.f32 %v2067, %v2157
        %s2164 = sld [smem:[#allocation8 + $0x5f]]
        %v2165 = vstv %s2164
        %v2166 = vmul.f32 %v2165, %v1421
        %v2167 = vmul.f32 %v2165, %v1422
        %v2168 = vmul.f32 %v2165, %v1423
        %v2172 = vrot.slane %v2166, 3
        %v2173 = vrot.slane %v2167, 3
        %v2174 = vsel %vm861, %v2172, %v2173
        %v2175 = vrot.slane %v2168, 3
        %v2176 = vsel %vm861, %v2173, %v2175
        %2177 = vrot.lane.b32.xlu0 %v2174, 124
        %v2178 = vpop.permute.xlu0 %2177
        %2179 = vrot.lane.b32.xlu0 %v2176, 124
        %v2180 = vpop.permute.xlu0 %2179
        %2181 = vrot.lane.b32.xlu0 %v2175, 124
        %v2182 = vpop.permute.xlu0 %2181
        %v2186 = vadd.f32 %v2090, %v2178
        %v2187 = vadd.f32 %v2091, %v2180
        %v2188 = vadd.f32 %v2092, %v2182
        %s2189 = sld [smem:[#allocation8 + $0x36]]
        %v2190 = vstv %s2189
        %v2191 = vmul.f32 %v2190, %v1421
        %v2192 = vmul.f32 %v2190, %v1422
        %2195 = vrot.lane.b32.xlu0 %v2191, 123
        %v2196 = vpop.permute.xlu0 %2195
        %2197 = vrot.lane.b32.xlu0 %v2192, 123
        %v2198 = vpop.permute.xlu0 %2197
        %v2201 = vadd.f32 %v2112, %v2196
        %v2202 = vadd.f32 %v2113, %v2198
        %s2203 = sld [smem:[#allocation8 + $0x3d]]
        %v2204 = vstv %s2203
        %v2205 = vmul.f32 %v2204, %v1421
        %v2206 = vmul.f32 %v2204, %v1422
        %v2207 = vmul.f32 %v2204, %v1423
        %2211 = vrot.lane.b32.xlu0 %v2205, 123
        %v2212 = vpop.permute.xlu0 %2211
        %2213 = vrot.lane.b32.xlu0 %v2206, 123
        %v2214 = vpop.permute.xlu0 %2213
        %2215 = vrot.lane.b32.xlu0 %v2207, 123
        %v2216 = vpop.permute.xlu0 %2215
        %v2220 = vadd.f32 %v2136, %v2212
        %v2221 = vadd.f32 %v2137, %v2214
        %v2222 = vadd.f32 %v2138, %v2216
        %s2223 = sld [smem:[#allocation8 + $0x44]]
        %v2224 = vstv %s2223
        %v2225 = vmul.f32 %v2224, %v1421
        %v2226 = vmul.f32 %v2224, %v1422
        %v2227 = vmul.f32 %v2224, %v1423
        %2231 = vrot.lane.b32.xlu0 %v2225, 123
        %v2232 = vpop.permute.xlu0 %2231
        %2233 = vrot.lane.b32.xlu0 %v2226, 123
        %v2234 = vpop.permute.xlu0 %2233
        %2235 = vrot.lane.b32.xlu0 %v2227, 123
        %v2236 = vpop.permute.xlu0 %2235
        %v2240 = vadd.f32 %v2161, %v2232
        %v2241 = vadd.f32 %v2162, %v2234
        %v2242 = vadd.f32 %v2163, %v2236
        %s2243 = sld [smem:[#allocation8 + $0x4b]]
        %v2244 = vstv %s2243
        %v2245 = vmul.f32 %v2244, %v1421
        %v2246 = vmul.f32 %v2244, %v1422
        %v2247 = vmul.f32 %v2244, %v1423
        %2251 = vrot.lane.b32.xlu0 %v2245, 123
        %v2252 = vpop.permute.xlu0 %2251
        %2253 = vrot.lane.b32.xlu0 %v2246, 123
        %v2254 = vpop.permute.xlu0 %2253
        %2255 = vrot.lane.b32.xlu0 %v2247, 123
        %v2256 = vpop.permute.xlu0 %2255
        %v2260 = vadd.f32 %v2186, %v2252
        %v2261 = vadd.f32 %v2187, %v2254
        %v2262 = vadd.f32 %v2188, %v2256
        %s2263 = sld [smem:[#allocation8 + $0x52]]
        %v2264 = vstv %s2263
        %v2265 = vmul.f32 %v2264, %v1421
        %v2266 = vmul.f32 %v2264, %v1422
        %v2267 = vmul.f32 %v2264, %v1423
        %v2271 = vrot.slane %v2265, 4
        %v2272 = vrot.slane %v2266, 4
        %v2273 = vsel %vm183, %v2271, %v2272
        %v2274 = vrot.slane %v2267, 4
        %v2275 = vsel %vm183, %v2272, %v2274
        %2276 = vrot.lane.b32.xlu0 %v2273, 123
        %v2277 = vpop.permute.xlu0 %2276
        %2278 = vrot.lane.b32.xlu0 %v2275, 123
        %v2279 = vpop.permute.xlu0 %2278
        %v2282 = vadd.f32 %v2201, %v2277
        %v2283 = vadd.f32 %v2202, %v2279
        %s2284 = sld [smem:[#allocation8 + $0x59]]
        %v2285 = vstv %s2284
        %v2286 = vmul.f32 %v2285, %v1421
        %v2287 = vmul.f32 %v2285, %v1422
        %v2288 = vmul.f32 %v2285, %v1423
        %v2292 = vrot.slane %v2286, 4
        %v2293 = vrot.slane %v2287, 4
        %v2294 = vsel %vm183, %v2292, %v2293
        %v2295 = vrot.slane %v2288, 4
        %v2296 = vsel %vm183, %v2293, %v2295
        %2297 = vrot.lane.b32.xlu0 %v2294, 123
        %v2298 = vpop.permute.xlu0 %2297
        %2299 = vrot.lane.b32.xlu0 %v2296, 123
        %v2300 = vpop.permute.xlu0 %2299
        %2301 = vrot.lane.b32.xlu0 %v2295, 123
        %v2302 = vpop.permute.xlu0 %2301
        %v2306 = vadd.f32 %v2220, %v2298
        %v2307 = vadd.f32 %v2221, %v2300
        %v2308 = vadd.f32 %v2222, %v2302
        %s2309 = sld [smem:[#allocation8 + $0x60]]
        %v2310 = vstv %s2309
        %v2311 = vmul.f32 %v2310, %v1421
        %v2312 = vmul.f32 %v2310, %v1422
        %v2313 = vmul.f32 %v2310, %v1423
        %v2317 = vrot.slane %v2311, 4
        %v2318 = vrot.slane %v2312, 4
        %v2319 = vsel %vm183, %v2317, %v2318
        %v2320 = vrot.slane %v2313, 4
        %v2321 = vsel %vm183, %v2318, %v2320
        %2322 = vrot.lane.b32.xlu0 %v2319, 123
        %v2323 = vpop.permute.xlu0 %2322
        %2324 = vrot.lane.b32.xlu0 %v2321, 123
        %v2325 = vpop.permute.xlu0 %2324
        %2326 = vrot.lane.b32.xlu0 %v2320, 123
        %v2327 = vpop.permute.xlu0 %2326
        %v2331 = vadd.f32 %v2240, %v2323
        %v2332 = vadd.f32 %v2241, %v2325
        %v2333 = vadd.f32 %v2242, %v2327
        %s2334 = sld [smem:[#allocation8 + $0x37]]
        %v2335 = vstv %s2334
        %v2336 = vmul.f32 %v2335, %v1421
        %v2337 = vmul.f32 %v2335, %v1422
        %v2340 = vrot.slane %v2336, 5
        %v2341 = vrot.slane %v2337, 5
        %v2342 = vsel %vm457, %v2340, %v2341
        %2343 = vrot.lane.b32.xlu0 %v2340, 122
        %v2344 = vpop.permute.xlu0 %2343
        %2345 = vrot.lane.b32.xlu0 %v2342, 122
        %v2346 = vpop.permute.xlu0 %2345
        %2347 = vrot.lane.b32.xlu0 %v2341, 122
        %v2348 = vpop.permute.xlu0 %2347
        %v2352 = vadd.f32 %v2260, %v2344
        %v2353 = vadd.f32 %v2261, %v2346
        %v2354 = vadd.f32 %v2262, %v2348
        %s2355 = sld [smem:[#allocation8 + $0x3e]]
        %v2356 = vstv %s2355
        %v2357 = vmul.f32 %v2356, %v1421
        %v2358 = vmul.f32 %v2356, %v1422
        %v2359 = vmul.f32 %v2356, %v1423
        %v2363 = vrot.slane %v2357, 1
        %v2364 = vrot.slane %v2358, 1
        %v2365 = vsel %vm481, %v2363, %v2364
        %v2366 = vrot.slane %v2359, 1
        %v2367 = vsel %vm481, %v2364, %v2366
        %2368 = vrot.lane.b32.xlu0 %v2365, 122
        %v2369 = vpop.permute.xlu0 %2368
        %2370 = vrot.lane.b32.xlu0 %v2367, 122
        %v2371 = vpop.permute.xlu0 %2370
        %v2374 = vadd.f32 %v2282, %v2369
        %v2375 = vadd.f32 %v2283, %v2371
        %s2376 = sld [smem:[#allocation8 + $0x45]]
        %v2377 = vstv %s2376
        %v2378 = vmul.f32 %v2377, %v1421
        %v2379 = vmul.f32 %v2377, %v1422
        %v2380 = vmul.f32 %v2377, %v1423
        %v2384 = vrot.slane %v2378, 1
        %v2385 = vrot.slane %v2379, 1
        %v2386 = vsel %vm481, %v2384, %v2385
        %v2387 = vrot.slane %v2380, 1
        %v2388 = vsel %vm481, %v2385, %v2387
        %2389 = vrot.lane.b32.xlu0 %v2386, 122
        %v2390 = vpop.permute.xlu0 %2389
        %2391 = vrot.lane.b32.xlu0 %v2388, 122
        %v2392 = vpop.permute.xlu0 %2391
        %2393 = vrot.lane.b32.xlu0 %v2387, 122
        %v2394 = vpop.permute.xlu0 %2393
        %v2398 = vadd.f32 %v2306, %v2390
        %v2399 = vadd.f32 %v2307, %v2392
        %v2400 = vadd.f32 %v2308, %v2394
        %s2401 = sld [smem:[#allocation8 + $0x4c]]
        %v2402 = vstv %s2401
        %v2403 = vmul.f32 %v2402, %v1421
        %v2404 = vmul.f32 %v2402, %v1422
        %v2405 = vmul.f32 %v2402, %v1423
        %v2409 = vrot.slane %v2403, 1
        %v2410 = vrot.slane %v2404, 1
        %v2411 = vsel %vm481, %v2409, %v2410
        %v2412 = vrot.slane %v2405, 1
        %v2413 = vsel %vm481, %v2410, %v2412
        %2414 = vrot.lane.b32.xlu0 %v2411, 122
        %v2415 = vpop.permute.xlu0 %2414
        %2416 = vrot.lane.b32.xlu0 %v2413, 122
        %v2417 = vpop.permute.xlu0 %2416
        %2418 = vrot.lane.b32.xlu0 %v2412, 122
        %v2419 = vpop.permute.xlu0 %2418
        %v2423 = vadd.f32 %v2331, %v2415
        %v2424 = vadd.f32 %v2332, %v2417
        %v2425 = vadd.f32 %v2333, %v2419
        %s2426 = sld [smem:[#allocation8 + $0x53]]
        %v2427 = vstv %s2426
        %v2428 = vmul.f32 %v2427, %v1421
        %v2429 = vmul.f32 %v2427, %v1422
        %v2430 = vmul.f32 %v2427, %v1423
        %v2434 = vrot.slane %v2428, 1
        %v2435 = vrot.slane %v2429, 1
        %v2436 = vsel %vm481, %v2434, %v2435
        %v2437 = vrot.slane %v2430, 1
        %v2438 = vsel %vm481, %v2435, %v2437
        %2439 = vrot.lane.b32.xlu0 %v2436, 122
        %v2440 = vpop.permute.xlu0 %2439
        %2441 = vrot.lane.b32.xlu0 %v2438, 122
        %v2442 = vpop.permute.xlu0 %2441
        %2443 = vrot.lane.b32.xlu0 %v2437, 122
        %v2444 = vpop.permute.xlu0 %2443
        %v2448 = vadd.f32 %v2352, %v2440
        %v2449 = vadd.f32 %v2353, %v2442
        %v2450 = vadd.f32 %v2354, %v2444
        %s2451 = sld [smem:[#allocation8 + $0x5a]]
        %v2452 = vstv %s2451
        %v2453 = vmul.f32 %v2452, %v1421
        %v2454 = vmul.f32 %v2452, %v1422
        %v2455 = vmul.f32 %v2452, %v1423
        %v2459 = vrot.slane %v2453, 5
        %v2460 = vrot.slane %v2454, 5
        %v2461 = vsel %vm457, %v2459, %v2460
        %v2462 = vrot.slane %v2455, 5
        %v2463 = vsel %vm457, %v2460, %v2462
        %2464 = vrot.lane.b32.xlu0 %v2461, 122
        %v2465 = vpop.permute.xlu0 %2464
        %2466 = vrot.lane.b32.xlu0 %v2463, 122
        %v2467 = vpop.permute.xlu0 %2466
        %v2470 = vadd.f32 %v2374, %v2465
        %v2471 = vadd.f32 %v2375, %v2467
        %s2472 = sld [smem:[#allocation8 + $0x61]]
        %v2473 = vstv %s2472
        %v2474 = vmul.f32 %v2473, %v1421
        %v2475 = vmul.f32 %v2473, %v1422
        %v2476 = vmul.f32 %v2473, %v1423
        %v2480 = vrot.slane %v2474, 5
        %v2481 = vrot.slane %v2475, 5
        %v2482 = vsel %vm457, %v2480, %v2481
        %v2483 = vrot.slane %v2476, 5
        %v2484 = vsel %vm457, %v2481, %v2483
        %2485 = vrot.lane.b32.xlu0 %v2482, 122
        %v2486 = vpop.permute.xlu0 %2485
        %2487 = vrot.lane.b32.xlu0 %v2484, 122
        %v2488 = vpop.permute.xlu0 %2487
        %2489 = vrot.lane.b32.xlu0 %v2483, 122
        %v2490 = vpop.permute.xlu0 %2489
        %v2494 = vadd.f32 %v2398, %v2486
        %v2495 = vadd.f32 %v2399, %v2488
        %v2496 = vadd.f32 %v2400, %v2490
        %v2500 = vrot.slane %v2494, 1
        %v2501 = vrot.slane %v2495, 1
        %v2502 = vsel %vm481, %v2500, %v2501
        %v2503 = vrot.slane %v2496, 1
        %v2504 = vsel %vm481, %v2501, %v2503
        %v2507 = vadd.f32 %v2470, %v2502
        %v2508 = vadd.f32 %v2471, %v2504
        %v2512 = vrot.slane %v2448, 1
        %v2513 = vrot.slane %v2449, 1
        %v2514 = vsel %vm481, %v2512, %v2513
        %v2515 = vrot.slane %v2450, 1
        %v2516 = vsel %vm481, %v2513, %v2515
        %v2520 = vadd.f32 %v2423, %v2514
        %v2521 = vadd.f32 %v2424, %v2516
        %v2522 = vadd.f32 %v2425, %v2515
        %v2526 = vrot.slane %v2520, 2
        %v2527 = vrot.slane %v2521, 2
        %v2528 = vsel %vm671, %v2526, %v2527
        %v2529 = vrot.slane %v2522, 2
        %v2530 = vsel %vm671, %v2527, %v2529
        %v2533 = vadd.f32 %v2507, %v2528
        %v2534 = vadd.f32 %v2508, %v2530
        %v2535 = vxor.u32 %v2533, 2147483648
        %v2536 = vxor.u32 %v2534, 2147483648
        %v2537 = vmul.f32 %v2535, 1.442695
        %v2538 = vpow.pop %v2537
        %v2539 = vmul.f32 %v2536, 1.442695
        %v2540 = vpow.pop %v2539
        %v2541 = vadd.f32 %v2538, 1.0
        %v2542 = vadd.f32 %v2540, 1.0
        %v2543 = vrcp.pop %v2541
        %v2544 = vmul.f32 %v2541, %v2543
        %v2545 = vsub.f32 1.0, %v2544
        %v2546 = vmul.f32 %v2543, %v2545
        %v2547 = vadd.f32 %v2543, %v2546
        %vm2548 = vweird.f32 %v2541
        %vm2549 = vweird.f32 %v2543
        %vm2550 = vmor %vm2548, %vm2549
        %v2551 = vsel %vm2550, %v2543, %v2547
        %v2552 = vand.u32 2147483647, %v2541
        %vm2553 = vcmp.eq.f32.partialorder %v2552, 8.507059e+37
        %v2554 = vand.u32 %v2541, 2147483648
        %v2555 = vor.u32 1.1754944e-38, %v2554
        %v2556 = vsel %vm2553, %v2555, %v2551
        %v2557 = vmul.f32 1.0, %v2556
        %v2558 = vrcp.pop %v2542
        %v2559 = vmul.f32 %v2542, %v2558
        %v2560 = vsub.f32 1.0, %v2559
        %v2561 = vmul.f32 %v2558, %v2560
        %v2562 = vadd.f32 %v2558, %v2561
        %vm2563 = vweird.f32 %v2542
        %vm2564 = vweird.f32 %v2558
        %vm2565 = vmor %vm2563, %vm2564
        %v2566 = vsel %vm2565, %v2558, %v2562
        %v2567 = vand.u32 2147483647, %v2542
        %vm2568 = vcmp.eq.f32.partialorder %v2567, 8.507059e+37
        %v2569 = vand.u32 %v2542, 2147483648
        %v2570 = vor.u32 1.1754944e-38, %v2569
        %v2571 = vsel %vm2568, %v2570, %v2566
        %v2572 = vmul.f32 1.0, %v2571
        %v2573 = vlaneseq
        %vm2574 = vcmp.ge.s32.totalorder %v2573, 0
        %vm2575 = vcmp.lt.s32.totalorder %v2573, 16
        %vm2576 = vmand %vm2574, %vm2575
        %2577 = vst.msk [vmem:[#allocation3] sm:$0x1] %vm2576, %v2557
        %2579 = vst [vmem:[#allocation1] sm:$0xff] %v2557
        %s2580 = scalar_lea.vmem [#allocation1], 1
        %v2581 = vld [vmem:[%s2580] ss:$9 sm:$0xff]
        %2582 = vrot.lane.b32.xlu0 %v2581, 16
        %v2583 = vpop.permute.xlu0 %2582
        %vm2585 = vcmp.ge.s32.totalorder %v2573, 16
        %vm2586 = vcmp.lt.s32.totalorder %v2573, 32
        %vm2587 = vmand %vm2585, %vm2586
        %2588 = vst.msk [vmem:[#allocation3] sm:$0x1] %vm2587, %v2583
        %2589 = vst [vmem:[#allocation1] sm:$0xff] %v2557
        %s2590 = scalar_lea.vmem [#allocation1], 2
        %v2591 = vld [vmem:[%s2590] ss:$9 sm:$0xff]
        %2592 = vrot.lane.b32.xlu0 %v2591, 32
        %v2593 = vpop.permute.xlu0 %2592
        %vm2595 = vcmp.ge.s32.totalorder %v2573, 32
        %vm2596 = vcmp.lt.s32.totalorder %v2573, 48
        %vm2597 = vmand %vm2595, %vm2596
        %2598 = vst.msk [vmem:[#allocation3] sm:$0x1] %vm2597, %v2593
        %2599 = vst [vmem:[#allocation1] sm:$0xff] %v2557
        %s2600 = scalar_lea.vmem [#allocation1], 3
        %v2601 = vld [vmem:[%s2600] ss:$9 sm:$0xff]
        %2602 = vrot.lane.b32.xlu0 %v2601, 48
        %v2603 = vpop.permute.xlu0 %2602
        %vm2605 = vcmp.ge.s32.totalorder %v2573, 48
        %vm2606 = vcmp.lt.s32.totalorder %v2573, 64
        %vm2607 = vmand %vm2605, %vm2606
        %2608 = vst.msk [vmem:[#allocation3] sm:$0x1] %vm2607, %v2603
        %2609 = vst [vmem:[#allocation1] sm:$0xff] %v2557
        %s2610 = scalar_lea.vmem [#allocation1], 4
        %v2611 = vld [vmem:[%s2610] ss:$9 sm:$0xff]
        %2612 = vrot.lane.b32.xlu0 %v2611, 64
        %v2613 = vpop.permute.xlu0 %2612
        %vm2615 = vcmp.ge.s32.totalorder %v2573, 64
        %vm2616 = vcmp.lt.s32.totalorder %v2573, 80
        %vm2617 = vmand %vm2615, %vm2616
        %2618 = vst.msk [vmem:[#allocation3] sm:$0x1] %vm2617, %v2613
        %2619 = vst [vmem:[#allocation1] sm:$0xff] %v2557
        %s2620 = scalar_lea.vmem [#allocation1], 5
        %v2621 = vld [vmem:[%s2620] ss:$9 sm:$0xff]
        %2622 = vrot.lane.b32.xlu0 %v2621, 80
        %v2623 = vpop.permute.xlu0 %2622
        %vm2625 = vcmp.ge.s32.totalorder %v2573, 80
        %vm2626 = vcmp.lt.s32.totalorder %v2573, 96
        %vm2627 = vmand %vm2625, %vm2626
        %2628 = vst.msk [vmem:[#allocation3] sm:$0x1] %vm2627, %v2623
        %2629 = vst [vmem:[#allocation1] sm:$0xff] %v2557
        %s2630 = scalar_lea.vmem [#allocation1], 6
        %v2631 = vld [vmem:[%s2630] ss:$9 sm:$0xff]
        %2632 = vrot.lane.b32.xlu0 %v2631, 96
        %v2633 = vpop.permute.xlu0 %2632
        %vm2635 = vcmp.ge.s32.totalorder %v2573, 96
        %vm2636 = vcmp.lt.s32.totalorder %v2573, 112
        %vm2637 = vmand %vm2635, %vm2636
        %2638 = vst.msk [vmem:[#allocation3] sm:$0x1] %vm2637, %v2633
        %2639 = vst [vmem:[#allocation1] sm:$0xff] %v2557
        %s2640 = scalar_lea.vmem [#allocation1], 7
        %v2641 = vld [vmem:[%s2640] ss:$9 sm:$0xff]
        %2642 = vrot.lane.b32.xlu0 %v2641, 112
        %v2643 = vpop.permute.xlu0 %2642
        %vm2645 = vcmp.ge.s32.totalorder %v2573, 112
        %vm2646 = vcmp.lt.s32.totalorder %v2573, 128
        %vm2647 = vmand %vm2645, %vm2646
        %2648 = vst.msk [vmem:[#allocation3] sm:$0x1] %vm2647, %v2643
        %2649 = vst.msk [vmem:[#allocation3 + $0x1] sm:$0x1] %vm2576, %v2572
        %2651 = vst [vmem:[#allocation1] sm:$0xff] %v2572
        %s2652 = scalar_lea.vmem [#allocation1], 1
        %v2653 = vld [vmem:[%s2652] ss:$9 sm:$0xff]
        %2654 = vrot.lane.b32.xlu0 %v2653, 16
        %v2655 = vpop.permute.xlu0 %2654
        %2657 = vst.msk [vmem:[#allocation3 + $0x1] sm:$0x1] %vm2587, %v2655
        %2658 = vst [vmem:[#allocation1] sm:$0xff] %v2572
        %s2659 = scalar_lea.vmem [#allocation1], 2
        %v2660 = vld [vmem:[%s2659] ss:$9 sm:$0xff]
        %2661 = vrot.lane.b32.xlu0 %v2660, 32
        %v2662 = vpop.permute.xlu0 %2661
        %2664 = vst.msk [vmem:[#allocation3 + $0x1] sm:$0x1] %vm2597, %v2662
        %2665 = vst [vmem:[#allocation1] sm:$0xff] %v2572
        %s2666 = scalar_lea.vmem [#allocation1], 3
        %v2667 = vld [vmem:[%s2666] ss:$9 sm:$0xff]
        %2668 = vrot.lane.b32.xlu0 %v2667, 48
        %v2669 = vpop.permute.xlu0 %2668
        %2671 = vst.msk [vmem:[#allocation3 + $0x1] sm:$0x1] %vm2607, %v2669
        %2672 = vst [vmem:[#allocation1] sm:$0xff] %v2572
        %s2673 = scalar_lea.vmem [#allocation1], 4
        %v2674 = vld [vmem:[%s2673] ss:$9 sm:$0xff]
        %2675 = vrot.lane.b32.xlu0 %v2674, 64
        %v2676 = vpop.permute.xlu0 %2675
        %2678 = vst.msk [vmem:[#allocation3 + $0x1] sm:$0x1] %vm2617, %v2676
        %2679 = vst [vmem:[#allocation1] sm:$0xff] %v2572
        %s2680 = scalar_lea.vmem [#allocation1], 5
        %v2681 = vld [vmem:[%s2680] ss:$9 sm:$0xff]
        %2682 = vrot.lane.b32.xlu0 %v2681, 80
        %v2683 = vpop.permute.xlu0 %2682
        %2685 = vst.msk [vmem:[#allocation3 + $0x1] sm:$0x1] %vm2627, %v2683
        %2686 = vst [vmem:[#allocation1] sm:$0xff] %v2572
        %s2687 = scalar_lea.vmem [#allocation1], 6
        %v2688 = vld [vmem:[%s2687] ss:$9 sm:$0xff]
        %2689 = vrot.lane.b32.xlu0 %v2688, 96
        %v2690 = vpop.permute.xlu0 %2689
        %2692 = vst.msk [vmem:[#allocation3 + $0x1] sm:$0x1] %vm2637, %v2690
        %2693 = vst [vmem:[#allocation1] sm:$0xff] %v2572
        %s2694 = scalar_lea.vmem [#allocation1], 7
        %v2695 = vld [vmem:[%s2694] ss:$9 sm:$0xff]
        %2696 = vrot.lane.b32.xlu0 %v2695, 112
        %v2697 = vpop.permute.xlu0 %2696
        %2699 = vst.msk [vmem:[#allocation3 + $0x1] sm:$0x1] %vm2647, %v2697
        %v2700 = vld [vmem:[#allocation3] sm:$0x3]
        %v2701 = vld [vmem:[%s148] sm:$0xff]
        %v2703 = vperm.slane %v2700, 0
        %v2704 = vperm.slane %v2700, 1
        %v2705 = vrot.slane %v2704, 4
        %v2706 = vsel %vm183, %v2703, %v2705
        %v2708 = vmul.f32 %v2701, %v2706
        %2709 = vst [vmem:[%s175] sm:$0xff] %v2708
        %s2710 = sand.u32 %s75, 1
        %s2711 = scalar_lea.sflag [#allocation6], %s2710
        %s2712 = sand.u32 %s75, 1
        %s2713 = smul.addr %s2712, 8
        %s2714 = scalar_lea.vmem [#allocation9], %s2713
        // Predicated region
        $region37: #{tpu_custom_call.1} parent=27 // pred_check
          %p2715 = pneg %p85
        $region38: #{tpu_custom_call.1} parent=27 // pred_check_branch
          %2717 = sbr.rel (%p2715) target = $region40
        $region39: #{tpu_custom_call.1} parent=27 // pred_region
          %2719 = vsyncadd %s2711, 0
          %s2720 = smul.addr %s20, 2
          %s2721 = smul.addr %s2720, 4
          %s2722 = scalar_lea.hbm %s2, %s2721
          %s2724 = sshll.u32 %s2714, 4
          %s2725 = int_to_ptr.vmem [resolvable:$true] %s2724
          %s2726 = sshll.u32 %s2722, 4
          %s2727 = int_to_ptr.hbm [resolvable:$true] %s2726
          %2729 = dma.vmem_to_hbm [thread:$0]  %s2725, 128, %s2727, %s2711
        $region40: #{tpu_custom_call.1} parent=27 // pred_fallthru
          _
      $region28: #{tpu_custom_call.1} parent=5 // pred_fallthru
        _
      %p2730 = scmp.le.s32.totalorder 2, %s15
      // Predicated region
      $region41: #{tpu_custom_call.1} parent=5 // pred_check
        %p2731 = pneg %p2730
      $region42: #{tpu_custom_call.1} parent=5 // pred_check_branch
        %2733 = sbr.rel (%p2731) target = $region44
      $region43: #{tpu_custom_call.1} parent=5 // pred_region
        %s2734 = ssub.s32 %s15, 2
        // Predicated region
        $region45: #{tpu_custom_call.1} parent=43 // pred_check
          %p2735 = pneg %p91
        $region46: #{tpu_custom_call.1} parent=43 // pred_check_branch
          %2737 = sbr.rel (%p2735) target = $region48
        $region47: #{tpu_custom_call.1} parent=43 // pred_region
          %s2738 = sand.u32 %s76, 1
          %s2739 = scalar_lea.sflag [#allocation6], %s2738
          %s2740 = sand.u32 %s76, 1
          %s2741 = smul.addr %s2740, 8
          %s2742 = scalar_lea.vmem [#allocation9], %s2741
          %2744 = dma.done %s2739, 128
        $region48: #{tpu_custom_call.1} parent=43 // pred_fallthru
          _
      $region44: #{tpu_custom_call.1} parent=5 // pred_fallthru
        _
    $region6: #{tpu_custom_call.1} parent=1 // loop_footer
      %s19 = sadd.s32 1, %s15
    $region7: #{tpu_custom_call.1} parent=1 // loop_footer_branch
      %14 = sbr.rel target = $region3
    $region8: #{tpu_custom_call.1} parent=1 // loop_exit
      _
    %2745 = vsyncpa [#allocation5], 1
    %s2746 = scalar_lea.sflag [#allocation5], 1
    %2747 = vsyncpa %s2746, 1
    %2748 = vsyncpa [#allocation6], 1
    %s2749 = scalar_lea.sflag [#allocation6], 1
    %2750 = vsyncpa %s2749, 1
    %2751 = vsyncpa [#allocation7], 1
    %s2752 = scalar_lea.sflag [#allocation7], 1
    %2753 = vsyncpa %s2752, 1

</llo_original>
